<compile_context>
chip_gen: v7x
topology: tpu7x:2x2x1
jax: 0.10.0
libtpu: 0.0.40
codegen_flags: <defaults>
</compile_context>

<pallas_src>
import jax
import jax.numpy as jnp
from jax import lax
from jax.experimental import pallas as pl
from jax.experimental.pallas import tpu as pltpu  # noqa: F401  (kept for parity)

D = 32              # num_units == embedding_size
NUM_CLASSES = 3
VOCAB = 64
S = 8               # sentence length (S1 == S2, so all 4 LSTM directions batch)
B = 2               # batch size (power of two assumed by the attention masks)
NROW = 4 * B        # [sent1 fwd, sent2 fwd, sent1 bwd, sent2 bwd] x B rows
NQ = 2 * B * S      # attention rows, (time, sentence, sample) order


# --------------------------------------------------------------------------
# Fused ESIM forward kernel (no grid, no scratch: everything lives in vregs /
# compiler-managed VMEM).
# --------------------------------------------------------------------------
def esim_kernel(ids_ref, mi_ref, mc_ref, mq_ref, mk_ref,
                emb_ref, wxi_ref, bxi_ref, whi_ref,
                wxc_ref, bxc_ref, whc_ref,
                cw_ref, cb_ref, aw1_ref, ab1_ref, aw2_ref, ab2_ref,
                out_ref):
    f32 = jnp.float32
    bf16 = jnp.bfloat16

    # Gate column scale: 1 for u(c), 0.5 for i/f/o so ONE tanh covers all four
    # gates (sigmoid(x) == 0.5 * (tanh(x / 2) + 1), exact identity).
    col_iota = lax.broadcasted_iota(jnp.int32, (1, 4 * D), 1)
    gate_scale = jnp.where(col_iota < D, 1.0, 0.5).astype(f32)

    def lstm_step(h, c, xg_t, m_t, wh_b):
        # xg_t: hoisted (x @ wx + bx) * gate_scale for this step, (NROW, 4D)
        gates = xg_t + jnp.dot(h.astype(bf16), wh_b, preferred_element_type=f32)
        y = jnp.tanh(gates)                          # single EUP pass, 4D lanes
        u = y[:, :D]
        sig = y[:, D:] * 0.5 + 0.5                   # i, f, o (exact fixup)
        c_new = sig[:, :D] * u + sig[:, D:2 * D] * c
        h_new = sig[:, 2 * D:] * jnp.tanh(c_new)
        h = h + m_t * (h_new - h)                    # masked hold
        c = c + m_t * (c_new - c)
        return h, c

    # ---- embedding lookup: one-hot @ table (== bf16-rounded gather) ----------
    ids = ids_ref[...]                                            # (S*NROW, 1)
    vocab_iota = lax.broadcasted_iota(jnp.int32, (S * NROW, VOCAB), 1)
    onehot = jnp.where(vocab_iota == ids, 1.0, 0.0).astype(bf16)
    x_all = jnp.dot(onehot, emb_ref[...].astype(bf16),
                    preferred_element_type=f32)                   # (S*NROW, D)
    # dropout(p=0.5) layers of the module are identity in eval mode.

    # ---- stage 1: intra bi-LSTM, 8 weight-sharing rows, unrolled over time ---
    xg_all = (jnp.dot(x_all.astype(bf16), wxi_ref[...].astype(bf16),
                      preferred_element_type=f32)
              + bxi_ref[...]) * gate_scale                        # (S*NROW, 4D)
    whi_s = (whi_ref[...] * gate_scale).astype(bf16)
    mi = jnp.broadcast_to(mi_ref[...], (S * NROW, D))             # hoisted bcast

    h = jnp.zeros((NROW, D), f32)
    c = jnp.zeros((NROW, D), f32)
    hs = []                                  # per-step held hidden states, in regs
    for t in range(S):
        h, c = lstm_step(h, c,
                         xg_all[t * NROW:(t + 1) * NROW, :],
                         mi[t * NROW:(t + 1) * NROW, :],
                         whi_s)
        hs.append(h)

    # ---- stage 2: soft alignment + compare MLP (all samples/sentences at once)
    # Context rows in (time, sentence, sample) order; fwd / bwd halves stay as
    # separate D-wide blocks (no 2D lane concat needed anywhere).
    Xf = jnp.concatenate([hs[t][0:2 * B, :] for t in range(S)], axis=0)            # (NQ, D)
    Xb = jnp.concatenate([hs[S - 1 - t][2 * B:4 * B, :] for t in range(S)], axis=0)
    mq = mq_ref[...]                                                               # (NQ, 1)
    Xf = Xf * mq                                                                   # ctx * mask
    Xb = Xb * mq
    Xf_b = Xf.astype(bf16)
    Xb_b = Xb.astype(bf16)

    dn = (((1,), (1,)), ((), ()))            # A @ B^T without explicit transpose
    scores = (lax.dot_general(Xf_b, Xf_b, dn, preferred_element_type=f32)
              + lax.dot_general(Xb_b, Xb_b, dn, preferred_element_type=f32))       # (NQ, NQ)

    # validity: same sample, different sentence, key position unpadded
    ii = lax.broadcasted_iota(jnp.int32, (NQ, NQ), 0)
    jj = lax.broadcasted_iota(jnp.int32, (NQ, NQ), 1)
    same_sample = (ii & (B - 1)) == (jj & (B - 1))      # row = t*2B + sent*B + b
    diff_sent = (ii & B) != (jj & B)
    vmask = jnp.where(same_sample & diff_sent, 1.0, 0.0).astype(f32) * mk_ref[...]

    s_msk = jnp.where(vmask > 0.0, scores, -1e30)
    e = jnp.exp(s_msk - jnp.max(s_msk, axis=1, keepdims=True)) * vmask
    attn = e / jnp.sum(e, axis=1, keepdims=True)   # beta rows (sent1) / alpha rows (sent2)
    attn_b = attn.astype(bf16)

    Af = jnp.dot(attn_b, Xf_b, preferred_element_type=f32)   # aligned ctx~, fwd half
    Ab = jnp.dot(attn_b, Xb_b, preferred_element_type=f32)   # aligned ctx~, bwd half

    # compare MLP on [a, a~, a*a~, a-a~]; the concat is folded into block matmuls
    cw = cw_ref[...]
    wa_f = (cw[0 * D:1 * D, :] + cw[6 * D:7 * D, :]).astype(bf16)
    wa_b = (cw[1 * D:2 * D, :] + cw[7 * D:8 * D, :]).astype(bf16)
    wal_f = (cw[2 * D:3 * D, :] - cw[6 * D:7 * D, :]).astype(bf16)
    wal_b = (cw[3 * D:4 * D, :] - cw[7 * D:8 * D, :]).astype(bf16)
    wp_f = cw[4 * D:5 * D, :].astype(bf16)
    wp_b = cw[5 * D:6 * D, :].astype(bf16)
    comp = (jnp.dot(Xf_b, wa_f, preferred_element_type=f32)
            + jnp.dot(Xb_b, wa_b, preferred_element_type=f32)
            + jnp.dot(Af.astype(bf16), wal_f, preferred_element_type=f32)
            + jnp.dot(Ab.astype(bf16), wal_b, preferred_element_type=f32)
            + jnp.dot((Xf * Af).astype(bf16), wp_f, preferred_element_type=f32)
            + jnp.dot((Xb * Ab).astype(bf16), wp_b, preferred_element_type=f32)
            + cb_ref[...])
    inp = jnp.maximum(comp, 0.0)                              # (NQ, D); dropout = id

    # ---- stage 3: compare bi-LSTM with on-the-fly mean/max pooling -----------
    vg_all = (jnp.dot(inp.astype(bf16), wxc_ref[...].astype(bf16),
                      preferred_element_type=f32)
              + bxc_ref[...]) * gate_scale                    # (NQ, 4D)
    whc_s = (whc_ref[...] * gate_scale).astype(bf16)
    mc = jnp.broadcast_to(mc_ref[...], (S * NROW, D))

    h = jnp.zeros((NROW, D), f32)
    c = jnp.zeros((NROW, D), f32)
    sum_h = None
    max_h = None
    for t in range(S):
        r = S - 1 - t
        # forward rows read step t; backward rows read step S-1-t (reversed
        # input, NON-reversed mask, exactly as in the source module).
        xg_t = jnp.concatenate([vg_all[t * 2 * B:(t + 1) * 2 * B, :],
                                vg_all[r * 2 * B:(r + 1) * 2 * B, :]], axis=0)
        h, c = lstm_step(h, c, xg_t, mc[t * NROW:(t + 1) * NROW, :], whc_s)
        sum_h = h if sum_h is None else sum_h + h
        max_h = h if max_h is None else jnp.maximum(max_h, h)
    mean_h = sum_h * (1.0 / S)

    # ---- stage 4: pooled features -> 2-layer MLP -> logits (single matmuls) --
    feat = jnp.concatenate([
        mean_h[0:B, :], mean_h[2 * B:3 * B, :],               # v1_mean (fwd | bwd)
        max_h[0:B, :], max_h[2 * B:3 * B, :],                 # v1_max  (fwd | bwd)
        mean_h[B:2 * B, :], mean_h[3 * B:4 * B, :],           # v2_mean (fwd | bwd)
        max_h[B:2 * B, :], max_h[3 * B:4 * B, :],             # v2_max  (fwd | bwd)
    ], axis=1)                                                # (B, 8D)
    hid = jnp.maximum(
        jnp.dot(feat.astype(bf16), aw1_ref[...].astype(bf16),
                preferred_element_type=f32) + ab1_ref[...], 0.0)
    logits = jnp.dot(hid.astype(bf16), aw2_ref[...].astype(bf16),
                     preferred_element_type=f32) + ab2_ref[...]
    out_ref[...] = logits                                     # one store


# --------------------------------------------------------------------------
# Wrapper: small int/mask glue (direction stacking, mask layouts), one call.
# --------------------------------------------------------------------------
def esim_forward(params, x1, x1_mask, x2, x2_mask):
    m1 = x1_mask.astype(jnp.float32)
    m2 = x2_mask.astype(jnp.float32)

    # 4 weight-sharing LSTM directions stacked along rows, (time, row) order.
    ids = jnp.concatenate([x1, x2, x1[::-1], x2[::-1]],
                          axis=1).reshape(S * NROW, 1).astype(jnp.int32)
    # masked-hold masks: intra stage reversed rows use the reversed mask;
    # compare stage uses the non-reversed mask everywhere (source quirk).
    mi = jnp.concatenate([m1, m2, m1[::-1], m2[::-1]], axis=1).reshape(S * NROW, 1)
    mc = jnp.concatenate([m1, m2, m1, m2], axis=1).reshape(S * NROW, 1)
    # attention masks in (time, sentence, sample) row order
    mq2d = jnp.concatenate([m1, m2], axis=1)
    mq = mq2d.reshape(NQ, 1)
    mk = mq2d.reshape(1, NQ)

    wi = params['lstm_intra']
    wc = params['lstm_compare']
    cmp_p = params['compare']
    agg = params['aggregate']

    fwd = pl.pallas_call(
        esim_kernel,
        out_shape=jax.ShapeDtypeStruct((B, NUM_CLASSES), jnp.float32),
    )
    return fwd(ids, mi, mc, mq, mk,
               params['emb'],
               wi['wx'], wi['bx'], wi['wh'],
               wc['wx'], wc['bx'], wc['wh'],
               cmp_p['w'], cmp_p['b'],
               agg['w1'], agg['b1'], agg['w2'], agg['b2'])


# --------------------------------------------------------------------------
# Deterministic parameter init (mirrors the module's __init__ / init_weight)
# --------------------------------------------------------------------------
def _ortho(key, n):
    return jax.random.orthogonal(key, n).astype(jnp.float32)


def make_lstm_params(key, d):
    keys = jax.random.split(key, 9)
    # fused gate order [u(c), i, f, o]; each block orthogonal (as in new_W/new_gate)
    wx = jnp.concatenate([_ortho(keys[k], d) for k in range(4)], axis=1)      # (d, 4d)
    wh = jnp.concatenate([_ortho(keys[4 + k], d) for k in range(4)], axis=1)  # (d, 4d)
    bound = float(1.0 / (d ** 0.5))
    bx = jax.random.uniform(keys[8], (1, 4 * d), minval=-bound, maxval=bound,
                            dtype=jnp.float32)   # nn.Linear default bias init
    return {'wx': wx, 'bx': bx, 'wh': wh}


def make_params(key):
    k_emb, k_li, k_lc, k_cmp, k_a1, k_a2 = jax.random.split(key, 6)
    return {
        'emb': jax.random.normal(k_emb, (VOCAB, D), dtype=jnp.float32),
        'lstm_intra': make_lstm_params(k_li, D),
        'lstm_compare': make_lstm_params(k_lc, D),
        'compare': {
            # row blocks [a, a~, a*a~, a-a~], each (2D, D) = (fwd | bwd)
            'w': 0.01 * jax.random.normal(k_cmp, (8 * D, D), dtype=jnp.float32),
            'b': jnp.zeros((1, D), jnp.float32),
        },
        'aggregate': {
            # row blocks [v1_mean f|b, v1_max f|b, v2_mean f|b, v2_max f|b]
            'w1': 0.01 * jax.random.normal(k_a1, (8 * D, D), dtype=jnp.float32),
            'b1': jnp.zeros((1, D), jnp.float32),
            'w2': 0.01 * jax.random.normal(k_a2, (D, NUM_CLASSES), dtype=jnp.float32),
            'b2': jnp.zeros((1, NUM_CLASSES), jnp.float32),
        },
    }


if __name__ == "__main__":
    key = jax.random.PRNGKey(0)
    k_p, k_x1, k_x2 = jax.random.split(key, 3)
    params = make_params(k_p)

    # token ids, time-major (#step, #sample), and float masks
    x1 = jax.random.randint(k_x1, (S, B), 0, VOCAB, dtype=jnp.int32)
    x2 = jax.random.randint(k_x2, (S, B), 0, VOCAB, dtype=jnp.int32)
    lens1 = jnp.array([S, S - 2], dtype=jnp.int32)
    lens2 = jnp.array([S - 1, S], dtype=jnp.int32)
    x1_mask = (jnp.arange(S)[:, None] < lens1[None, :]).astype(jnp.float32)
    x2_mask = (jnp.arange(S)[:, None] < lens2[None, :]).astype(jnp.float32)

    logits = jax.jit(esim_forward)(params, x1, x1_mask, x2, x2_mask)
    logits = jax.block_until_ready(logits)
    assert logits.shape == (B, NUM_CLASSES)
    assert bool(jnp.all(jnp.isfinite(logits)))
    print("KERNEL_OK")
</pallas_src>

<mosaic_0001>
module attributes {stable_mosaic.version = 11 : i64} {
  func.func @esim_kernel(%arg0: memref<64x1xi32, #tpu.memory_space<vmem>>, %arg1: memref<64x1xf32, #tpu.memory_space<vmem>>, %arg2: memref<64x1xf32, #tpu.memory_space<vmem>>, %arg3: memref<32x1xf32, #tpu.memory_space<vmem>>, %arg4: memref<1x32xf32, #tpu.memory_space<vmem>>, %arg5: memref<64x32xf32, #tpu.memory_space<vmem>>, %arg6: memref<32x128xf32, #tpu.memory_space<vmem>>, %arg7: memref<1x128xf32, #tpu.memory_space<vmem>>, %arg8: memref<32x128xf32, #tpu.memory_space<vmem>>, %arg9: memref<32x128xf32, #tpu.memory_space<vmem>>, %arg10: memref<1x128xf32, #tpu.memory_space<vmem>>, %arg11: memref<32x128xf32, #tpu.memory_space<vmem>>, %arg12: memref<256x32xf32, #tpu.memory_space<vmem>>, %arg13: memref<1x32xf32, #tpu.memory_space<vmem>>, %arg14: memref<256x32xf32, #tpu.memory_space<vmem>>, %arg15: memref<1x32xf32, #tpu.memory_space<vmem>>, %arg16: memref<32x3xf32, #tpu.memory_space<vmem>>, %arg17: memref<1x3xf32, #tpu.memory_space<vmem>>, %arg18: memref<2x3xf32, #tpu.memory_space<vmem>>) attributes {dimension_semantics = [], scalar_prefetch = 0 : i64, scratch_operands = 0 : i64, tpu.core_type = #tpu.core_type<tc>} {
    %0 = tpu.iota {dimensions = array<i32: 1>} : vector<1x128xi32>
    %c32_i32 = arith.constant 32 : i32
    %1 = vector.broadcast %c32_i32 : i32 to vector<1x128xi32>
    %2 = arith.cmpi slt, %0, %1 : vector<1x128xi32>
    %cst = arith.constant 1.000000e+00 : f32
    %cst_0 = arith.constant 5.000000e-01 : f32
    %3 = vector.broadcast %cst : f32 to vector<1x128xf32>
    %4 = vector.broadcast %cst_0 : f32 to vector<1x128xf32>
    %5 = arith.select %2, %3, %4 : vector<1x128xi1>, vector<1x128xf32>
    %c0 = arith.constant 0 : index
    %c0_1 = arith.constant 0 : index
    %6 = vector.load %arg0[%c0, %c0_1] : memref<64x1xi32, #tpu.memory_space<vmem>>, vector<64x1xi32>
    %7 = tpu.iota {dimensions = array<i32: 1>} : vector<64x64xi32>
    %8 = vector.broadcast %6 : vector<64x1xi32> to vector<64x64xi32>
    %9 = arith.cmpi eq, %7, %8 : vector<64x64xi32>
    %cst_2 = arith.constant 1.000000e+00 : f32
    %cst_3 = arith.constant 0.000000e+00 : f32
    %10 = vector.broadcast %cst_2 : f32 to vector<64x64xf32>
    %11 = vector.broadcast %cst_3 : f32 to vector<64x64xf32>
    %12 = arith.select %9, %10, %11 : vector<64x64xi1>, vector<64x64xf32>
    %13 = arith.truncf %12 : vector<64x64xf32> to vector<64x64xbf16>
    %c0_4 = arith.constant 0 : index
    %c0_5 = arith.constant 0 : index
    %14 = vector.load %arg5[%c0_4, %c0_5] : memref<64x32xf32, #tpu.memory_space<vmem>>, vector<64x32xf32>
    %15 = arith.truncf %14 : vector<64x32xf32> to vector<64x32xbf16>
    %cst_6 = arith.constant dense<0.000000e+00> : vector<64x32xf32>
    %16 = tpu.matmul %13, %15, %cst_6 {dimension_numbers = #tpu.dot_dimension_numbers<[1], [0], [0], [1], [0, 0, 1, 1], [], []>} : vector<64x64xbf16>, vector<64x32xbf16>, vector<64x32xf32> -> vector<64x32xf32>
    %17 = arith.truncf %16 : vector<64x32xf32> to vector<64x32xbf16>
    %c0_7 = arith.constant 0 : index
    %c0_8 = arith.constant 0 : index
    %18 = vector.load %arg6[%c0_7, %c0_8] : memref<32x128xf32, #tpu.memory_space<vmem>>, vector<32x128xf32>
    %19 = arith.truncf %18 : vector<32x128xf32> to vector<32x128xbf16>
    %cst_9 = arith.constant dense<0.000000e+00> : vector<64x128xf32>
    %20 = tpu.matmul %17, %19, %cst_9 {dimension_numbers = #tpu.dot_dimension_numbers<[1], [0], [0], [1], [0, 0, 1, 1], [], []>} : vector<64x32xbf16>, vector<32x128xbf16>, vector<64x128xf32> -> vector<64x128xf32>
    %c0_10 = arith.constant 0 : index
    %c0_11 = arith.constant 0 : index
    %21 = vector.load %arg7[%c0_10, %c0_11] : memref<1x128xf32, #tpu.memory_space<vmem>>, vector<1x128xf32>
    %22 = vector.broadcast %21 : vector<1x128xf32> to vector<64x128xf32>
    %23 = arith.addf %20, %22 : vector<64x128xf32>
    %24 = vector.broadcast %5 : vector<1x128xf32> to vector<64x128xf32>
    %25 = arith.mulf %23, %24 : vector<64x128xf32>
    %c0_12 = arith.constant 0 : index
    %c0_13 = arith.constant 0 : index
    %26 = vector.load %arg8[%c0_12, %c0_13] : memref<32x128xf32, #tpu.memory_space<vmem>>, vector<32x128xf32>
    %27 = vector.broadcast %5 : vector<1x128xf32> to vector<32x128xf32>
    %28 = arith.mulf %26, %27 : vector<32x128xf32>
    %29 = arith.truncf %28 : vector<32x128xf32> to vector<32x128xbf16>
    %c0_14 = arith.constant 0 : index
    %c0_15 = arith.constant 0 : index
    %30 = vector.load %arg1[%c0_14, %c0_15] : memref<64x1xf32, #tpu.memory_space<vmem>>, vector<64x1xf32>
    %31 = vector.shape_cast %30 : vector<64x1xf32> to vector<64x1xf32>
    %32 = vector.broadcast %31 : vector<64x1xf32> to vector<64x32xf32>
    %cst_16 = arith.constant 0.000000e+00 : f32
    %33 = vector.broadcast %cst_16 : f32 to vector<8x32xf32>
    %cst_17 = arith.constant 0.000000e+00 : f32
    %34 = vector.broadcast %cst_17 : f32 to vector<8x32xf32>
    %35 = vector.extract_strided_slice %25 {offsets = [0, 0], sizes = [8, 128], strides = [1, 1]} : vector<64x128xf32> to vector<8x128xf32>
    %36 = vector.extract_strided_slice %32 {offsets = [0, 0], sizes = [8, 32], strides = [1, 1]} : vector<64x32xf32> to vector<8x32xf32>
    %37 = arith.truncf %33 : vector<8x32xf32> to vector<8x32xbf16>
    %cst_18 = arith.constant dense<0.000000e+00> : vector<8x128xf32>
    %38 = tpu.matmul %37, %29, %cst_18 {dimension_numbers = #tpu.dot_dimension_numbers<[1], [0], [0], [1], [0, 0, 1, 1], [], []>} : vector<8x32xbf16>, vector<32x128xbf16>, vector<8x128xf32> -> vector<8x128xf32>
    %39 = arith.addf %35, %38 : vector<8x128xf32>
    %40 = math.tanh %39 : vector<8x128xf32>
    %41 = vector.extract_strided_slice %40 {offsets = [0, 0], sizes = [8, 32], strides = [1, 1]} : vector<8x128xf32> to vector<8x32xf32>
    %42 = vector.extract_strided_slice %40 {offsets = [0, 32], sizes = [8, 96], strides = [1, 1]} : vector<8x128xf32> to vector<8x96xf32>
    %cst_19 = arith.constant 5.000000e-01 : f32
    %43 = vector.broadcast %cst_19 : f32 to vector<8x96xf32>
    %44 = arith.mulf %42, %43 : vector<8x96xf32>
    %cst_20 = arith.constant 5.000000e-01 : f32
    %45 = vector.broadcast %cst_20 : f32 to vector<8x96xf32>
    %46 = arith.addf %44, %45 : vector<8x96xf32>
    %47 = vector.extract_strided_slice %46 {offsets = [0, 0], sizes = [8, 32], strides = [1, 1]} : vector<8x96xf32> to vector<8x32xf32>
    %48 = arith.mulf %47, %41 : vector<8x32xf32>
    %49 = vector.extract_strided_slice %46 {offsets = [0, 32], sizes = [8, 32], strides = [1, 1]} : vector<8x96xf32> to vector<8x32xf32>
    %50 = arith.mulf %49, %34 : vector<8x32xf32>
    %51 = arith.addf %48, %50 : vector<8x32xf32>
    %52 = vector.extract_strided_slice %46 {offsets = [0, 64], sizes = [8, 32], strides = [1, 1]} : vector<8x96xf32> to vector<8x32xf32>
    %53 = math.tanh %51 : vector<8x32xf32>
    %54 = arith.mulf %52, %53 : vector<8x32xf32>
    %55 = arith.subf %54, %33 : vector<8x32xf32>
    %56 = arith.mulf %36, %55 : vector<8x32xf32>
    %57 = arith.addf %33, %56 : vector<8x32xf32>
    %58 = arith.subf %51, %34 : vector<8x32xf32>
    %59 = arith.mulf %36, %58 : vector<8x32xf32>
    %60 = arith.addf %34, %59 : vector<8x32xf32>
    %61 = vector.extract_strided_slice %25 {offsets = [8, 0], sizes = [8, 128], strides = [1, 1]} : vector<64x128xf32> to vector<8x128xf32>
    %62 = vector.extract_strided_slice %32 {offsets = [8, 0], sizes = [8, 32], strides = [1, 1]} : vector<64x32xf32> to vector<8x32xf32>
    %63 = arith.truncf %57 : vector<8x32xf32> to vector<8x32xbf16>
    %cst_21 = arith.constant dense<0.000000e+00> : vector<8x128xf32>
    %64 = tpu.matmul %63, %29, %cst_21 {dimension_numbers = #tpu.dot_dimension_numbers<[1], [0], [0], [1], [0, 0, 1, 1], [], []>} : vector<8x32xbf16>, vector<32x128xbf16>, vector<8x128xf32> -> vector<8x128xf32>
    %65 = arith.addf %61, %64 : vector<8x128xf32>
    %66 = math.tanh %65 : vector<8x128xf32>
    %67 = vector.extract_strided_slice %66 {offsets = [0, 0], sizes = [8, 32], strides = [1, 1]} : vector<8x128xf32> to vector<8x32xf32>
    %68 = vector.extract_strided_slice %66 {offsets = [0, 32], sizes = [8, 96], strides = [1, 1]} : vector<8x128xf32> to vector<8x96xf32>
    %cst_22 = arith.constant 5.000000e-01 : f32
    %69 = vector.broadcast %cst_22 : f32 to vector<8x96xf32>
    %70 = arith.mulf %68, %69 : vector<8x96xf32>
    %cst_23 = arith.constant 5.000000e-01 : f32
    %71 = vector.broadcast %cst_23 : f32 to vector<8x96xf32>
    %72 = arith.addf %70, %71 : vector<8x96xf32>
    %73 = vector.extract_strided_slice %72 {offsets = [0, 0], sizes = [8, 32], strides = [1, 1]} : vector<8x96xf32> to vector<8x32xf32>
    %74 = arith.mulf %73, %67 : vector<8x32xf32>
    %75 = vector.extract_strided_slice %72 {offsets = [0, 32], sizes = [8, 32], strides = [1, 1]} : vector<8x96xf32> to vector<8x32xf32>
    %76 = arith.mulf %75, %60 : vector<8x32xf32>
    %77 = arith.addf %74, %76 : vector<8x32xf32>
    %78 = vector.extract_strided_slice %72 {offsets = [0, 64], sizes = [8, 32], strides = [1, 1]} : vector<8x96xf32> to vector<8x32xf32>
    %79 = math.tanh %77 : vector<8x32xf32>
    %80 = arith.mulf %78, %79 : vector<8x32xf32>
    %81 = arith.subf %80, %57 : vector<8x32xf32>
    %82 = arith.mulf %62, %81 : vector<8x32xf32>
    %83 = arith.addf %57, %82 : vector<8x32xf32>
    %84 = arith.subf %77, %60 : vector<8x32xf32>
    %85 = arith.mulf %62, %84 : vector<8x32xf32>
    %86 = arith.addf %60, %85 : vector<8x32xf32>
    %87 = vector.extract_strided_slice %25 {offsets = [16, 0], sizes = [8, 128], strides = [1, 1]} : vector<64x128xf32> to vector<8x128xf32>
    %88 = vector.extract_strided_slice %32 {offsets = [16, 0], sizes = [8, 32], strides = [1, 1]} : vector<64x32xf32> to vector<8x32xf32>
    %89 = arith.truncf %83 : vector<8x32xf32> to vector<8x32xbf16>
    %cst_24 = arith.constant dense<0.000000e+00> : vector<8x128xf32>
    %90 = tpu.matmul %89, %29, %cst_24 {dimension_numbers = #tpu.dot_dimension_numbers<[1], [0], [0], [1], [0, 0, 1, 1], [], []>} : vector<8x32xbf16>, vector<32x128xbf16>, vector<8x128xf32> -> vector<8x128xf32>
    %91 = arith.addf %87, %90 : vector<8x128xf32>
    %92 = math.tanh %91 : vector<8x128xf32>
    %93 = vector.extract_strided_slice %92 {offsets = [0, 0], sizes = [8, 32], strides = [1, 1]} : vector<8x128xf32> to vector<8x32xf32>
    %94 = vector.extract_strided_slice %92 {offsets = [0, 32], sizes = [8, 96], strides = [1, 1]} : vector<8x128xf32> to vector<8x96xf32>
    %cst_25 = arith.constant 5.000000e-01 : f32
    %95 = vector.broadcast %cst_25 : f32 to vector<8x96xf32>
    %96 = arith.mulf %94, %95 : vector<8x96xf32>
    %cst_26 = arith.constant 5.000000e-01 : f32
    %97 = vector.broadcast %cst_26 : f32 to vector<8x96xf32>
    %98 = arith.addf %96, %97 : vector<8x96xf32>
    %99 = vector.extract_strided_slice %98 {offsets = [0, 0], sizes = [8, 32], strides = [1, 1]} : vector<8x96xf32> to vector<8x32xf32>
    %100 = arith.mulf %99, %93 : vector<8x32xf32>
    %101 = vector.extract_strided_slice %98 {offsets = [0, 32], sizes = [8, 32], strides = [1, 1]} : vector<8x96xf32> to vector<8x32xf32>
    %102 = arith.mulf %101, %86 : vector<8x32xf32>
    %103 = arith.addf %100, %102 : vector<8x32xf32>
    %104 = vector.extract_strided_slice %98 {offsets = [0, 64], sizes = [8, 32], strides = [1, 1]} : vector<8x96xf32> to vector<8x32xf32>
    %105 = math.tanh %103 : vector<8x32xf32>
    %106 = arith.mulf %104, %105 : vector<8x32xf32>
    %107 = arith.subf %106, %83 : vector<8x32xf32>
    %108 = arith.mulf %88, %107 : vector<8x32xf32>
    %109 = arith.addf %83, %108 : vector<8x32xf32>
    %110 = arith.subf %103, %86 : vector<8x32xf32>
    %111 = arith.mulf %88, %110 : vector<8x32xf32>
    %112 = arith.addf %86, %111 : vector<8x32xf32>
    %113 = vector.extract_strided_slice %25 {offsets = [24, 0], sizes = [8, 128], strides = [1, 1]} : vector<64x128xf32> to vector<8x128xf32>
    %114 = vector.extract_strided_slice %32 {offsets = [24, 0], sizes = [8, 32], strides = [1, 1]} : vector<64x32xf32> to vector<8x32xf32>
    %115 = arith.truncf %109 : vector<8x32xf32> to vector<8x32xbf16>
    %cst_27 = arith.constant dense<0.000000e+00> : vector<8x128xf32>
    %116 = tpu.matmul %115, %29, %cst_27 {dimension_numbers = #tpu.dot_dimension_numbers<[1], [0], [0], [1], [0, 0, 1, 1], [], []>} : vector<8x32xbf16>, vector<32x128xbf16>, vector<8x128xf32> -> vector<8x128xf32>
    %117 = arith.addf %113, %116 : vector<8x128xf32>
    %118 = math.tanh %117 : vector<8x128xf32>
    %119 = vector.extract_strided_slice %118 {offsets = [0, 0], sizes = [8, 32], strides = [1, 1]} : vector<8x128xf32> to vector<8x32xf32>
    %120 = vector.extract_strided_slice %118 {offsets = [0, 32], sizes = [8, 96], strides = [1, 1]} : vector<8x128xf32> to vector<8x96xf32>
    %cst_28 = arith.constant 5.000000e-01 : f32
    %121 = vector.broadcast %cst_28 : f32 to vector<8x96xf32>
    %122 = arith.mulf %120, %121 : vector<8x96xf32>
    %cst_29 = arith.constant 5.000000e-01 : f32
    %123 = vector.broadcast %cst_29 : f32 to vector<8x96xf32>
    %124 = arith.addf %122, %123 : vector<8x96xf32>
    %125 = vector.extract_strided_slice %124 {offsets = [0, 0], sizes = [8, 32], strides = [1, 1]} : vector<8x96xf32> to vector<8x32xf32>
    %126 = arith.mulf %125, %119 : vector<8x32xf32>
    %127 = vector.extract_strided_slice %124 {offsets = [0, 32], sizes = [8, 32], strides = [1, 1]} : vector<8x96xf32> to vector<8x32xf32>
    %128 = arith.mulf %127, %112 : vector<8x32xf32>
    %129 = arith.addf %126, %128 : vector<8x32xf32>
    %130 = vector.extract_strided_slice %124 {offsets = [0, 64], sizes = [8, 32], strides = [1, 1]} : vector<8x96xf32> to vector<8x32xf32>
    %131 = math.tanh %129 : vector<8x32xf32>
    %132 = arith.mulf %130, %131 : vector<8x32xf32>
    %133 = arith.subf %132, %109 : vector<8x32xf32>
    %134 = arith.mulf %114, %133 : vector<8x32xf32>
    %135 = arith.addf %109, %134 : vector<8x32xf32>
    %136 = arith.subf %129, %112 : vector<8x32xf32>
    %137 = arith.mulf %114, %136 : vector<8x32xf32>
    %138 = arith.addf %112, %137 : vector<8x32xf32>
    %139 = vector.extract_strided_slice %25 {offsets = [32, 0], sizes = [8, 128], strides = [1, 1]} : vector<64x128xf32> to vector<8x128xf32>
    %140 = vector.extract_strided_slice %32 {offsets = [32, 0], sizes = [8, 32], strides = [1, 1]} : vector<64x32xf32> to vector<8x32xf32>
    %141 = arith.truncf %135 : vector<8x32xf32> to vector<8x32xbf16>
    %cst_30 = arith.constant dense<0.000000e+00> : vector<8x128xf32>
    %142 = tpu.matmul %141, %29, %cst_30 {dimension_numbers = #tpu.dot_dimension_numbers<[1], [0], [0], [1], [0, 0, 1, 1], [], []>} : vector<8x32xbf16>, vector<32x128xbf16>, vector<8x128xf32> -> vector<8x128xf32>
    %143 = arith.addf %139, %142 : vector<8x128xf32>
    %144 = math.tanh %143 : vector<8x128xf32>
    %145 = vector.extract_strided_slice %144 {offsets = [0, 0], sizes = [8, 32], strides = [1, 1]} : vector<8x128xf32> to vector<8x32xf32>
    %146 = vector.extract_strided_slice %144 {offsets = [0, 32], sizes = [8, 96], strides = [1, 1]} : vector<8x128xf32> to vector<8x96xf32>
    %cst_31 = arith.constant 5.000000e-01 : f32
    %147 = vector.broadcast %cst_31 : f32 to vector<8x96xf32>
    %148 = arith.mulf %146, %147 : vector<8x96xf32>
    %cst_32 = arith.constant 5.000000e-01 : f32
    %149 = vector.broadcast %cst_32 : f32 to vector<8x96xf32>
    %150 = arith.addf %148, %149 : vector<8x96xf32>
    %151 = vector.extract_strided_slice %150 {offsets = [0, 0], sizes = [8, 32], strides = [1, 1]} : vector<8x96xf32> to vector<8x32xf32>
    %152 = arith.mulf %151, %145 : vector<8x32xf32>
    %153 = vector.extract_strided_slice %150 {offsets = [0, 32], sizes = [8, 32], strides = [1, 1]} : vector<8x96xf32> to vector<8x32xf32>
    %154 = arith.mulf %153, %138 : vector<8x32xf32>
    %155 = arith.addf %152, %154 : vector<8x32xf32>
    %156 = vector.extract_strided_slice %150 {offsets = [0, 64], sizes = [8, 32], strides = [1, 1]} : vector<8x96xf32> to vector<8x32xf32>
    %157 = math.tanh %155 : vector<8x32xf32>
    %158 = arith.mulf %156, %157 : vector<8x32xf32>
    %159 = arith.subf %158, %135 : vector<8x32xf32>
    %160 = arith.mulf %140, %159 : vector<8x32xf32>
    %161 = arith.addf %135, %160 : vector<8x32xf32>
    %162 = arith.subf %155, %138 : vector<8x32xf32>
    %163 = arith.mulf %140, %162 : vector<8x32xf32>
    %164 = arith.addf %138, %163 : vector<8x32xf32>
    %165 = vector.extract_strided_slice %25 {offsets = [40, 0], sizes = [8, 128], strides = [1, 1]} : vector<64x128xf32> to vector<8x128xf32>
    %166 = vector.extract_strided_slice %32 {offsets = [40, 0], sizes = [8, 32], strides = [1, 1]} : vector<64x32xf32> to vector<8x32xf32>
    %167 = arith.truncf %161 : vector<8x32xf32> to vector<8x32xbf16>
    %cst_33 = arith.constant dense<0.000000e+00> : vector<8x128xf32>
    %168 = tpu.matmul %167, %29, %cst_33 {dimension_numbers = #tpu.dot_dimension_numbers<[1], [0], [0], [1], [0, 0, 1, 1], [], []>} : vector<8x32xbf16>, vector<32x128xbf16>, vector<8x128xf32> -> vector<8x128xf32>
    %169 = arith.addf %165, %168 : vector<8x128xf32>
    %170 = math.tanh %169 : vector<8x128xf32>
    %171 = vector.extract_strided_slice %170 {offsets = [0, 0], sizes = [8, 32], strides = [1, 1]} : vector<8x128xf32> to vector<8x32xf32>
    %172 = vector.extract_strided_slice %170 {offsets = [0, 32], sizes = [8, 96], strides = [1, 1]} : vector<8x128xf32> to vector<8x96xf32>
    %cst_34 = arith.constant 5.000000e-01 : f32
    %173 = vector.broadcast %cst_34 : f32 to vector<8x96xf32>
    %174 = arith.mulf %172, %173 : vector<8x96xf32>
    %cst_35 = arith.constant 5.000000e-01 : f32
    %175 = vector.broadcast %cst_35 : f32 to vector<8x96xf32>
    %176 = arith.addf %174, %175 : vector<8x96xf32>
    %177 = vector.extract_strided_slice %176 {offsets = [0, 0], sizes = [8, 32], strides = [1, 1]} : vector<8x96xf32> to vector<8x32xf32>
    %178 = arith.mulf %177, %171 : vector<8x32xf32>
    %179 = vector.extract_strided_slice %176 {offsets = [0, 32], sizes = [8, 32], strides = [1, 1]} : vector<8x96xf32> to vector<8x32xf32>
    %180 = arith.mulf %179, %164 : vector<8x32xf32>
    %181 = arith.addf %178, %180 : vector<8x32xf32>
    %182 = vector.extract_strided_slice %176 {offsets = [0, 64], sizes = [8, 32], strides = [1, 1]} : vector<8x96xf32> to vector<8x32xf32>
    %183 = math.tanh %181 : vector<8x32xf32>
    %184 = arith.mulf %182, %183 : vector<8x32xf32>
    %185 = arith.subf %184, %161 : vector<8x32xf32>
    %186 = arith.mulf %166, %185 : vector<8x32xf32>
    %187 = arith.addf %161, %186 : vector<8x32xf32>
    %188 = arith.subf %181, %164 : vector<8x32xf32>
    %189 = arith.mulf %166, %188 : vector<8x32xf32>
    %190 = arith.addf %164, %189 : vector<8x32xf32>
    %191 = vector.extract_strided_slice %25 {offsets = [48, 0], sizes = [8, 128], strides = [1, 1]} : vector<64x128xf32> to vector<8x128xf32>
    %192 = vector.extract_strided_slice %32 {offsets = [48, 0], sizes = [8, 32], strides = [1, 1]} : vector<64x32xf32> to vector<8x32xf32>
    %193 = arith.truncf %187 : vector<8x32xf32> to vector<8x32xbf16>
    %cst_36 = arith.constant dense<0.000000e+00> : vector<8x128xf32>
    %194 = tpu.matmul %193, %29, %cst_36 {dimension_numbers = #tpu.dot_dimension_numbers<[1], [0], [0], [1], [0, 0, 1, 1], [], []>} : vector<8x32xbf16>, vector<32x128xbf16>, vector<8x128xf32> -> vector<8x128xf32>
    %195 = arith.addf %191, %194 : vector<8x128xf32>
    %196 = math.tanh %195 : vector<8x128xf32>
    %197 = vector.extract_strided_slice %196 {offsets = [0, 0], sizes = [8, 32], strides = [1, 1]} : vector<8x128xf32> to vector<8x32xf32>
    %198 = vector.extract_strided_slice %196 {offsets = [0, 32], sizes = [8, 96], strides = [1, 1]} : vector<8x128xf32> to vector<8x96xf32>
    %cst_37 = arith.constant 5.000000e-01 : f32
    %199 = vector.broadcast %cst_37 : f32 to vector<8x96xf32>
    %200 = arith.mulf %198, %199 : vector<8x96xf32>
    %cst_38 = arith.constant 5.000000e-01 : f32
    %201 = vector.broadcast %cst_38 : f32 to vector<8x96xf32>
    %202 = arith.addf %200, %201 : vector<8x96xf32>
    %203 = vector.extract_strided_slice %202 {offsets = [0, 0], sizes = [8, 32], strides = [1, 1]} : vector<8x96xf32> to vector<8x32xf32>
    %204 = arith.mulf %203, %197 : vector<8x32xf32>
    %205 = vector.extract_strided_slice %202 {offsets = [0, 32], sizes = [8, 32], strides = [1, 1]} : vector<8x96xf32> to vector<8x32xf32>
    %206 = arith.mulf %205, %190 : vector<8x32xf32>
    %207 = arith.addf %204, %206 : vector<8x32xf32>
    %208 = vector.extract_strided_slice %202 {offsets = [0, 64], sizes = [8, 32], strides = [1, 1]} : vector<8x96xf32> to vector<8x32xf32>
    %209 = math.tanh %207 : vector<8x32xf32>
    %210 = arith.mulf %208, %209 : vector<8x32xf32>
    %211 = arith.subf %210, %187 : vector<8x32xf32>
    %212 = arith.mulf %192, %211 : vector<8x32xf32>
    %213 = arith.addf %187, %212 : vector<8x32xf32>
    %214 = arith.subf %207, %190 : vector<8x32xf32>
    %215 = arith.mulf %192, %214 : vector<8x32xf32>
    %216 = arith.addf %190, %215 : vector<8x32xf32>
    %217 = vector.extract_strided_slice %25 {offsets = [56, 0], sizes = [8, 128], strides = [1, 1]} : vector<64x128xf32> to vector<8x128xf32>
    %218 = vector.extract_strided_slice %32 {offsets = [56, 0], sizes = [8, 32], strides = [1, 1]} : vector<64x32xf32> to vector<8x32xf32>
    %219 = arith.truncf %213 : vector<8x32xf32> to vector<8x32xbf16>
    %cst_39 = arith.constant dense<0.000000e+00> : vector<8x128xf32>
    %220 = tpu.matmul %219, %29, %cst_39 {dimension_numbers = #tpu.dot_dimension_numbers<[1], [0], [0], [1], [0, 0, 1, 1], [], []>} : vector<8x32xbf16>, vector<32x128xbf16>, vector<8x128xf32> -> vector<8x128xf32>
    %221 = arith.addf %217, %220 : vector<8x128xf32>
    %222 = math.tanh %221 : vector<8x128xf32>
    %223 = vector.extract_strided_slice %222 {offsets = [0, 0], sizes = [8, 32], strides = [1, 1]} : vector<8x128xf32> to vector<8x32xf32>
    %224 = vector.extract_strided_slice %222 {offsets = [0, 32], sizes = [8, 96], strides = [1, 1]} : vector<8x128xf32> to vector<8x96xf32>
    %cst_40 = arith.constant 5.000000e-01 : f32
    %225 = vector.broadcast %cst_40 : f32 to vector<8x96xf32>
    %226 = arith.mulf %224, %225 : vector<8x96xf32>
    %cst_41 = arith.constant 5.000000e-01 : f32
    %227 = vector.broadcast %cst_41 : f32 to vector<8x96xf32>
    %228 = arith.addf %226, %227 : vector<8x96xf32>
    %229 = vector.extract_strided_slice %228 {offsets = [0, 0], sizes = [8, 32], strides = [1, 1]} : vector<8x96xf32> to vector<8x32xf32>
    %230 = arith.mulf %229, %223 : vector<8x32xf32>
    %231 = vector.extract_strided_slice %228 {offsets = [0, 32], sizes = [8, 32], strides = [1, 1]} : vector<8x96xf32> to vector<8x32xf32>
    %232 = arith.mulf %231, %216 : vector<8x32xf32>
    %233 = arith.addf %230, %232 : vector<8x32xf32>
    %234 = vector.extract_strided_slice %228 {offsets = [0, 64], sizes = [8, 32], strides = [1, 1]} : vector<8x96xf32> to vector<8x32xf32>
    %235 = math.tanh %233 : vector<8x32xf32>
    %236 = arith.mulf %234, %235 : vector<8x32xf32>
    %237 = arith.subf %236, %213 : vector<8x32xf32>
    %238 = arith.mulf %218, %237 : vector<8x32xf32>
    %239 = arith.addf %213, %238 : vector<8x32xf32>
    %240 = vector.extract_strided_slice %57 {offsets = [0, 0], sizes = [4, 32], strides = [1, 1]} : vector<8x32xf32> to vector<4x32xf32>
    %241 = vector.extract_strided_slice %83 {offsets = [0, 0], sizes = [4, 32], strides = [1, 1]} : vector<8x32xf32> to vector<4x32xf32>
    %242 = vector.extract_strided_slice %109 {offsets = [0, 0], sizes = [4, 32], strides = [1, 1]} : vector<8x32xf32> to vector<4x32xf32>
    %243 = vector.extract_strided_slice %135 {offsets = [0, 0], sizes = [4, 32], strides = [1, 1]} : vector<8x32xf32> to vector<4x32xf32>
    %244 = vector.extract_strided_slice %161 {offsets = [0, 0], sizes = [4, 32], strides = [1, 1]} : vector<8x32xf32> to vector<4x32xf32>
    %245 = vector.extract_strided_slice %187 {offsets = [0, 0], sizes = [4, 32], strides = [1, 1]} : vector<8x32xf32> to vector<4x32xf32>
    %246 = vector.extract_strided_slice %213 {offsets = [0, 0], sizes = [4, 32], strides = [1, 1]} : vector<8x32xf32> to vector<4x32xf32>
    %247 = vector.extract_strided_slice %239 {offsets = [0, 0], sizes = [4, 32], strides = [1, 1]} : vector<8x32xf32> to vector<4x32xf32>
    %248 = tpu.concatenate %240, %241, %242, %243, %244, %245, %246, %247 in 0 : vector<4x32xf32>, vector<4x32xf32>, vector<4x32xf32>, vector<4x32xf32>, vector<4x32xf32>, vector<4x32xf32>, vector<4x32xf32>, vector<4x32xf32> -> vector<32x32xf32>
    %249 = vector.extract_strided_slice %239 {offsets = [4, 0], sizes = [4, 32], strides = [1, 1]} : vector<8x32xf32> to vector<4x32xf32>
    %250 = vector.extract_strided_slice %213 {offsets = [4, 0], sizes = [4, 32], strides = [1, 1]} : vector<8x32xf32> to vector<4x32xf32>
    %251 = vector.extract_strided_slice %187 {offsets = [4, 0], sizes = [4, 32], strides = [1, 1]} : vector<8x32xf32> to vector<4x32xf32>
    %252 = vector.extract_strided_slice %161 {offsets = [4, 0], sizes = [4, 32], strides = [1, 1]} : vector<8x32xf32> to vector<4x32xf32>
    %253 = vector.extract_strided_slice %135 {offsets = [4, 0], sizes = [4, 32], strides = [1, 1]} : vector<8x32xf32> to vector<4x32xf32>
    %254 = vector.extract_strided_slice %109 {offsets = [4, 0], sizes = [4, 32], strides = [1, 1]} : vector<8x32xf32> to vector<4x32xf32>
    %255 = vector.extract_strided_slice %83 {offsets = [4, 0], sizes = [4, 32], strides = [1, 1]} : vector<8x32xf32> to vector<4x32xf32>
    %256 = vector.extract_strided_slice %57 {offsets = [4, 0], sizes = [4, 32], strides = [1, 1]} : vector<8x32xf32> to vector<4x32xf32>
    %257 = tpu.concatenate %249, %250, %251, %252, %253, %254, %255, %256 in 0 : vector<4x32xf32>, vector<4x32xf32>, vector<4x32xf32>, vector<4x32xf32>, vector<4x32xf32>, vector<4x32xf32>, vector<4x32xf32>, vector<4x32xf32> -> vector<32x32xf32>
    %c0_42 = arith.constant 0 : index
    %c0_43 = arith.constant 0 : index
    %258 = vector.load %arg3[%c0_42, %c0_43] : memref<32x1xf32, #tpu.memory_space<vmem>>, vector<32x1xf32>
    %259 = vector.broadcast %258 : vector<32x1xf32> to vector<32x32xf32>
    %260 = arith.mulf %248, %259 : vector<32x32xf32>
    %261 = vector.broadcast %258 : vector<32x1xf32> to vector<32x32xf32>
    %262 = arith.mulf %257, %261 : vector<32x32xf32>
    %263 = arith.truncf %260 : vector<32x32xf32> to vector<32x32xbf16>
    %264 = arith.truncf %262 : vector<32x32xf32> to vector<32x32xbf16>
    %cst_44 = arith.constant dense<0.000000e+00> : vector<32x32xf32>
    %265 = tpu.matmul %263, %263, %cst_44 {dimension_numbers = #tpu.dot_dimension_numbers<[1], [1], [0], [0], [0, 0, 1, 0], [], []>} : vector<32x32xbf16>, vector<32x32xbf16>, vector<32x32xf32> -> vector<32x32xf32>
    %cst_45 = arith.constant dense<0.000000e+00> : vector<32x32xf32>
    %266 = tpu.matmul %264, %264, %cst_45 {dimension_numbers = #tpu.dot_dimension_numbers<[1], [1], [0], [0], [0, 0, 1, 0], [], []>} : vector<32x32xbf16>, vector<32x32xbf16>, vector<32x32xf32> -> vector<32x32xf32>
    %267 = arith.addf %265, %266 : vector<32x32xf32>
    %268 = tpu.iota {dimensions = array<i32: 0>} : vector<32x32xi32>
    %269 = tpu.iota {dimensions = array<i32: 1>} : vector<32x32xi32>
    %c1_i32 = arith.constant 1 : i32
    %270 = vector.broadcast %c1_i32 : i32 to vector<32x32xi32>
    %271 = arith.andi %268, %270 : vector<32x32xi32>
    %c1_i32_46 = arith.constant 1 : i32
    %272 = vector.broadcast %c1_i32_46 : i32 to vector<32x32xi32>
    %273 = arith.andi %269, %272 : vector<32x32xi32>
    %274 = arith.cmpi eq, %271, %273 : vector<32x32xi32>
    %c2_i32 = arith.constant 2 : i32
    %275 = vector.broadcast %c2_i32 : i32 to vector<32x32xi32>
    %276 = arith.andi %268, %275 : vector<32x32xi32>
    %c2_i32_47 = arith.constant 2 : i32
    %277 = vector.broadcast %c2_i32_47 : i32 to vector<32x32xi32>
    %278 = arith.andi %269, %277 : vector<32x32xi32>
    %279 = arith.cmpi ne, %276, %278 : vector<32x32xi32>
    %280 = arith.andi %274, %279 : vector<32x32xi1>
    %cst_48 = arith.constant 1.000000e+00 : f32
    %cst_49 = arith.constant 0.000000e+00 : f32
    %281 = vector.broadcast %cst_48 : f32 to vector<32x32xf32>
    %282 = vector.broadcast %cst_49 : f32 to vector<32x32xf32>
    %283 = arith.select %280, %281, %282 : vector<32x32xi1>, vector<32x32xf32>
    %c0_50 = arith.constant 0 : index
    %c0_51 = arith.constant 0 : index
    %284 = vector.load %arg4[%c0_50, %c0_51] : memref<1x32xf32, #tpu.memory_space<vmem>>, vector<1x32xf32>
    %285 = vector.broadcast %284 : vector<1x32xf32> to vector<32x32xf32>
    %286 = arith.mulf %283, %285 : vector<32x32xf32>
    %cst_52 = arith.constant 0.000000e+00 : f32
    %287 = vector.broadcast %cst_52 : f32 to vector<32x32xf32>
    %288 = arith.cmpf ogt, %286, %287 : vector<32x32xf32>
    %cst_53 = arith.constant -1.000000e+30 : f32
    %289 = vector.broadcast %cst_53 : f32 to vector<32x32xf32>
    %290 = arith.select %288, %267, %289 : vector<32x32xi1>, vector<32x32xf32>
    %cst_54 = arith.constant dense<0xFF800000> : vector<32xf32>
    %291 = vector.multi_reduction <maximumf>, %290, %cst_54 [1] : vector<32x32xf32> to vector<32xf32>
    %292 = vector.shape_cast %291 : vector<32xf32> to vector<32x1xf32>
    %293 = vector.broadcast %292 : vector<32x1xf32> to vector<32x32xf32>
    %294 = arith.subf %290, %293 : vector<32x32xf32>
    %295 = math.exp %294 : vector<32x32xf32>
    %296 = arith.mulf %295, %286 : vector<32x32xf32>
    %cst_55 = arith.constant dense<0.000000e+00> : vector<32xf32>
    %297 = vector.multi_reduction <add>, %296, %cst_55 [1] : vector<32x32xf32> to vector<32xf32>
    %298 = vector.shape_cast %297 : vector<32xf32> to vector<32x1xf32>
    %299 = vector.broadcast %298 : vector<32x1xf32> to vector<32x32xf32>
    %300 = arith.divf %296, %299 : vector<32x32xf32>
    %301 = arith.truncf %300 : vector<32x32xf32> to vector<32x32xbf16>
    %cst_56 = arith.constant dense<0.000000e+00> : vector<32x32xf32>
    %302 = tpu.matmul %301, %263, %cst_56 {dimension_numbers = #tpu.dot_dimension_numbers<[1], [0], [0], [1], [0, 0, 1, 1], [], []>} : vector<32x32xbf16>, vector<32x32xbf16>, vector<32x32xf32> -> vector<32x32xf32>
    %cst_57 = arith.constant dense<0.000000e+00> : vector<32x32xf32>
    %303 = tpu.matmul %301, %264, %cst_57 {dimension_numbers = #tpu.dot_dimension_numbers<[1], [0], [0], [1], [0, 0, 1, 1], [], []>} : vector<32x32xbf16>, vector<32x32xbf16>, vector<32x32xf32> -> vector<32x32xf32>
    %c0_58 = arith.constant 0 : index
    %c0_59 = arith.constant 0 : index
    %304 = vector.load %arg12[%c0_58, %c0_59] : memref<256x32xf32, #tpu.memory_space<vmem>>, vector<256x32xf32>
    %305 = vector.extract_strided_slice %304 {offsets = [0, 0], sizes = [32, 32], strides = [1, 1]} : vector<256x32xf32> to vector<32x32xf32>
    %306 = vector.extract_strided_slice %304 {offsets = [192, 0], sizes = [32, 32], strides = [1, 1]} : vector<256x32xf32> to vector<32x32xf32>
    %307 = arith.addf %305, %306 : vector<32x32xf32>
    %308 = arith.truncf %307 : vector<32x32xf32> to vector<32x32xbf16>
    %309 = vector.extract_strided_slice %304 {offsets = [32, 0], sizes = [32, 32], strides = [1, 1]} : vector<256x32xf32> to vector<32x32xf32>
    %310 = vector.extract_strided_slice %304 {offsets = [224, 0], sizes = [32, 32], strides = [1, 1]} : vector<256x32xf32> to vector<32x32xf32>
    %311 = arith.addf %309, %310 : vector<32x32xf32>
    %312 = arith.truncf %311 : vector<32x32xf32> to vector<32x32xbf16>
    %313 = vector.extract_strided_slice %304 {offsets = [64, 0], sizes = [32, 32], strides = [1, 1]} : vector<256x32xf32> to vector<32x32xf32>
    %314 = vector.extract_strided_slice %304 {offsets = [192, 0], sizes = [32, 32], strides = [1, 1]} : vector<256x32xf32> to vector<32x32xf32>
    %315 = arith.subf %313, %314 : vector<32x32xf32>
    %316 = arith.truncf %315 : vector<32x32xf32> to vector<32x32xbf16>
    %317 = vector.extract_strided_slice %304 {offsets = [96, 0], sizes = [32, 32], strides = [1, 1]} : vector<256x32xf32> to vector<32x32xf32>
    %318 = vector.extract_strided_slice %304 {offsets = [224, 0], sizes = [32, 32], strides = [1, 1]} : vector<256x32xf32> to vector<32x32xf32>
    %319 = arith.subf %317, %318 : vector<32x32xf32>
    %320 = arith.truncf %319 : vector<32x32xf32> to vector<32x32xbf16>
    %321 = vector.extract_strided_slice %304 {offsets = [128, 0], sizes = [32, 32], strides = [1, 1]} : vector<256x32xf32> to vector<32x32xf32>
    %322 = arith.truncf %321 : vector<32x32xf32> to vector<32x32xbf16>
    %323 = vector.extract_strided_slice %304 {offsets = [160, 0], sizes = [32, 32], strides = [1, 1]} : vector<256x32xf32> to vector<32x32xf32>
    %324 = arith.truncf %323 : vector<32x32xf32> to vector<32x32xbf16>
    %cst_60 = arith.constant dense<0.000000e+00> : vector<32x32xf32>
    %325 = tpu.matmul %263, %308, %cst_60 {dimension_numbers = #tpu.dot_dimension_numbers<[1], [0], [0], [1], [0, 0, 1, 1], [], []>} : vector<32x32xbf16>, vector<32x32xbf16>, vector<32x32xf32> -> vector<32x32xf32>
    %cst_61 = arith.constant dense<0.000000e+00> : vector<32x32xf32>
    %326 = tpu.matmul %264, %312, %cst_61 {dimension_numbers = #tpu.dot_dimension_numbers<[1], [0], [0], [1], [0, 0, 1, 1], [], []>} : vector<32x32xbf16>, vector<32x32xbf16>, vector<32x32xf32> -> vector<32x32xf32>
    %327 = arith.addf %325, %326 : vector<32x32xf32>
    %328 = arith.truncf %302 : vector<32x32xf32> to vector<32x32xbf16>
    %cst_62 = arith.constant dense<0.000000e+00> : vector<32x32xf32>
    %329 = tpu.matmul %328, %316, %cst_62 {dimension_numbers = #tpu.dot_dimension_numbers<[1], [0], [0], [1], [0, 0, 1, 1], [], []>} : vector<32x32xbf16>, vector<32x32xbf16>, vector<32x32xf32> -> vector<32x32xf32>
    %330 = arith.addf %327, %329 : vector<32x32xf32>
    %331 = arith.truncf %303 : vector<32x32xf32> to vector<32x32xbf16>
    %cst_63 = arith.constant dense<0.000000e+00> : vector<32x32xf32>
    %332 = tpu.matmul %331, %320, %cst_63 {dimension_numbers = #tpu.dot_dimension_numbers<[1], [0], [0], [1], [0, 0, 1, 1], [], []>} : vector<32x32xbf16>, vector<32x32xbf16>, vector<32x32xf32> -> vector<32x32xf32>
    %333 = arith.addf %330, %332 : vector<32x32xf32>
    %334 = arith.mulf %260, %302 : vector<32x32xf32>
    %335 = arith.truncf %334 : vector<32x32xf32> to vector<32x32xbf16>
    %cst_64 = arith.constant dense<0.000000e+00> : vector<32x32xf32>
    %336 = tpu.matmul %335, %322, %cst_64 {dimension_numbers = #tpu.dot_dimension_numbers<[1], [0], [0], [1], [0, 0, 1, 1], [], []>} : vector<32x32xbf16>, vector<32x32xbf16>, vector<32x32xf32> -> vector<32x32xf32>
    %337 = arith.addf %333, %336 : vector<32x32xf32>
    %338 = arith.mulf %262, %303 : vector<32x32xf32>
    %339 = arith.truncf %338 : vector<32x32xf32> to vector<32x32xbf16>
    %cst_65 = arith.constant dense<0.000000e+00> : vector<32x32xf32>
    %340 = tpu.matmul %339, %324, %cst_65 {dimension_numbers = #tpu.dot_dimension_numbers<[1], [0], [0], [1], [0, 0, 1, 1], [], []>} : vector<32x32xbf16>, vector<32x32xbf16>, vector<32x32xf32> -> vector<32x32xf32>
    %341 = arith.addf %337, %340 : vector<32x32xf32>
    %c0_66 = arith.constant 0 : index
    %c0_67 = arith.constant 0 : index
    %342 = vector.load %arg13[%c0_66, %c0_67] : memref<1x32xf32, #tpu.memory_space<vmem>>, vector<1x32xf32>
    %343 = vector.broadcast %342 : vector<1x32xf32> to vector<32x32xf32>
    %344 = arith.addf %341, %343 : vector<32x32xf32>
    %cst_68 = arith.constant 0.000000e+00 : f32
    %345 = vector.broadcast %cst_68 : f32 to vector<32x32xf32>
    %346 = arith.maximumf %344, %345 : vector<32x32xf32>
    %347 = arith.truncf %346 : vector<32x32xf32> to vector<32x32xbf16>
    %c0_69 = arith.constant 0 : index
    %c0_70 = arith.constant 0 : index
    %348 = vector.load %arg9[%c0_69, %c0_70] : memref<32x128xf32, #tpu.memory_space<vmem>>, vector<32x128xf32>
    %349 = arith.truncf %348 : vector<32x128xf32> to vector<32x128xbf16>
    %cst_71 = arith.constant dense<0.000000e+00> : vector<32x128xf32>
    %350 = tpu.matmul %347, %349, %cst_71 {dimension_numbers = #tpu.dot_dimension_numbers<[1], [0], [0], [1], [0, 0, 1, 1], [], []>} : vector<32x32xbf16>, vector<32x128xbf16>, vector<32x128xf32> -> vector<32x128xf32>
    %c0_72 = arith.constant 0 : index
    %c0_73 = arith.constant 0 : index
    %351 = vector.load %arg10[%c0_72, %c0_73] : memref<1x128xf32, #tpu.memory_space<vmem>>, vector<1x128xf32>
    %352 = vector.broadcast %351 : vector<1x128xf32> to vector<32x128xf32>
    %353 = arith.addf %350, %352 : vector<32x128xf32>
    %354 = vector.broadcast %5 : vector<1x128xf32> to vector<32x128xf32>
    %355 = arith.mulf %353, %354 : vector<32x128xf32>
    %c0_74 = arith.constant 0 : index
    %c0_75 = arith.constant 0 : index
    %356 = vector.load %arg11[%c0_74, %c0_75] : memref<32x128xf32, #tpu.memory_space<vmem>>, vector<32x128xf32>
    %357 = vector.broadcast %5 : vector<1x128xf32> to vector<32x128xf32>
    %358 = arith.mulf %356, %357 : vector<32x128xf32>
    %359 = arith.truncf %358 : vector<32x128xf32> to vector<32x128xbf16>
    %c0_76 = arith.constant 0 : index
    %c0_77 = arith.constant 0 : index
    %360 = vector.load %arg2[%c0_76, %c0_77] : memref<64x1xf32, #tpu.memory_space<vmem>>, vector<64x1xf32>
    %361 = vector.shape_cast %360 : vector<64x1xf32> to vector<64x1xf32>
    %362 = vector.broadcast %361 : vector<64x1xf32> to vector<64x32xf32>
    %cst_78 = arith.constant 0.000000e+00 : f32
    %363 = vector.broadcast %cst_78 : f32 to vector<8x32xf32>
    %cst_79 = arith.constant 0.000000e+00 : f32
    %364 = vector.broadcast %cst_79 : f32 to vector<8x32xf32>
    %365 = vector.extract_strided_slice %355 {offsets = [0, 0], sizes = [4, 128], strides = [1, 1]} : vector<32x128xf32> to vector<4x128xf32>
    %366 = vector.extract_strided_slice %355 {offsets = [28, 0], sizes = [4, 128], strides = [1, 1]} : vector<32x128xf32> to vector<4x128xf32>
    %367 = tpu.concatenate %365, %366 in 0 : vector<4x128xf32>, vector<4x128xf32> -> vector<8x128xf32>
    %368 = vector.extract_strided_slice %362 {offsets = [0, 0], sizes = [8, 32], strides = [1, 1]} : vector<64x32xf32> to vector<8x32xf32>
    %369 = arith.truncf %363 : vector<8x32xf32> to vector<8x32xbf16>
    %cst_80 = arith.constant dense<0.000000e+00> : vector<8x128xf32>
    %370 = tpu.matmul %369, %359, %cst_80 {dimension_numbers = #tpu.dot_dimension_numbers<[1], [0], [0], [1], [0, 0, 1, 1], [], []>} : vector<8x32xbf16>, vector<32x128xbf16>, vector<8x128xf32> -> vector<8x128xf32>
    %371 = arith.addf %367, %370 : vector<8x128xf32>
    %372 = math.tanh %371 : vector<8x128xf32>
    %373 = vector.extract_strided_slice %372 {offsets = [0, 0], sizes = [8, 32], strides = [1, 1]} : vector<8x128xf32> to vector<8x32xf32>
    %374 = vector.extract_strided_slice %372 {offsets = [0, 32], sizes = [8, 96], strides = [1, 1]} : vector<8x128xf32> to vector<8x96xf32>
    %cst_81 = arith.constant 5.000000e-01 : f32
    %375 = vector.broadcast %cst_81 : f32 to vector<8x96xf32>
    %376 = arith.mulf %374, %375 : vector<8x96xf32>
    %cst_82 = arith.constant 5.000000e-01 : f32
    %377 = vector.broadcast %cst_82 : f32 to vector<8x96xf32>
    %378 = arith.addf %376, %377 : vector<8x96xf32>
    %379 = vector.extract_strided_slice %378 {offsets = [0, 0], sizes = [8, 32], strides = [1, 1]} : vector<8x96xf32> to vector<8x32xf32>
    %380 = arith.mulf %379, %373 : vector<8x32xf32>
    %381 = vector.extract_strided_slice %378 {offsets = [0, 32], sizes = [8, 32], strides = [1, 1]} : vector<8x96xf32> to vector<8x32xf32>
    %382 = arith.mulf %381, %364 : vector<8x32xf32>
    %383 = arith.addf %380, %382 : vector<8x32xf32>
    %384 = vector.extract_strided_slice %378 {offsets = [0, 64], sizes = [8, 32], strides = [1, 1]} : vector<8x96xf32> to vector<8x32xf32>
    %385 = math.tanh %383 : vector<8x32xf32>
    %386 = arith.mulf %384, %385 : vector<8x32xf32>
    %387 = arith.subf %386, %363 : vector<8x32xf32>
    %388 = arith.mulf %368, %387 : vector<8x32xf32>
    %389 = arith.addf %363, %388 : vector<8x32xf32>
    %390 = arith.subf %383, %364 : vector<8x32xf32>
    %391 = arith.mulf %368, %390 : vector<8x32xf32>
    %392 = arith.addf %364, %391 : vector<8x32xf32>
    %393 = vector.extract_strided_slice %355 {offsets = [4, 0], sizes = [4, 128], strides = [1, 1]} : vector<32x128xf32> to vector<4x128xf32>
    %394 = vector.extract_strided_slice %355 {offsets = [24, 0], sizes = [4, 128], strides = [1, 1]} : vector<32x128xf32> to vector<4x128xf32>
    %395 = tpu.concatenate %393, %394 in 0 : vector<4x128xf32>, vector<4x128xf32> -> vector<8x128xf32>
    %396 = vector.extract_strided_slice %362 {offsets = [8, 0], sizes = [8, 32], strides = [1, 1]} : vector<64x32xf32> to vector<8x32xf32>
    %397 = arith.truncf %389 : vector<8x32xf32> to vector<8x32xbf16>
    %cst_83 = arith.constant dense<0.000000e+00> : vector<8x128xf32>
    %398 = tpu.matmul %397, %359, %cst_83 {dimension_numbers = #tpu.dot_dimension_numbers<[1], [0], [0], [1], [0, 0, 1, 1], [], []>} : vector<8x32xbf16>, vector<32x128xbf16>, vector<8x128xf32> -> vector<8x128xf32>
    %399 = arith.addf %395, %398 : vector<8x128xf32>
    %400 = math.tanh %399 : vector<8x128xf32>
    %401 = vector.extract_strided_slice %400 {offsets = [0, 0], sizes = [8, 32], strides = [1, 1]} : vector<8x128xf32> to vector<8x32xf32>
    %402 = vector.extract_strided_slice %400 {offsets = [0, 32], sizes = [8, 96], strides = [1, 1]} : vector<8x128xf32> to vector<8x96xf32>
    %cst_84 = arith.constant 5.000000e-01 : f32
    %403 = vector.broadcast %cst_84 : f32 to vector<8x96xf32>
    %404 = arith.mulf %402, %403 : vector<8x96xf32>
    %cst_85 = arith.constant 5.000000e-01 : f32
    %405 = vector.broadcast %cst_85 : f32 to vector<8x96xf32>
    %406 = arith.addf %404, %405 : vector<8x96xf32>
    %407 = vector.extract_strided_slice %406 {offsets = [0, 0], sizes = [8, 32], strides = [1, 1]} : vector<8x96xf32> to vector<8x32xf32>
    %408 = arith.mulf %407, %401 : vector<8x32xf32>
    %409 = vector.extract_strided_slice %406 {offsets = [0, 32], sizes = [8, 32], strides = [1, 1]} : vector<8x96xf32> to vector<8x32xf32>
    %410 = arith.mulf %409, %392 : vector<8x32xf32>
    %411 = arith.addf %408, %410 : vector<8x32xf32>
    %412 = vector.extract_strided_slice %406 {offsets = [0, 64], sizes = [8, 32], strides = [1, 1]} : vector<8x96xf32> to vector<8x32xf32>
    %413 = math.tanh %411 : vector<8x32xf32>
    %414 = arith.mulf %412, %413 : vector<8x32xf32>
    %415 = arith.subf %414, %389 : vector<8x32xf32>
    %416 = arith.mulf %396, %415 : vector<8x32xf32>
    %417 = arith.addf %389, %416 : vector<8x32xf32>
    %418 = arith.subf %411, %392 : vector<8x32xf32>
    %419 = arith.mulf %396, %418 : vector<8x32xf32>
    %420 = arith.addf %392, %419 : vector<8x32xf32>
    %421 = arith.addf %389, %417 : vector<8x32xf32>
    %422 = arith.maximumf %389, %417 : vector<8x32xf32>
    %423 = vector.extract_strided_slice %355 {offsets = [8, 0], sizes = [4, 128], strides = [1, 1]} : vector<32x128xf32> to vector<4x128xf32>
    %424 = vector.extract_strided_slice %355 {offsets = [20, 0], sizes = [4, 128], strides = [1, 1]} : vector<32x128xf32> to vector<4x128xf32>
    %425 = tpu.concatenate %423, %424 in 0 : vector<4x128xf32>, vector<4x128xf32> -> vector<8x128xf32>
    %426 = vector.extract_strided_slice %362 {offsets = [16, 0], sizes = [8, 32], strides = [1, 1]} : vector<64x32xf32> to vector<8x32xf32>
    %427 = arith.truncf %417 : vector<8x32xf32> to vector<8x32xbf16>
    %cst_86 = arith.constant dense<0.000000e+00> : vector<8x128xf32>
    %428 = tpu.matmul %427, %359, %cst_86 {dimension_numbers = #tpu.dot_dimension_numbers<[1], [0], [0], [1], [0, 0, 1, 1], [], []>} : vector<8x32xbf16>, vector<32x128xbf16>, vector<8x128xf32> -> vector<8x128xf32>
    %429 = arith.addf %425, %428 : vector<8x128xf32>
    %430 = math.tanh %429 : vector<8x128xf32>
    %431 = vector.extract_strided_slice %430 {offsets = [0, 0], sizes = [8, 32], strides = [1, 1]} : vector<8x128xf32> to vector<8x32xf32>
    %432 = vector.extract_strided_slice %430 {offsets = [0, 32], sizes = [8, 96], strides = [1, 1]} : vector<8x128xf32> to vector<8x96xf32>
    %cst_87 = arith.constant 5.000000e-01 : f32
    %433 = vector.broadcast %cst_87 : f32 to vector<8x96xf32>
    %434 = arith.mulf %432, %433 : vector<8x96xf32>
    %cst_88 = arith.constant 5.000000e-01 : f32
    %435 = vector.broadcast %cst_88 : f32 to vector<8x96xf32>
    %436 = arith.addf %434, %435 : vector<8x96xf32>
    %437 = vector.extract_strided_slice %436 {offsets = [0, 0], sizes = [8, 32], strides = [1, 1]} : vector<8x96xf32> to vector<8x32xf32>
    %438 = arith.mulf %437, %431 : vector<8x32xf32>
    %439 = vector.extract_strided_slice %436 {offsets = [0, 32], sizes = [8, 32], strides = [1, 1]} : vector<8x96xf32> to vector<8x32xf32>
    %440 = arith.mulf %439, %420 : vector<8x32xf32>
    %441 = arith.addf %438, %440 : vector<8x32xf32>
    %442 = vector.extract_strided_slice %436 {offsets = [0, 64], sizes = [8, 32], strides = [1, 1]} : vector<8x96xf32> to vector<8x32xf32>
    %443 = math.tanh %441 : vector<8x32xf32>
    %444 = arith.mulf %442, %443 : vector<8x32xf32>
    %445 = arith.subf %444, %417 : vector<8x32xf32>
    %446 = arith.mulf %426, %445 : vector<8x32xf32>
    %447 = arith.addf %417, %446 : vector<8x32xf32>
    %448 = arith.subf %441, %420 : vector<8x32xf32>
    %449 = arith.mulf %426, %448 : vector<8x32xf32>
    %450 = arith.addf %420, %449 : vector<8x32xf32>
    %451 = arith.addf %421, %447 : vector<8x32xf32>
    %452 = arith.maximumf %422, %447 : vector<8x32xf32>
    %453 = vector.extract_strided_slice %355 {offsets = [12, 0], sizes = [4, 128], strides = [1, 1]} : vector<32x128xf32> to vector<4x128xf32>
    %454 = vector.extract_strided_slice %355 {offsets = [16, 0], sizes = [4, 128], strides = [1, 1]} : vector<32x128xf32> to vector<4x128xf32>
    %455 = tpu.concatenate %453, %454 in 0 : vector<4x128xf32>, vector<4x128xf32> -> vector<8x128xf32>
    %456 = vector.extract_strided_slice %362 {offsets = [24, 0], sizes = [8, 32], strides = [1, 1]} : vector<64x32xf32> to vector<8x32xf32>
    %457 = arith.truncf %447 : vector<8x32xf32> to vector<8x32xbf16>
    %cst_89 = arith.constant dense<0.000000e+00> : vector<8x128xf32>
    %458 = tpu.matmul %457, %359, %cst_89 {dimension_numbers = #tpu.dot_dimension_numbers<[1], [0], [0], [1], [0, 0, 1, 1], [], []>} : vector<8x32xbf16>, vector<32x128xbf16>, vector<8x128xf32> -> vector<8x128xf32>
    %459 = arith.addf %455, %458 : vector<8x128xf32>
    %460 = math.tanh %459 : vector<8x128xf32>
    %461 = vector.extract_strided_slice %460 {offsets = [0, 0], sizes = [8, 32], strides = [1, 1]} : vector<8x128xf32> to vector<8x32xf32>
    %462 = vector.extract_strided_slice %460 {offsets = [0, 32], sizes = [8, 96], strides = [1, 1]} : vector<8x128xf32> to vector<8x96xf32>
    %cst_90 = arith.constant 5.000000e-01 : f32
    %463 = vector.broadcast %cst_90 : f32 to vector<8x96xf32>
    %464 = arith.mulf %462, %463 : vector<8x96xf32>
    %cst_91 = arith.constant 5.000000e-01 : f32
    %465 = vector.broadcast %cst_91 : f32 to vector<8x96xf32>
    %466 = arith.addf %464, %465 : vector<8x96xf32>
    %467 = vector.extract_strided_slice %466 {offsets = [0, 0], sizes = [8, 32], strides = [1, 1]} : vector<8x96xf32> to vector<8x32xf32>
    %468 = arith.mulf %467, %461 : vector<8x32xf32>
    %469 = vector.extract_strided_slice %466 {offsets = [0, 32], sizes = [8, 32], strides = [1, 1]} : vector<8x96xf32> to vector<8x32xf32>
    %470 = arith.mulf %469, %450 : vector<8x32xf32>
    %471 = arith.addf %468, %470 : vector<8x32xf32>
    %472 = vector.extract_strided_slice %466 {offsets = [0, 64], sizes = [8, 32], strides = [1, 1]} : vector<8x96xf32> to vector<8x32xf32>
    %473 = math.tanh %471 : vector<8x32xf32>
    %474 = arith.mulf %472, %473 : vector<8x32xf32>
    %475 = arith.subf %474, %447 : vector<8x32xf32>
    %476 = arith.mulf %456, %475 : vector<8x32xf32>
    %477 = arith.addf %447, %476 : vector<8x32xf32>
    %478 = arith.subf %471, %450 : vector<8x32xf32>
    %479 = arith.mulf %456, %478 : vector<8x32xf32>
    %480 = arith.addf %450, %479 : vector<8x32xf32>
    %481 = arith.addf %451, %477 : vector<8x32xf32>
    %482 = arith.maximumf %452, %477 : vector<8x32xf32>
    %483 = vector.extract_strided_slice %355 {offsets = [16, 0], sizes = [4, 128], strides = [1, 1]} : vector<32x128xf32> to vector<4x128xf32>
    %484 = vector.extract_strided_slice %355 {offsets = [12, 0], sizes = [4, 128], strides = [1, 1]} : vector<32x128xf32> to vector<4x128xf32>
    %485 = tpu.concatenate %483, %484 in 0 : vector<4x128xf32>, vector<4x128xf32> -> vector<8x128xf32>
    %486 = vector.extract_strided_slice %362 {offsets = [32, 0], sizes = [8, 32], strides = [1, 1]} : vector<64x32xf32> to vector<8x32xf32>
    %487 = arith.truncf %477 : vector<8x32xf32> to vector<8x32xbf16>
    %cst_92 = arith.constant dense<0.000000e+00> : vector<8x128xf32>
    %488 = tpu.matmul %487, %359, %cst_92 {dimension_numbers = #tpu.dot_dimension_numbers<[1], [0], [0], [1], [0, 0, 1, 1], [], []>} : vector<8x32xbf16>, vector<32x128xbf16>, vector<8x128xf32> -> vector<8x128xf32>
    %489 = arith.addf %485, %488 : vector<8x128xf32>
    %490 = math.tanh %489 : vector<8x128xf32>
    %491 = vector.extract_strided_slice %490 {offsets = [0, 0], sizes = [8, 32], strides = [1, 1]} : vector<8x128xf32> to vector<8x32xf32>
    %492 = vector.extract_strided_slice %490 {offsets = [0, 32], sizes = [8, 96], strides = [1, 1]} : vector<8x128xf32> to vector<8x96xf32>
    %cst_93 = arith.constant 5.000000e-01 : f32
    %493 = vector.broadcast %cst_93 : f32 to vector<8x96xf32>
    %494 = arith.mulf %492, %493 : vector<8x96xf32>
    %cst_94 = arith.constant 5.000000e-01 : f32
    %495 = vector.broadcast %cst_94 : f32 to vector<8x96xf32>
    %496 = arith.addf %494, %495 : vector<8x96xf32>
    %497 = vector.extract_strided_slice %496 {offsets = [0, 0], sizes = [8, 32], strides = [1, 1]} : vector<8x96xf32> to vector<8x32xf32>
    %498 = arith.mulf %497, %491 : vector<8x32xf32>
    %499 = vector.extract_strided_slice %496 {offsets = [0, 32], sizes = [8, 32], strides = [1, 1]} : vector<8x96xf32> to vector<8x32xf32>
    %500 = arith.mulf %499, %480 : vector<8x32xf32>
    %501 = arith.addf %498, %500 : vector<8x32xf32>
    %502 = vector.extract_strided_slice %496 {offsets = [0, 64], sizes = [8, 32], strides = [1, 1]} : vector<8x96xf32> to vector<8x32xf32>
    %503 = math.tanh %501 : vector<8x32xf32>
    %504 = arith.mulf %502, %503 : vector<8x32xf32>
    %505 = arith.subf %504, %477 : vector<8x32xf32>
    %506 = arith.mulf %486, %505 : vector<8x32xf32>
    %507 = arith.addf %477, %506 : vector<8x32xf32>
    %508 = arith.subf %501, %480 : vector<8x32xf32>
    %509 = arith.mulf %486, %508 : vector<8x32xf32>
    %510 = arith.addf %480, %509 : vector<8x32xf32>
    %511 = arith.addf %481, %507 : vector<8x32xf32>
    %512 = arith.maximumf %482, %507 : vector<8x32xf32>
    %513 = vector.extract_strided_slice %355 {offsets = [20, 0], sizes = [4, 128], strides = [1, 1]} : vector<32x128xf32> to vector<4x128xf32>
    %514 = vector.extract_strided_slice %355 {offsets = [8, 0], sizes = [4, 128], strides = [1, 1]} : vector<32x128xf32> to vector<4x128xf32>
    %515 = tpu.concatenate %513, %514 in 0 : vector<4x128xf32>, vector<4x128xf32> -> vector<8x128xf32>
    %516 = vector.extract_strided_slice %362 {offsets = [40, 0], sizes = [8, 32], strides = [1, 1]} : vector<64x32xf32> to vector<8x32xf32>
    %517 = arith.truncf %507 : vector<8x32xf32> to vector<8x32xbf16>
    %cst_95 = arith.constant dense<0.000000e+00> : vector<8x128xf32>
    %518 = tpu.matmul %517, %359, %cst_95 {dimension_numbers = #tpu.dot_dimension_numbers<[1], [0], [0], [1], [0, 0, 1, 1], [], []>} : vector<8x32xbf16>, vector<32x128xbf16>, vector<8x128xf32> -> vector<8x128xf32>
    %519 = arith.addf %515, %518 : vector<8x128xf32>
    %520 = math.tanh %519 : vector<8x128xf32>
    %521 = vector.extract_strided_slice %520 {offsets = [0, 0], sizes = [8, 32], strides = [1, 1]} : vector<8x128xf32> to vector<8x32xf32>
    %522 = vector.extract_strided_slice %520 {offsets = [0, 32], sizes = [8, 96], strides = [1, 1]} : vector<8x128xf32> to vector<8x96xf32>
    %cst_96 = arith.constant 5.000000e-01 : f32
    %523 = vector.broadcast %cst_96 : f32 to vector<8x96xf32>
    %524 = arith.mulf %522, %523 : vector<8x96xf32>
    %cst_97 = arith.constant 5.000000e-01 : f32
    %525 = vector.broadcast %cst_97 : f32 to vector<8x96xf32>
    %526 = arith.addf %524, %525 : vector<8x96xf32>
    %527 = vector.extract_strided_slice %526 {offsets = [0, 0], sizes = [8, 32], strides = [1, 1]} : vector<8x96xf32> to vector<8x32xf32>
    %528 = arith.mulf %527, %521 : vector<8x32xf32>
    %529 = vector.extract_strided_slice %526 {offsets = [0, 32], sizes = [8, 32], strides = [1, 1]} : vector<8x96xf32> to vector<8x32xf32>
    %530 = arith.mulf %529, %510 : vector<8x32xf32>
    %531 = arith.addf %528, %530 : vector<8x32xf32>
    %532 = vector.extract_strided_slice %526 {offsets = [0, 64], sizes = [8, 32], strides = [1, 1]} : vector<8x96xf32> to vector<8x32xf32>
    %533 = math.tanh %531 : vector<8x32xf32>
    %534 = arith.mulf %532, %533 : vector<8x32xf32>
    %535 = arith.subf %534, %507 : vector<8x32xf32>
    %536 = arith.mulf %516, %535 : vector<8x32xf32>
    %537 = arith.addf %507, %536 : vector<8x32xf32>
    %538 = arith.subf %531, %510 : vector<8x32xf32>
    %539 = arith.mulf %516, %538 : vector<8x32xf32>
    %540 = arith.addf %510, %539 : vector<8x32xf32>
    %541 = arith.addf %511, %537 : vector<8x32xf32>
    %542 = arith.maximumf %512, %537 : vector<8x32xf32>
    %543 = vector.extract_strided_slice %355 {offsets = [24, 0], sizes = [4, 128], strides = [1, 1]} : vector<32x128xf32> to vector<4x128xf32>
    %544 = vector.extract_strided_slice %355 {offsets = [4, 0], sizes = [4, 128], strides = [1, 1]} : vector<32x128xf32> to vector<4x128xf32>
    %545 = tpu.concatenate %543, %544 in 0 : vector<4x128xf32>, vector<4x128xf32> -> vector<8x128xf32>
    %546 = vector.extract_strided_slice %362 {offsets = [48, 0], sizes = [8, 32], strides = [1, 1]} : vector<64x32xf32> to vector<8x32xf32>
    %547 = arith.truncf %537 : vector<8x32xf32> to vector<8x32xbf16>
    %cst_98 = arith.constant dense<0.000000e+00> : vector<8x128xf32>
    %548 = tpu.matmul %547, %359, %cst_98 {dimension_numbers = #tpu.dot_dimension_numbers<[1], [0], [0], [1], [0, 0, 1, 1], [], []>} : vector<8x32xbf16>, vector<32x128xbf16>, vector<8x128xf32> -> vector<8x128xf32>
    %549 = arith.addf %545, %548 : vector<8x128xf32>
    %550 = math.tanh %549 : vector<8x128xf32>
    %551 = vector.extract_strided_slice %550 {offsets = [0, 0], sizes = [8, 32], strides = [1, 1]} : vector<8x128xf32> to vector<8x32xf32>
    %552 = vector.extract_strided_slice %550 {offsets = [0, 32], sizes = [8, 96], strides = [1, 1]} : vector<8x128xf32> to vector<8x96xf32>
    %cst_99 = arith.constant 5.000000e-01 : f32
    %553 = vector.broadcast %cst_99 : f32 to vector<8x96xf32>
    %554 = arith.mulf %552, %553 : vector<8x96xf32>
    %cst_100 = arith.constant 5.000000e-01 : f32
    %555 = vector.broadcast %cst_100 : f32 to vector<8x96xf32>
    %556 = arith.addf %554, %555 : vector<8x96xf32>
    %557 = vector.extract_strided_slice %556 {offsets = [0, 0], sizes = [8, 32], strides = [1, 1]} : vector<8x96xf32> to vector<8x32xf32>
    %558 = arith.mulf %557, %551 : vector<8x32xf32>
    %559 = vector.extract_strided_slice %556 {offsets = [0, 32], sizes = [8, 32], strides = [1, 1]} : vector<8x96xf32> to vector<8x32xf32>
    %560 = arith.mulf %559, %540 : vector<8x32xf32>
    %561 = arith.addf %558, %560 : vector<8x32xf32>
    %562 = vector.extract_strided_slice %556 {offsets = [0, 64], sizes = [8, 32], strides = [1, 1]} : vector<8x96xf32> to vector<8x32xf32>
    %563 = math.tanh %561 : vector<8x32xf32>
    %564 = arith.mulf %562, %563 : vector<8x32xf32>
    %565 = arith.subf %564, %537 : vector<8x32xf32>
    %566 = arith.mulf %546, %565 : vector<8x32xf32>
    %567 = arith.addf %537, %566 : vector<8x32xf32>
    %568 = arith.subf %561, %540 : vector<8x32xf32>
    %569 = arith.mulf %546, %568 : vector<8x32xf32>
    %570 = arith.addf %540, %569 : vector<8x32xf32>
    %571 = arith.addf %541, %567 : vector<8x32xf32>
    %572 = arith.maximumf %542, %567 : vector<8x32xf32>
    %573 = vector.extract_strided_slice %355 {offsets = [28, 0], sizes = [4, 128], strides = [1, 1]} : vector<32x128xf32> to vector<4x128xf32>
    %574 = vector.extract_strided_slice %355 {offsets = [0, 0], sizes = [4, 128], strides = [1, 1]} : vector<32x128xf32> to vector<4x128xf32>
    %575 = tpu.concatenate %573, %574 in 0 : vector<4x128xf32>, vector<4x128xf32> -> vector<8x128xf32>
    %576 = vector.extract_strided_slice %362 {offsets = [56, 0], sizes = [8, 32], strides = [1, 1]} : vector<64x32xf32> to vector<8x32xf32>
    %577 = arith.truncf %567 : vector<8x32xf32> to vector<8x32xbf16>
    %cst_101 = arith.constant dense<0.000000e+00> : vector<8x128xf32>
    %578 = tpu.matmul %577, %359, %cst_101 {dimension_numbers = #tpu.dot_dimension_numbers<[1], [0], [0], [1], [0, 0, 1, 1], [], []>} : vector<8x32xbf16>, vector<32x128xbf16>, vector<8x128xf32> -> vector<8x128xf32>
    %579 = arith.addf %575, %578 : vector<8x128xf32>
    %580 = math.tanh %579 : vector<8x128xf32>
    %581 = vector.extract_strided_slice %580 {offsets = [0, 0], sizes = [8, 32], strides = [1, 1]} : vector<8x128xf32> to vector<8x32xf32>
    %582 = vector.extract_strided_slice %580 {offsets = [0, 32], sizes = [8, 96], strides = [1, 1]} : vector<8x128xf32> to vector<8x96xf32>
    %cst_102 = arith.constant 5.000000e-01 : f32
    %583 = vector.broadcast %cst_102 : f32 to vector<8x96xf32>
    %584 = arith.mulf %582, %583 : vector<8x96xf32>
    %cst_103 = arith.constant 5.000000e-01 : f32
    %585 = vector.broadcast %cst_103 : f32 to vector<8x96xf32>
    %586 = arith.addf %584, %585 : vector<8x96xf32>
    %587 = vector.extract_strided_slice %586 {offsets = [0, 0], sizes = [8, 32], strides = [1, 1]} : vector<8x96xf32> to vector<8x32xf32>
    %588 = arith.mulf %587, %581 : vector<8x32xf32>
    %589 = vector.extract_strided_slice %586 {offsets = [0, 32], sizes = [8, 32], strides = [1, 1]} : vector<8x96xf32> to vector<8x32xf32>
    %590 = arith.mulf %589, %570 : vector<8x32xf32>
    %591 = arith.addf %588, %590 : vector<8x32xf32>
    %592 = vector.extract_strided_slice %586 {offsets = [0, 64], sizes = [8, 32], strides = [1, 1]} : vector<8x96xf32> to vector<8x32xf32>
    %593 = math.tanh %591 : vector<8x32xf32>
    %594 = arith.mulf %592, %593 : vector<8x32xf32>
    %595 = arith.subf %594, %567 : vector<8x32xf32>
    %596 = arith.mulf %576, %595 : vector<8x32xf32>
    %597 = arith.addf %567, %596 : vector<8x32xf32>
    %598 = arith.addf %571, %597 : vector<8x32xf32>
    %599 = arith.maximumf %572, %597 : vector<8x32xf32>
    %cst_104 = arith.constant 1.250000e-01 : f32
    %600 = vector.broadcast %cst_104 : f32 to vector<8x32xf32>
    %601 = arith.mulf %598, %600 : vector<8x32xf32>
    %602 = vector.extract_strided_slice %601 {offsets = [0, 0], sizes = [2, 32], strides = [1, 1]} : vector<8x32xf32> to vector<2x32xf32>
    %603 = vector.extract_strided_slice %601 {offsets = [4, 0], sizes = [2, 32], strides = [1, 1]} : vector<8x32xf32> to vector<2x32xf32>
    %604 = vector.extract_strided_slice %599 {offsets = [0, 0], sizes = [2, 32], strides = [1, 1]} : vector<8x32xf32> to vector<2x32xf32>
    %605 = vector.extract_strided_slice %599 {offsets = [4, 0], sizes = [2, 32], strides = [1, 1]} : vector<8x32xf32> to vector<2x32xf32>
    %606 = vector.extract_strided_slice %601 {offsets = [2, 0], sizes = [2, 32], strides = [1, 1]} : vector<8x32xf32> to vector<2x32xf32>
    %607 = vector.extract_strided_slice %601 {offsets = [6, 0], sizes = [2, 32], strides = [1, 1]} : vector<8x32xf32> to vector<2x32xf32>
    %608 = vector.extract_strided_slice %599 {offsets = [2, 0], sizes = [2, 32], strides = [1, 1]} : vector<8x32xf32> to vector<2x32xf32>
    %609 = vector.extract_strided_slice %599 {offsets = [6, 0], sizes = [2, 32], strides = [1, 1]} : vector<8x32xf32> to vector<2x32xf32>
    %610 = tpu.concatenate %602, %603, %604, %605, %606, %607, %608, %609 in 1 : vector<2x32xf32>, vector<2x32xf32>, vector<2x32xf32>, vector<2x32xf32>, vector<2x32xf32>, vector<2x32xf32>, vector<2x32xf32>, vector<2x32xf32> -> vector<2x256xf32>
    %611 = arith.truncf %610 : vector<2x256xf32> to vector<2x256xbf16>
    %c0_105 = arith.constant 0 : index
    %c0_106 = arith.constant 0 : index
    %612 = vector.load %arg14[%c0_105, %c0_106] : memref<256x32xf32, #tpu.memory_space<vmem>>, vector<256x32xf32>
    %613 = arith.truncf %612 : vector<256x32xf32> to vector<256x32xbf16>
    %cst_107 = arith.constant dense<0.000000e+00> : vector<2x32xf32>
    %614 = tpu.matmul %611, %613, %cst_107 {dimension_numbers = #tpu.dot_dimension_numbers<[1], [0], [0], [1], [0, 0, 1, 1], [], []>} : vector<2x256xbf16>, vector<256x32xbf16>, vector<2x32xf32> -> vector<2x32xf32>
    %c0_108 = arith.constant 0 : index
    %c0_109 = arith.constant 0 : index
    %615 = vector.load %arg15[%c0_108, %c0_109] : memref<1x32xf32, #tpu.memory_space<vmem>>, vector<1x32xf32>
    %616 = vector.broadcast %615 : vector<1x32xf32> to vector<2x32xf32>
    %617 = arith.addf %614, %616 : vector<2x32xf32>
    %cst_110 = arith.constant 0.000000e+00 : f32
    %618 = vector.broadcast %cst_110 : f32 to vector<2x32xf32>
    %619 = arith.maximumf %617, %618 : vector<2x32xf32>
    %620 = arith.truncf %619 : vector<2x32xf32> to vector<2x32xbf16>
    %c0_111 = arith.constant 0 : index
    %c0_112 = arith.constant 0 : index
    %621 = vector.load %arg16[%c0_111, %c0_112] : memref<32x3xf32, #tpu.memory_space<vmem>>, vector<32x3xf32>
    %622 = arith.truncf %621 : vector<32x3xf32> to vector<32x3xbf16>
    %cst_113 = arith.constant dense<0.000000e+00> : vector<2x3xf32>
    %623 = tpu.matmul %620, %622, %cst_113 {dimension_numbers = #tpu.dot_dimension_numbers<[1], [0], [0], [1], [0, 0, 1, 1], [], []>} : vector<2x32xbf16>, vector<32x3xbf16>, vector<2x3xf32> -> vector<2x3xf32>
    %c0_114 = arith.constant 0 : index
    %c0_115 = arith.constant 0 : index
    %624 = vector.load %arg17[%c0_114, %c0_115] : memref<1x3xf32, #tpu.memory_space<vmem>>, vector<1x3xf32>
    %625 = vector.broadcast %624 : vector<1x3xf32> to vector<2x3xf32>
    %626 = arith.addf %623, %625 : vector<2x3xf32>
    %c0_116 = arith.constant 0 : index
    %c0_117 = arith.constant 0 : index
    %627 = vector.load %arg18[%c0_116, %c0_117] : memref<2x3xf32, #tpu.memory_space<vmem>>, vector<2x3xf32>
    tpu.vector_store %arg18[%c0_116, %c0_117], %626 {strides = array<i32>} : memref<2x3xf32, #tpu.memory_space<vmem>>, vector<2x3xf32>,
    return
  }
}

</mosaic_0001>

<llo_original>
// kernel: esim_forward.1
$region0: #{esim_forward.1}
  #allocation0 [shape = 'u32[]', space=smem, size = 0x4, offset = 0x4, fixed_abs, tag = 'smem constant byte address 0x4 - core index']
  #allocation1 [shape = 'u32[144,128]{1,0:T(1,128)}', space=vmem, size = 0x12000, scoped, tag = 'internal scratch']
  %s0 = inlined_call_operand.vmem [shape: s32[64,1], index: 0, kind: input, shape index: {}]
  %s1 = inlined_call_operand.vmem [shape: f32[64,1], index: 1, kind: input, shape index: {}]
  %s2 = inlined_call_operand.vmem [shape: f32[64,1], index: 2, kind: input, shape index: {}]
  %s3 = inlined_call_operand.vmem [shape: f32[32,1], index: 3, kind: input, shape index: {}]
  %s4 = inlined_call_operand.vmem [shape: f32[1,32], index: 4, kind: input, shape index: {}]
  %s5 = inlined_call_operand.vmem [shape: f32[64,32], index: 5, kind: input, shape index: {}]
  %s6 = inlined_call_operand.vmem [shape: f32[32,128], index: 6, kind: input, shape index: {}]
  %s7 = inlined_call_operand.vmem [shape: f32[1,128], index: 7, kind: input, shape index: {}]
  %s8 = inlined_call_operand.vmem [shape: f32[32,128], index: 8, kind: input, shape index: {}]
  %s9 = inlined_call_operand.vmem [shape: f32[32,128], index: 9, kind: input, shape index: {}]
  %s10 = inlined_call_operand.vmem [shape: f32[1,128], index: 10, kind: input, shape index: {}]
  %s11 = inlined_call_operand.vmem [shape: f32[32,128], index: 11, kind: input, shape index: {}]
  %s12 = inlined_call_operand.vmem [shape: f32[256,32], index: 12, kind: input, shape index: {}]
  %s13 = inlined_call_operand.vmem [shape: f32[1,32], index: 13, kind: input, shape index: {}]
  %s14 = inlined_call_operand.vmem [shape: f32[256,32], index: 14, kind: input, shape index: {}]
  %s15 = inlined_call_operand.vmem [shape: f32[1,32], index: 15, kind: input, shape index: {}]
  %s16 = inlined_call_operand.vmem [shape: f32[32,3], index: 16, kind: input, shape index: {}]
  %s17 = inlined_call_operand.vmem [shape: f32[1,3], index: 17, kind: input, shape index: {}]
  %s18 = inlined_call_operand.hbm [shape: f32[2,3], index: 18, kind: output, shape index: {}]
  %s19 = sld [smem:[#allocation0]]
  $region82: #{esim_forward.1} parent=0
    _
  %s21 = ssub.s32 1, %s19
  %s22 = scalar_select 0, %s21, %s19
  $region1: #{esim_forward.1} parent=0
    #allocation2 [shape = 'u8[1024]{0}', space=vmem, size = 0x400, scoped, tag = 'output window, operand 0, single buffered']
    #allocation3 [shape = 's32[1]{0}', space=sflag, size = 0x4, scoped, tag = 'scoped memory for esim_forward.1']
    %23 = vsyncpa [#allocation3], 0
    // Predicated region
    $region2: #{esim_forward.1} parent=1 // pred_check
      _
    $region3: #{esim_forward.1} parent=1 // pred_check_branch
      %25 = sbr.rel (0) target = $region5
    $region4: #{esim_forward.1} parent=1 // pred_region
      _
    $region5: #{esim_forward.1} parent=1 // pred_fallthru
      _
    // Predicated region
    $region6: #{esim_forward.1} parent=1 // pred_check
      _
    $region7: #{esim_forward.1} parent=1 // pred_check_branch
      %27 = sbr.rel (0) target = $region9
    $region8: #{esim_forward.1} parent=1 // pred_region
      _
    $region9: #{esim_forward.1} parent=1 // pred_fallthru
      _
    // Predicated region
    $region10: #{esim_forward.1} parent=1 // pred_check
      _
    $region11: #{esim_forward.1} parent=1 // pred_check_branch
      %29 = sbr.rel (0) target = $region13
    $region12: #{esim_forward.1} parent=1 // pred_region
      _
    $region13: #{esim_forward.1} parent=1 // pred_fallthru
      _
    // Predicated region
    $region14: #{esim_forward.1} parent=1 // pred_check
      _
    $region15: #{esim_forward.1} parent=1 // pred_check_branch
      %31 = sbr.rel (0) target = $region17
    $region16: #{esim_forward.1} parent=1 // pred_region
      _
    $region17: #{esim_forward.1} parent=1 // pred_fallthru
      _
    // Predicated region
    $region18: #{esim_forward.1} parent=1 // pred_check
      _
    $region19: #{esim_forward.1} parent=1 // pred_check_branch
      %33 = sbr.rel (0) target = $region21
    $region20: #{esim_forward.1} parent=1 // pred_region
      _
    $region21: #{esim_forward.1} parent=1 // pred_fallthru
      _
    // Predicated region
    $region22: #{esim_forward.1} parent=1 // pred_check
      _
    $region23: #{esim_forward.1} parent=1 // pred_check_branch
      %35 = sbr.rel (0) target = $region25
    $region24: #{esim_forward.1} parent=1 // pred_region
      _
    $region25: #{esim_forward.1} parent=1 // pred_fallthru
      _
    // Predicated region
    $region26: #{esim_forward.1} parent=1 // pred_check
      _
    $region27: #{esim_forward.1} parent=1 // pred_check_branch
      %37 = sbr.rel (0) target = $region29
    $region28: #{esim_forward.1} parent=1 // pred_region
      _
    $region29: #{esim_forward.1} parent=1 // pred_fallthru
      _
    // Predicated region
    $region30: #{esim_forward.1} parent=1 // pred_check
      _
    $region31: #{esim_forward.1} parent=1 // pred_check_branch
      %39 = sbr.rel (0) target = $region33
    $region32: #{esim_forward.1} parent=1 // pred_region
      _
    $region33: #{esim_forward.1} parent=1 // pred_fallthru
      _
    // Predicated region
    $region34: #{esim_forward.1} parent=1 // pred_check
      _
    $region35: #{esim_forward.1} parent=1 // pred_check_branch
      %41 = sbr.rel (0) target = $region37
    $region36: #{esim_forward.1} parent=1 // pred_region
      _
    $region37: #{esim_forward.1} parent=1 // pred_fallthru
      _
    // Predicated region
    $region38: #{esim_forward.1} parent=1 // pred_check
      _
    $region39: #{esim_forward.1} parent=1 // pred_check_branch
      %43 = sbr.rel (0) target = $region41
    $region40: #{esim_forward.1} parent=1 // pred_region
      _
    $region41: #{esim_forward.1} parent=1 // pred_fallthru
      _
    // Predicated region
    $region42: #{esim_forward.1} parent=1 // pred_check
      _
    $region43: #{esim_forward.1} parent=1 // pred_check_branch
      %45 = sbr.rel (0) target = $region45
    $region44: #{esim_forward.1} parent=1 // pred_region
      _
    $region45: #{esim_forward.1} parent=1 // pred_fallthru
      _
    // Predicated region
    $region46: #{esim_forward.1} parent=1 // pred_check
      _
    $region47: #{esim_forward.1} parent=1 // pred_check_branch
      %47 = sbr.rel (0) target = $region49
    $region48: #{esim_forward.1} parent=1 // pred_region
      _
    $region49: #{esim_forward.1} parent=1 // pred_fallthru
      _
    // Predicated region
    $region50: #{esim_forward.1} parent=1 // pred_check
      _
    $region51: #{esim_forward.1} parent=1 // pred_check_branch
      %49 = sbr.rel (0) target = $region53
    $region52: #{esim_forward.1} parent=1 // pred_region
      _
    $region53: #{esim_forward.1} parent=1 // pred_fallthru
      _
    // Predicated region
    $region54: #{esim_forward.1} parent=1 // pred_check
      _
    $region55: #{esim_forward.1} parent=1 // pred_check_branch
      %51 = sbr.rel (0) target = $region57
    $region56: #{esim_forward.1} parent=1 // pred_region
      _
    $region57: #{esim_forward.1} parent=1 // pred_fallthru
      _
    // Predicated region
    $region58: #{esim_forward.1} parent=1 // pred_check
      _
    $region59: #{esim_forward.1} parent=1 // pred_check_branch
      %53 = sbr.rel (0) target = $region61
    $region60: #{esim_forward.1} parent=1 // pred_region
      _
    $region61: #{esim_forward.1} parent=1 // pred_fallthru
      _
    // Predicated region
    $region62: #{esim_forward.1} parent=1 // pred_check
      _
    $region63: #{esim_forward.1} parent=1 // pred_check_branch
      %55 = sbr.rel (0) target = $region65
    $region64: #{esim_forward.1} parent=1 // pred_region
      _
    $region65: #{esim_forward.1} parent=1 // pred_fallthru
      _
    // Predicated region
    $region66: #{esim_forward.1} parent=1 // pred_check
      _
    $region67: #{esim_forward.1} parent=1 // pred_check_branch
      %57 = sbr.rel (0) target = $region69
    $region68: #{esim_forward.1} parent=1 // pred_region
      _
    $region69: #{esim_forward.1} parent=1 // pred_fallthru
      _
    // Predicated region
    $region70: #{esim_forward.1} parent=1 // pred_check
      _
    $region71: #{esim_forward.1} parent=1 // pred_check_branch
      %59 = sbr.rel (0) target = $region73
    $region72: #{esim_forward.1} parent=1 // pred_region
      _
    $region73: #{esim_forward.1} parent=1 // pred_fallthru
      _
    %v61 = vlaneseq
    %v62 = vand.u32 %v61, 127
    %vm63 = vcmp.lt.s32.totalorder %v62, 32
    %v64 = vsel %vm63, 1.0, 0.5
    %v65 = vld [vmem:[%s0] sm:$0xff]
    %v66 = vld [vmem:[%s0 + $0x8] sm:$0xff]
    %v67 = vld [vmem:[%s0 + $0x10] sm:$0xff]
    %v68 = vld [vmem:[%s0 + $0x18] sm:$0xff]
    %v69 = vld [vmem:[%s0 + $0x20] sm:$0xff]
    %v70 = vld [vmem:[%s0 + $0x28] sm:$0xff]
    %v71 = vld [vmem:[%s0 + $0x30] sm:$0xff]
    %v72 = vld [vmem:[%s0 + $0x38] sm:$0xff]
    %73 = vset.pattern.permute.xlu0 0
    %74 = vperm.xlu0 %73, %v65
    %v75 = vpop.permute.xlu0 %74
    %76 = vset.pattern.permute.xlu0 0
    %77 = vperm.xlu0 %76, %v66
    %v78 = vpop.permute.xlu0 %77
    %79 = vset.pattern.permute.xlu0 0
    %80 = vperm.xlu0 %79, %v67
    %v81 = vpop.permute.xlu0 %80
    %82 = vset.pattern.permute.xlu0 0
    %83 = vperm.xlu0 %82, %v68
    %v84 = vpop.permute.xlu0 %83
    %85 = vset.pattern.permute.xlu0 0
    %86 = vperm.xlu0 %85, %v69
    %v87 = vpop.permute.xlu0 %86
    %88 = vset.pattern.permute.xlu0 0
    %89 = vperm.xlu0 %88, %v70
    %v90 = vpop.permute.xlu0 %89
    %91 = vset.pattern.permute.xlu0 0
    %92 = vperm.xlu0 %91, %v71
    %v93 = vpop.permute.xlu0 %92
    %94 = vset.pattern.permute.xlu0 0
    %95 = vperm.xlu0 %94, %v72
    %v96 = vpop.permute.xlu0 %95
    %vm97 = vcmp.eq.s32.totalorder %v62, %v75
    %vm98 = vcmp.eq.s32.totalorder %v62, %v78
    %vm99 = vcmp.eq.s32.totalorder %v62, %v81
    %vm100 = vcmp.eq.s32.totalorder %v62, %v84
    %vm101 = vcmp.eq.s32.totalorder %v62, %v87
    %vm102 = vcmp.eq.s32.totalorder %v62, %v90
    %vm103 = vcmp.eq.s32.totalorder %v62, %v93
    %vm104 = vcmp.eq.s32.totalorder %v62, %v96
    %v105 = vsel %vm97, 1.0, 0.0
    %v106 = vsel %vm98, 1.0, 0.0
    %v107 = vsel %vm99, 1.0, 0.0
    %v108 = vsel %vm100, 1.0, 0.0
    %v109 = vsel %vm101, 1.0, 0.0
    %v110 = vsel %vm102, 1.0, 0.0
    %v111 = vsel %vm103, 1.0, 0.0
    %v112 = vsel %vm104, 1.0, 0.0
    %v113 = vpack.c.bf16 %v106, %v105
    %v114 = vpack.c.bf16 %v108, %v107
    %v115 = vpack.c.bf16 %v110, %v109
    %v116 = vpack.c.bf16 %v112, %v111
    %v117 = vld [vmem:[%s5] sm:$0xff]
    %v118 = vld [vmem:[%s5 + $0x8] sm:$0xff]
    %v119 = vld [vmem:[%s5 + $0x10] sm:$0xff]
    %v120 = vld [vmem:[%s5 + $0x18] sm:$0xff]
    %v121 = vld [vmem:[%s5 + $0x20] sm:$0xff]
    %v122 = vld [vmem:[%s5 + $0x28] sm:$0xff]
    %v123 = vld [vmem:[%s5 + $0x30] sm:$0xff]
    %v124 = vld [vmem:[%s5 + $0x38] sm:$0xff]
    %v125 = vpack.c.bf16 %v118, %v117
    %v126 = vpack.c.bf16 %v120, %v119
    %v127 = vpack.c.bf16 %v122, %v121
    %v128 = vpack.c.bf16 %v124, %v123
    %vm129 = vcmask 523264
    %v131 = vsel %vm129, %v113, 0
    %v134 = vsel %vm129, %v114, 0
    %v137 = vsel %vm129, %v115, 0
    %v140 = vsel %vm129, %v116, 0
    %142 = vmatprep.subr.bf16.mxu0 0
    %143 = vmatpush1.bf16.msra.mxu0 %v125
    %144 = vmatprep.subr.bf16.mxu0 0
    %145 = vmatpush1.bf16.msra.mxu0 %v126
    %146 = vmatprep.subr.bf16.mxu0 0
    %147 = vmatpush1.bf16.msra.mxu0 %v127
    %148 = vmatprep.subr.bf16.mxu0 0
    %149 = vmatpush1.bf16.msra.mxu0 %v128
    %150 = vmatprep.subr.bf16.mxu0 0
    %151 = vmatpush1.bf16.msra.mxu0 0
    %152 = vmatprep.subr.bf16.mxu0 0
    %153 = vmatpush1.bf16.msra.mxu0 0
    %154 = vmatprep.subr.bf16.mxu0 0
    %155 = vmatpush1.bf16.msra.mxu0 0
    %156 = vmatprep.subr.bf16.mxu0 0
    %157 = vmatpush1.bf16.msra.mxu0 0
    %158 = vmatprep.subr.bf16.mxu0 0
    %159 = vmatpush1.bf16.msra.mxu0 0
    %160 = vmatprep.subr.bf16.mxu0 0
    %161 = vmatpush1.bf16.msra.mxu0 0
    %162 = vmatprep.subr.bf16.mxu0 0
    %163 = vmatpush1.bf16.msra.mxu0 0
    %164 = vmatprep.subr.bf16.mxu0 0
    %165 = vmatpush1.bf16.msra.mxu0 0
    %166 = vmatprep.subr.bf16.mxu0 0
    %167 = vmatpush1.bf16.msra.mxu0 0
    %168 = vmatprep.subr.bf16.mxu0 0
    %169 = vmatpush1.bf16.msra.mxu0 0
    %170 = vmatprep.subr.bf16.mxu0 0
    %171 = vmatpush1.bf16.msra.mxu0 0
    %172 = vmatprep.subr.bf16.mxu0 0
    %173 = vmatpush1.bf16.msra.mxu0 0
    %174 = vmatprep.mubr.bf16.mxu0 0
    %175 = vmatmul.mubr.bf16.gmra.mrb[0].mxu0 %v131
    %v176 = vpop.f32.mrb[0].mxu0
    %v177 = vadd.f32 0.0, %v176
    %v178 = vpop.f32.mrb[0].mxu0
    %v179 = vpop.f32.mrb[0].mxu0
    %v180 = vadd.f32 0.0, %v179
    %v181 = vpop.f32.mrb[0].mxu0
    %182 = vmatprep.mubr.bf16.mxu0 0
    %183 = vmatmul.mubr.bf16.gmra.mrb[0].mxu0 %v134
    %v184 = vpop.f32.mrb[0].mxu0
    %v185 = vadd.f32 0.0, %v184
    %v186 = vpop.f32.mrb[0].mxu0
    %v187 = vpop.f32.mrb[0].mxu0
    %v188 = vadd.f32 0.0, %v187
    %v189 = vpop.f32.mrb[0].mxu0
    %190 = vmatprep.mubr.bf16.mxu0 0
    %191 = vmatmul.mubr.bf16.gmra.mrb[0].mxu0 %v137
    %v192 = vpop.f32.mrb[0].mxu0
    %v193 = vadd.f32 0.0, %v192
    %v194 = vpop.f32.mrb[0].mxu0
    %v195 = vpop.f32.mrb[0].mxu0
    %v196 = vadd.f32 0.0, %v195
    %v197 = vpop.f32.mrb[0].mxu0
    %198 = vmatprep.mubr.bf16.mxu0 0
    %199 = vmatmul.mubr.bf16.gmra.mrb[0].mxu0 %v140
    %v200 = vpop.f32.mrb[0].mxu0
    %v201 = vadd.f32 0.0, %v200
    %v202 = vpop.f32.mrb[0].mxu0
    %v203 = vpop.f32.mrb[0].mxu0
    %v204 = vadd.f32 0.0, %v203
    %v205 = vpop.f32.mrb[0].mxu0
    %206 = vdwg.mxu0
    %v207 = vpack.c.bf16 %v180, %v177
    %v208 = vpack.c.bf16 %v188, %v185
    %v209 = vpack.c.bf16 %v196, %v193
    %v210 = vpack.c.bf16 %v204, %v201
    %v211 = vld [vmem:[%s6] sm:$0xff]
    %v212 = vld [vmem:[%s6 + $0x8] sm:$0xff]
    %v213 = vld [vmem:[%s6 + $0x10] sm:$0xff]
    %v214 = vld [vmem:[%s6 + $0x18] sm:$0xff]
    %v215 = vpack.c.bf16 %v212, %v211
    %v216 = vpack.c.bf16 %v214, %v213
    %v217 = vld [vmem:[%s7] sm:$0x1]
    %v219 = vlaneseq
    %v220 = vshrl.u32 %v219, 7
    %v221 = vsub.s32 0, %v220
    %v222 = vrot.slane %v217, %v221
    %vm224 = vcmask 261120
    %v226 = vsel %vm224, %v207, 0
    %v229 = vsel %vm224, %v208, 0
    %v232 = vsel %vm224, %v209, 0
    %v235 = vsel %vm224, %v210, 0
    %237 = vmatprep.subr.bf16.mxu0 0
    %238 = vmatpush1.bf16.msra.mxu0 %v215
    %239 = vmatprep.subr.bf16.mxu0 0
    %240 = vmatpush1.bf16.msra.mxu0 %v216
    %241 = vmatprep.subr.bf16.mxu0 0
    %242 = vmatpush1.bf16.msra.mxu0 0
    %243 = vmatprep.subr.bf16.mxu0 0
    %244 = vmatpush1.bf16.msra.mxu0 0
    %245 = vmatprep.subr.bf16.mxu0 0
    %246 = vmatpush1.bf16.msra.mxu0 0
    %247 = vmatprep.subr.bf16.mxu0 0
    %248 = vmatpush1.bf16.msra.mxu0 0
    %249 = vmatprep.subr.bf16.mxu0 0
    %250 = vmatpush1.bf16.msra.mxu0 0
    %251 = vmatprep.subr.bf16.mxu0 0
    %252 = vmatpush1.bf16.msra.mxu0 0
    %253 = vmatprep.subr.bf16.mxu0 0
    %254 = vmatpush1.bf16.msra.mxu0 0
    %255 = vmatprep.subr.bf16.mxu0 0
    %256 = vmatpush1.bf16.msra.mxu0 0
    %257 = vmatprep.subr.bf16.mxu0 0
    %258 = vmatpush1.bf16.msra.mxu0 0
    %259 = vmatprep.subr.bf16.mxu0 0
    %260 = vmatpush1.bf16.msra.mxu0 0
    %261 = vmatprep.subr.bf16.mxu0 0
    %262 = vmatpush1.bf16.msra.mxu0 0
    %263 = vmatprep.subr.bf16.mxu0 0
    %264 = vmatpush1.bf16.msra.mxu0 0
    %265 = vmatprep.subr.bf16.mxu0 0
    %266 = vmatpush1.bf16.msra.mxu0 0
    %267 = vmatprep.subr.bf16.mxu0 0
    %268 = vmatpush1.bf16.msra.mxu0 0
    %269 = vmatprep.mubr.bf16.mxu0 0
    %270 = vmatmul.mubr.bf16.gmra.mrb[0].mxu0 %v226
    %v271 = vpop.f32.mrb[0].mxu0
    %v272 = vadd.f32 %v222, %v271
    %v273 = vpop.f32.mrb[0].mxu0
    %v274 = vpop.f32.mrb[0].mxu0
    %v275 = vadd.f32 %v222, %v274
    %v276 = vpop.f32.mrb[0].mxu0
    %277 = vmatprep.mubr.bf16.mxu0 0
    %278 = vmatmul.mubr.bf16.gmra.mrb[0].mxu0 %v229
    %v279 = vpop.f32.mrb[0].mxu0
    %v280 = vadd.f32 %v222, %v279
    %v281 = vpop.f32.mrb[0].mxu0
    %v282 = vpop.f32.mrb[0].mxu0
    %v283 = vadd.f32 %v222, %v282
    %v284 = vpop.f32.mrb[0].mxu0
    %285 = vmatprep.mubr.bf16.mxu0 0
    %286 = vmatmul.mubr.bf16.gmra.mrb[0].mxu0 %v232
    %v287 = vpop.f32.mrb[0].mxu0
    %v288 = vadd.f32 %v222, %v287
    %v289 = vpop.f32.mrb[0].mxu0
    %v290 = vpop.f32.mrb[0].mxu0
    %v291 = vadd.f32 %v222, %v290
    %v292 = vpop.f32.mrb[0].mxu0
    %293 = vmatprep.mubr.bf16.mxu0 0
    %294 = vmatmul.mubr.bf16.gmra.mrb[0].mxu0 %v235
    %v295 = vpop.f32.mrb[0].mxu0
    %v296 = vadd.f32 %v222, %v295
    %v297 = vpop.f32.mrb[0].mxu0
    %v298 = vpop.f32.mrb[0].mxu0
    %v299 = vadd.f32 %v222, %v298
    %v300 = vpop.f32.mrb[0].mxu0
    %301 = vdwg.mxu0
    %v302 = vmul.f32 %v272, %v64
    %v303 = vmul.f32 %v275, %v64
    %v304 = vmul.f32 %v280, %v64
    %v305 = vmul.f32 %v283, %v64
    %v306 = vmul.f32 %v288, %v64
    %v307 = vmul.f32 %v291, %v64
    %v308 = vmul.f32 %v296, %v64
    %v309 = vmul.f32 %v299, %v64
    %v310 = vld [vmem:[%s8] sm:$0xff]
    %v311 = vld [vmem:[%s8 + $0x8] sm:$0xff]
    %v312 = vld [vmem:[%s8 + $0x10] sm:$0xff]
    %v313 = vld [vmem:[%s8 + $0x18] sm:$0xff]
    %v314 = vmul.f32 %v310, %v64
    %v315 = vmul.f32 %v311, %v64
    %v316 = vmul.f32 %v312, %v64
    %v317 = vmul.f32 %v313, %v64
    %v318 = vpack.c.bf16 %v315, %v314
    %v319 = vpack.c.bf16 %v317, %v316
    %v320 = vld [vmem:[%s1] sm:$0xff]
    %v321 = vld [vmem:[%s1 + $0x8] sm:$0xff]
    %v322 = vld [vmem:[%s1 + $0x10] sm:$0xff]
    %v323 = vld [vmem:[%s1 + $0x18] sm:$0xff]
    %v324 = vld [vmem:[%s1 + $0x20] sm:$0xff]
    %v325 = vld [vmem:[%s1 + $0x28] sm:$0xff]
    %v326 = vld [vmem:[%s1 + $0x30] sm:$0xff]
    %v327 = vld [vmem:[%s1 + $0x38] sm:$0xff]
    %329 = vset.pattern.permute.xlu0 0
    %330 = vperm.xlu0 %329, %v320
    %v331 = vpop.permute.xlu0 %330
    %v334 = vsel %vm224, 0, 0
    %336 = vmatprep.subr.bf16.mxu0 0
    %337 = vmatpush1.bf16.msra.mxu0 %v318
    %338 = vmatprep.subr.bf16.mxu0 0
    %339 = vmatpush1.bf16.msra.mxu0 %v319
    %340 = vmatprep.subr.bf16.mxu0 0
    %341 = vmatpush1.bf16.msra.mxu0 0
    %342 = vmatprep.subr.bf16.mxu0 0
    %343 = vmatpush1.bf16.msra.mxu0 0
    %344 = vmatprep.subr.bf16.mxu0 0
    %345 = vmatpush1.bf16.msra.mxu0 0
    %346 = vmatprep.subr.bf16.mxu0 0
    %347 = vmatpush1.bf16.msra.mxu0 0
    %348 = vmatprep.subr.bf16.mxu0 0
    %349 = vmatpush1.bf16.msra.mxu0 0
    %350 = vmatprep.subr.bf16.mxu0 0
    %351 = vmatpush1.bf16.msra.mxu0 0
    %352 = vmatprep.subr.bf16.mxu0 0
    %353 = vmatpush1.bf16.msra.mxu0 0
    %354 = vmatprep.subr.bf16.mxu0 0
    %355 = vmatpush1.bf16.msra.mxu0 0
    %356 = vmatprep.subr.bf16.mxu0 0
    %357 = vmatpush1.bf16.msra.mxu0 0
    %358 = vmatprep.subr.bf16.mxu0 0
    %359 = vmatpush1.bf16.msra.mxu0 0
    %360 = vmatprep.subr.bf16.mxu0 0
    %361 = vmatpush1.bf16.msra.mxu0 0
    %362 = vmatprep.subr.bf16.mxu0 0
    %363 = vmatpush1.bf16.msra.mxu0 0
    %364 = vmatprep.subr.bf16.mxu0 0
    %365 = vmatpush1.bf16.msra.mxu0 0
    %366 = vmatprep.subr.bf16.mxu0 0
    %367 = vmatpush1.bf16.msra.mxu0 0
    %368 = vmatprep.mubr.bf16.mxu0 0
    %369 = vmatmul.mubr.bf16.gmra.mrb[0].mxu0 %v334
    %v370 = vpop.f32.mrb[0].mxu0
    %v371 = vadd.f32 0.0, %v370
    %v372 = vpop.f32.mrb[0].mxu0
    %v373 = vpop.f32.mrb[0].mxu0
    %v374 = vpop.f32.mrb[0].mxu0
    %375 = vdwg.mxu0
    %v376 = vadd.f32 %v302, %v371
    %v377 = vtanh.pop %v376
    %v378 = vmul.f32 %v377, 0.5
    %v379 = vadd.f32 %v378, 0.5
    %381 = vrot.lane.b32.xlu0 %v377, 32
    %v382 = vpop.permute.xlu0 %381
    %v384 = vmul.f32 %v379, %v382
    %v385 = vmul.f32 %v379, 0.0
    %387 = vrot.lane.b32.xlu0 %v385, 96
    %v388 = vpop.permute.xlu0 %387
    %v390 = vadd.f32 %v384, %v388
    %v391 = vtanh.pop %v390
    %393 = vrot.lane.b32.xlu0 %v391, 64
    %v394 = vpop.permute.xlu0 %393
    %v396 = vmul.f32 %v379, %v394
    %v397 = vmul.f32 %v331, %v396
    %v398 = vadd.f32 %v397, 0.0
    %v399 = vmul.f32 %v331, %v390
    %v400 = vadd.f32 %v399, 0.0
    %402 = vset.pattern.permute.xlu0 0
    %403 = vperm.xlu0 %402, %v321
    %v404 = vpop.permute.xlu0 %403
    %v406 = vpack.c.bf16 %v398, %v398
    %408 = vrot.lane.b32.xlu0 %v406, 32
    %v409 = vpop.permute.xlu0 %408
    %v411 = vsel %vm224, %v409, 0
    %413 = vmatprep.subr.bf16.mxu0 0
    %414 = vmatpush1.bf16.msra.mxu0 %v318
    %415 = vmatprep.subr.bf16.mxu0 0
    %416 = vmatpush1.bf16.msra.mxu0 %v319
    %417 = vmatprep.subr.bf16.mxu0 0
    %418 = vmatpush1.bf16.msra.mxu0 0
    %419 = vmatprep.subr.bf16.mxu0 0
    %420 = vmatpush1.bf16.msra.mxu0 0
    %421 = vmatprep.subr.bf16.mxu0 0
    %422 = vmatpush1.bf16.msra.mxu0 0
    %423 = vmatprep.subr.bf16.mxu0 0
    %424 = vmatpush1.bf16.msra.mxu0 0
    %425 = vmatprep.subr.bf16.mxu0 0
    %426 = vmatpush1.bf16.msra.mxu0 0
    %427 = vmatprep.subr.bf16.mxu0 0
    %428 = vmatpush1.bf16.msra.mxu0 0
    %429 = vmatprep.subr.bf16.mxu0 0
    %430 = vmatpush1.bf16.msra.mxu0 0
    %431 = vmatprep.subr.bf16.mxu0 0
    %432 = vmatpush1.bf16.msra.mxu0 0
    %433 = vmatprep.subr.bf16.mxu0 0
    %434 = vmatpush1.bf16.msra.mxu0 0
    %435 = vmatprep.subr.bf16.mxu0 0
    %436 = vmatpush1.bf16.msra.mxu0 0
    %437 = vmatprep.subr.bf16.mxu0 0
    %438 = vmatpush1.bf16.msra.mxu0 0
    %439 = vmatprep.subr.bf16.mxu0 0
    %440 = vmatpush1.bf16.msra.mxu0 0
    %441 = vmatprep.subr.bf16.mxu0 0
    %442 = vmatpush1.bf16.msra.mxu0 0
    %443 = vmatprep.subr.bf16.mxu0 0
    %444 = vmatpush1.bf16.msra.mxu0 0
    %445 = vmatprep.mubr.bf16.mxu0 0
    %446 = vmatmul.mubr.bf16.gmra.mrb[0].mxu0 %v411
    %v447 = vpop.f32.mrb[0].mxu0
    %v448 = vadd.f32 0.0, %v447
    %v449 = vpop.f32.mrb[0].mxu0
    %v450 = vpop.f32.mrb[0].mxu0
    %v451 = vpop.f32.mrb[0].mxu0
    %452 = vdwg.mxu0
    %v453 = vadd.f32 %v303, %v448
    %v454 = vtanh.pop %v453
    %v455 = vmul.f32 %v454, 0.5
    %v456 = vadd.f32 %v455, 0.5
    %458 = vrot.lane.b32.xlu0 %v454, 32
    %v459 = vpop.permute.xlu0 %458
    %v461 = vmul.f32 %v456, %v459
    %463 = vrot.lane.b32.xlu0 %v400, 32
    %v464 = vpop.permute.xlu0 %463
    %v466 = vmul.f32 %v456, %v464
    %468 = vrot.lane.b32.xlu0 %v466, 96
    %v469 = vpop.permute.xlu0 %468
    %v471 = vadd.f32 %v461, %v469
    %v472 = vtanh.pop %v471
    %474 = vrot.lane.b32.xlu0 %v472, 64
    %v475 = vpop.permute.xlu0 %474
    %v477 = vmul.f32 %v456, %v475
    %v478 = vsub.f32 %v477, %v398
    %v479 = vmul.f32 %v404, %v478
    %v480 = vadd.f32 %v398, %v479
    %v481 = vsub.f32 %v471, %v400
    %v482 = vmul.f32 %v404, %v481
    %v483 = vadd.f32 %v400, %v482
    %485 = vset.pattern.permute.xlu0 0
    %486 = vperm.xlu0 %485, %v322
    %v487 = vpop.permute.xlu0 %486
    %v489 = vpack.c.bf16 %v480, %v480
    %491 = vrot.lane.b32.xlu0 %v489, 32
    %v492 = vpop.permute.xlu0 %491
    %v494 = vsel %vm224, %v492, 0
    %496 = vmatprep.subr.bf16.mxu0 0
    %497 = vmatpush1.bf16.msra.mxu0 %v318
    %498 = vmatprep.subr.bf16.mxu0 0
    %499 = vmatpush1.bf16.msra.mxu0 %v319
    %500 = vmatprep.subr.bf16.mxu0 0
    %501 = vmatpush1.bf16.msra.mxu0 0
    %502 = vmatprep.subr.bf16.mxu0 0
    %503 = vmatpush1.bf16.msra.mxu0 0
    %504 = vmatprep.subr.bf16.mxu0 0
    %505 = vmatpush1.bf16.msra.mxu0 0
    %506 = vmatprep.subr.bf16.mxu0 0
    %507 = vmatpush1.bf16.msra.mxu0 0
    %508 = vmatprep.subr.bf16.mxu0 0
    %509 = vmatpush1.bf16.msra.mxu0 0
    %510 = vmatprep.subr.bf16.mxu0 0
    %511 = vmatpush1.bf16.msra.mxu0 0
    %512 = vmatprep.subr.bf16.mxu0 0
    %513 = vmatpush1.bf16.msra.mxu0 0
    %514 = vmatprep.subr.bf16.mxu0 0
    %515 = vmatpush1.bf16.msra.mxu0 0
    %516 = vmatprep.subr.bf16.mxu0 0
    %517 = vmatpush1.bf16.msra.mxu0 0
    %518 = vmatprep.subr.bf16.mxu0 0
    %519 = vmatpush1.bf16.msra.mxu0 0
    %520 = vmatprep.subr.bf16.mxu0 0
    %521 = vmatpush1.bf16.msra.mxu0 0
    %522 = vmatprep.subr.bf16.mxu0 0
    %523 = vmatpush1.bf16.msra.mxu0 0
    %524 = vmatprep.subr.bf16.mxu0 0
    %525 = vmatpush1.bf16.msra.mxu0 0
    %526 = vmatprep.subr.bf16.mxu0 0
    %527 = vmatpush1.bf16.msra.mxu0 0
    %528 = vmatprep.mubr.bf16.mxu0 0
    %529 = vmatmul.mubr.bf16.gmra.mrb[0].mxu0 %v494
    %v530 = vpop.f32.mrb[0].mxu0
    %v531 = vadd.f32 0.0, %v530
    %v532 = vpop.f32.mrb[0].mxu0
    %v533 = vpop.f32.mrb[0].mxu0
    %v534 = vpop.f32.mrb[0].mxu0
    %535 = vdwg.mxu0
    %v536 = vadd.f32 %v304, %v531
    %v537 = vtanh.pop %v536
    %v538 = vmul.f32 %v537, 0.5
    %v539 = vadd.f32 %v538, 0.5
    %541 = vrot.lane.b32.xlu0 %v537, 32
    %v542 = vpop.permute.xlu0 %541
    %v544 = vmul.f32 %v539, %v542
    %546 = vrot.lane.b32.xlu0 %v483, 32
    %v547 = vpop.permute.xlu0 %546
    %v549 = vmul.f32 %v539, %v547
    %551 = vrot.lane.b32.xlu0 %v549, 96
    %v552 = vpop.permute.xlu0 %551
    %v554 = vadd.f32 %v544, %v552
    %v555 = vtanh.pop %v554
    %557 = vrot.lane.b32.xlu0 %v555, 64
    %v558 = vpop.permute.xlu0 %557
    %v560 = vmul.f32 %v539, %v558
    %v561 = vsub.f32 %v560, %v480
    %v562 = vmul.f32 %v487, %v561
    %v563 = vadd.f32 %v480, %v562
    %v564 = vsub.f32 %v554, %v483
    %v565 = vmul.f32 %v487, %v564
    %v566 = vadd.f32 %v483, %v565
    %568 = vset.pattern.permute.xlu0 0
    %569 = vperm.xlu0 %568, %v323
    %v570 = vpop.permute.xlu0 %569
    %v572 = vpack.c.bf16 %v563, %v563
    %574 = vrot.lane.b32.xlu0 %v572, 32
    %v575 = vpop.permute.xlu0 %574
    %v577 = vsel %vm224, %v575, 0
    %579 = vmatprep.subr.bf16.mxu0 0
    %580 = vmatpush1.bf16.msra.mxu0 %v318
    %581 = vmatprep.subr.bf16.mxu0 0
    %582 = vmatpush1.bf16.msra.mxu0 %v319
    %583 = vmatprep.subr.bf16.mxu0 0
    %584 = vmatpush1.bf16.msra.mxu0 0
    %585 = vmatprep.subr.bf16.mxu0 0
    %586 = vmatpush1.bf16.msra.mxu0 0
    %587 = vmatprep.subr.bf16.mxu0 0
    %588 = vmatpush1.bf16.msra.mxu0 0
    %589 = vmatprep.subr.bf16.mxu0 0
    %590 = vmatpush1.bf16.msra.mxu0 0
    %591 = vmatprep.subr.bf16.mxu0 0
    %592 = vmatpush1.bf16.msra.mxu0 0
    %593 = vmatprep.subr.bf16.mxu0 0
    %594 = vmatpush1.bf16.msra.mxu0 0
    %595 = vmatprep.subr.bf16.mxu0 0
    %596 = vmatpush1.bf16.msra.mxu0 0
    %597 = vmatprep.subr.bf16.mxu0 0
    %598 = vmatpush1.bf16.msra.mxu0 0
    %599 = vmatprep.subr.bf16.mxu0 0
    %600 = vmatpush1.bf16.msra.mxu0 0
    %601 = vmatprep.subr.bf16.mxu0 0
    %602 = vmatpush1.bf16.msra.mxu0 0
    %603 = vmatprep.subr.bf16.mxu0 0
    %604 = vmatpush1.bf16.msra.mxu0 0
    %605 = vmatprep.subr.bf16.mxu0 0
    %606 = vmatpush1.bf16.msra.mxu0 0
    %607 = vmatprep.subr.bf16.mxu0 0
    %608 = vmatpush1.bf16.msra.mxu0 0
    %609 = vmatprep.subr.bf16.mxu0 0
    %610 = vmatpush1.bf16.msra.mxu0 0
    %611 = vmatprep.mubr.bf16.mxu0 0
    %612 = vmatmul.mubr.bf16.gmra.mrb[0].mxu0 %v577
    %v613 = vpop.f32.mrb[0].mxu0
    %v614 = vadd.f32 0.0, %v613
    %v615 = vpop.f32.mrb[0].mxu0
    %v616 = vpop.f32.mrb[0].mxu0
    %v617 = vpop.f32.mrb[0].mxu0
    %618 = vdwg.mxu0
    %v619 = vadd.f32 %v305, %v614
    %v620 = vtanh.pop %v619
    %v621 = vmul.f32 %v620, 0.5
    %v622 = vadd.f32 %v621, 0.5
    %624 = vrot.lane.b32.xlu0 %v620, 32
    %v625 = vpop.permute.xlu0 %624
    %v627 = vmul.f32 %v622, %v625
    %629 = vrot.lane.b32.xlu0 %v566, 32
    %v630 = vpop.permute.xlu0 %629
    %v632 = vmul.f32 %v622, %v630
    %634 = vrot.lane.b32.xlu0 %v632, 96
    %v635 = vpop.permute.xlu0 %634
    %v637 = vadd.f32 %v627, %v635
    %v638 = vtanh.pop %v637
    %640 = vrot.lane.b32.xlu0 %v638, 64
    %v641 = vpop.permute.xlu0 %640
    %v643 = vmul.f32 %v622, %v641
    %v644 = vsub.f32 %v643, %v563
    %v645 = vmul.f32 %v570, %v644
    %v646 = vadd.f32 %v563, %v645
    %v647 = vsub.f32 %v637, %v566
    %v648 = vmul.f32 %v570, %v647
    %v649 = vadd.f32 %v566, %v648
    %651 = vset.pattern.permute.xlu0 0
    %652 = vperm.xlu0 %651, %v324
    %v653 = vpop.permute.xlu0 %652
    %v655 = vpack.c.bf16 %v646, %v646
    %657 = vrot.lane.b32.xlu0 %v655, 32
    %v658 = vpop.permute.xlu0 %657
    %v660 = vsel %vm224, %v658, 0
    %662 = vmatprep.subr.bf16.mxu0 0
    %663 = vmatpush1.bf16.msra.mxu0 %v318
    %664 = vmatprep.subr.bf16.mxu0 0
    %665 = vmatpush1.bf16.msra.mxu0 %v319
    %666 = vmatprep.subr.bf16.mxu0 0
    %667 = vmatpush1.bf16.msra.mxu0 0
    %668 = vmatprep.subr.bf16.mxu0 0
    %669 = vmatpush1.bf16.msra.mxu0 0
    %670 = vmatprep.subr.bf16.mxu0 0
    %671 = vmatpush1.bf16.msra.mxu0 0
    %672 = vmatprep.subr.bf16.mxu0 0
    %673 = vmatpush1.bf16.msra.mxu0 0
    %674 = vmatprep.subr.bf16.mxu0 0
    %675 = vmatpush1.bf16.msra.mxu0 0
    %676 = vmatprep.subr.bf16.mxu0 0
    %677 = vmatpush1.bf16.msra.mxu0 0
    %678 = vmatprep.subr.bf16.mxu0 0
    %679 = vmatpush1.bf16.msra.mxu0 0
    %680 = vmatprep.subr.bf16.mxu0 0
    %681 = vmatpush1.bf16.msra.mxu0 0
    %682 = vmatprep.subr.bf16.mxu0 0
    %683 = vmatpush1.bf16.msra.mxu0 0
    %684 = vmatprep.subr.bf16.mxu0 0
    %685 = vmatpush1.bf16.msra.mxu0 0
    %686 = vmatprep.subr.bf16.mxu0 0
    %687 = vmatpush1.bf16.msra.mxu0 0
    %688 = vmatprep.subr.bf16.mxu0 0
    %689 = vmatpush1.bf16.msra.mxu0 0
    %690 = vmatprep.subr.bf16.mxu0 0
    %691 = vmatpush1.bf16.msra.mxu0 0
    %692 = vmatprep.subr.bf16.mxu0 0
    %693 = vmatpush1.bf16.msra.mxu0 0
    %694 = vmatprep.mubr.bf16.mxu0 0
    %695 = vmatmul.mubr.bf16.gmra.mrb[0].mxu0 %v660
    %v696 = vpop.f32.mrb[0].mxu0
    %v697 = vadd.f32 0.0, %v696
    %v698 = vpop.f32.mrb[0].mxu0
    %v699 = vpop.f32.mrb[0].mxu0
    %v700 = vpop.f32.mrb[0].mxu0
    %701 = vdwg.mxu0
    %v702 = vadd.f32 %v306, %v697
    %v703 = vtanh.pop %v702
    %v704 = vmul.f32 %v703, 0.5
    %v705 = vadd.f32 %v704, 0.5
    %707 = vrot.lane.b32.xlu0 %v703, 32
    %v708 = vpop.permute.xlu0 %707
    %v710 = vmul.f32 %v705, %v708
    %712 = vrot.lane.b32.xlu0 %v649, 32
    %v713 = vpop.permute.xlu0 %712
    %v715 = vmul.f32 %v705, %v713
    %717 = vrot.lane.b32.xlu0 %v715, 96
    %v718 = vpop.permute.xlu0 %717
    %v720 = vadd.f32 %v710, %v718
    %v721 = vtanh.pop %v720
    %723 = vrot.lane.b32.xlu0 %v721, 64
    %v724 = vpop.permute.xlu0 %723
    %v726 = vmul.f32 %v705, %v724
    %v727 = vsub.f32 %v726, %v646
    %v728 = vmul.f32 %v653, %v727
    %v729 = vadd.f32 %v646, %v728
    %v730 = vsub.f32 %v720, %v649
    %v731 = vmul.f32 %v653, %v730
    %v732 = vadd.f32 %v649, %v731
    %734 = vset.pattern.permute.xlu0 0
    %735 = vperm.xlu0 %734, %v325
    %v736 = vpop.permute.xlu0 %735
    %v738 = vpack.c.bf16 %v729, %v729
    %740 = vrot.lane.b32.xlu0 %v738, 32
    %v741 = vpop.permute.xlu0 %740
    %v743 = vsel %vm224, %v741, 0
    %745 = vmatprep.subr.bf16.mxu0 0
    %746 = vmatpush1.bf16.msra.mxu0 %v318
    %747 = vmatprep.subr.bf16.mxu0 0
    %748 = vmatpush1.bf16.msra.mxu0 %v319
    %749 = vmatprep.subr.bf16.mxu0 0
    %750 = vmatpush1.bf16.msra.mxu0 0
    %751 = vmatprep.subr.bf16.mxu0 0
    %752 = vmatpush1.bf16.msra.mxu0 0
    %753 = vmatprep.subr.bf16.mxu0 0
    %754 = vmatpush1.bf16.msra.mxu0 0
    %755 = vmatprep.subr.bf16.mxu0 0
    %756 = vmatpush1.bf16.msra.mxu0 0
    %757 = vmatprep.subr.bf16.mxu0 0
    %758 = vmatpush1.bf16.msra.mxu0 0
    %759 = vmatprep.subr.bf16.mxu0 0
    %760 = vmatpush1.bf16.msra.mxu0 0
    %761 = vmatprep.subr.bf16.mxu0 0
    %762 = vmatpush1.bf16.msra.mxu0 0
    %763 = vmatprep.subr.bf16.mxu0 0
    %764 = vmatpush1.bf16.msra.mxu0 0
    %765 = vmatprep.subr.bf16.mxu0 0
    %766 = vmatpush1.bf16.msra.mxu0 0
    %767 = vmatprep.subr.bf16.mxu0 0
    %768 = vmatpush1.bf16.msra.mxu0 0
    %769 = vmatprep.subr.bf16.mxu0 0
    %770 = vmatpush1.bf16.msra.mxu0 0
    %771 = vmatprep.subr.bf16.mxu0 0
    %772 = vmatpush1.bf16.msra.mxu0 0
    %773 = vmatprep.subr.bf16.mxu0 0
    %774 = vmatpush1.bf16.msra.mxu0 0
    %775 = vmatprep.subr.bf16.mxu0 0
    %776 = vmatpush1.bf16.msra.mxu0 0
    %777 = vmatprep.mubr.bf16.mxu0 0
    %778 = vmatmul.mubr.bf16.gmra.mrb[0].mxu0 %v743
    %v779 = vpop.f32.mrb[0].mxu0
    %v780 = vadd.f32 0.0, %v779
    %v781 = vpop.f32.mrb[0].mxu0
    %v782 = vpop.f32.mrb[0].mxu0
    %v783 = vpop.f32.mrb[0].mxu0
    %784 = vdwg.mxu0
    %v785 = vadd.f32 %v307, %v780
    %v786 = vtanh.pop %v785
    %v787 = vmul.f32 %v786, 0.5
    %v788 = vadd.f32 %v787, 0.5
    %790 = vrot.lane.b32.xlu0 %v786, 32
    %v791 = vpop.permute.xlu0 %790
    %v793 = vmul.f32 %v788, %v791
    %795 = vrot.lane.b32.xlu0 %v732, 32
    %v796 = vpop.permute.xlu0 %795
    %v798 = vmul.f32 %v788, %v796
    %800 = vrot.lane.b32.xlu0 %v798, 96
    %v801 = vpop.permute.xlu0 %800
    %v803 = vadd.f32 %v793, %v801
    %v804 = vtanh.pop %v803
    %806 = vrot.lane.b32.xlu0 %v804, 64
    %v807 = vpop.permute.xlu0 %806
    %v809 = vmul.f32 %v788, %v807
    %v810 = vsub.f32 %v809, %v729
    %v811 = vmul.f32 %v736, %v810
    %v812 = vadd.f32 %v729, %v811
    %v813 = vsub.f32 %v803, %v732
    %v814 = vmul.f32 %v736, %v813
    %v815 = vadd.f32 %v732, %v814
    %817 = vset.pattern.permute.xlu0 0
    %818 = vperm.xlu0 %817, %v326
    %v819 = vpop.permute.xlu0 %818
    %v821 = vpack.c.bf16 %v812, %v812
    %823 = vrot.lane.b32.xlu0 %v821, 32
    %v824 = vpop.permute.xlu0 %823
    %v826 = vsel %vm224, %v824, 0
    %828 = vmatprep.subr.bf16.mxu0 0
    %829 = vmatpush1.bf16.msra.mxu0 %v318
    %830 = vmatprep.subr.bf16.mxu0 0
    %831 = vmatpush1.bf16.msra.mxu0 %v319
    %832 = vmatprep.subr.bf16.mxu0 0
    %833 = vmatpush1.bf16.msra.mxu0 0
    %834 = vmatprep.subr.bf16.mxu0 0
    %835 = vmatpush1.bf16.msra.mxu0 0
    %836 = vmatprep.subr.bf16.mxu0 0
    %837 = vmatpush1.bf16.msra.mxu0 0
    %838 = vmatprep.subr.bf16.mxu0 0
    %839 = vmatpush1.bf16.msra.mxu0 0
    %840 = vmatprep.subr.bf16.mxu0 0
    %841 = vmatpush1.bf16.msra.mxu0 0
    %842 = vmatprep.subr.bf16.mxu0 0
    %843 = vmatpush1.bf16.msra.mxu0 0
    %844 = vmatprep.subr.bf16.mxu0 0
    %845 = vmatpush1.bf16.msra.mxu0 0
    %846 = vmatprep.subr.bf16.mxu0 0
    %847 = vmatpush1.bf16.msra.mxu0 0
    %848 = vmatprep.subr.bf16.mxu0 0
    %849 = vmatpush1.bf16.msra.mxu0 0
    %850 = vmatprep.subr.bf16.mxu0 0
    %851 = vmatpush1.bf16.msra.mxu0 0
    %852 = vmatprep.subr.bf16.mxu0 0
    %853 = vmatpush1.bf16.msra.mxu0 0
    %854 = vmatprep.subr.bf16.mxu0 0
    %855 = vmatpush1.bf16.msra.mxu0 0
    %856 = vmatprep.subr.bf16.mxu0 0
    %857 = vmatpush1.bf16.msra.mxu0 0
    %858 = vmatprep.subr.bf16.mxu0 0
    %859 = vmatpush1.bf16.msra.mxu0 0
    %860 = vmatprep.mubr.bf16.mxu0 0
    %861 = vmatmul.mubr.bf16.gmra.mrb[0].mxu0 %v826
    %v862 = vpop.f32.mrb[0].mxu0
    %v863 = vadd.f32 0.0, %v862
    %v864 = vpop.f32.mrb[0].mxu0
    %v865 = vpop.f32.mrb[0].mxu0
    %v866 = vpop.f32.mrb[0].mxu0
    %867 = vdwg.mxu0
    %v868 = vadd.f32 %v308, %v863
    %v869 = vtanh.pop %v868
    %v870 = vmul.f32 %v869, 0.5
    %v871 = vadd.f32 %v870, 0.5
    %873 = vrot.lane.b32.xlu0 %v869, 32
    %v874 = vpop.permute.xlu0 %873
    %v876 = vmul.f32 %v871, %v874
    %878 = vrot.lane.b32.xlu0 %v815, 32
    %v879 = vpop.permute.xlu0 %878
    %v881 = vmul.f32 %v871, %v879
    %883 = vrot.lane.b32.xlu0 %v881, 96
    %v884 = vpop.permute.xlu0 %883
    %v886 = vadd.f32 %v876, %v884
    %v887 = vtanh.pop %v886
    %889 = vrot.lane.b32.xlu0 %v887, 64
    %v890 = vpop.permute.xlu0 %889
    %v892 = vmul.f32 %v871, %v890
    %v893 = vsub.f32 %v892, %v812
    %v894 = vmul.f32 %v819, %v893
    %v895 = vadd.f32 %v812, %v894
    %v896 = vsub.f32 %v886, %v815
    %v897 = vmul.f32 %v819, %v896
    %v898 = vadd.f32 %v815, %v897
    %900 = vset.pattern.permute.xlu0 0
    %901 = vperm.xlu0 %900, %v327
    %v902 = vpop.permute.xlu0 %901
    %v904 = vpack.c.bf16 %v895, %v895
    %906 = vrot.lane.b32.xlu0 %v904, 32
    %v907 = vpop.permute.xlu0 %906
    %v909 = vsel %vm224, %v907, 0
    %911 = vmatprep.subr.bf16.mxu0 0
    %912 = vmatpush1.bf16.msra.mxu0 %v318
    %913 = vmatprep.subr.bf16.mxu0 0
    %914 = vmatpush1.bf16.msra.mxu0 %v319
    %915 = vmatprep.subr.bf16.mxu0 0
    %916 = vmatpush1.bf16.msra.mxu0 0
    %917 = vmatprep.subr.bf16.mxu0 0
    %918 = vmatpush1.bf16.msra.mxu0 0
    %919 = vmatprep.subr.bf16.mxu0 0
    %920 = vmatpush1.bf16.msra.mxu0 0
    %921 = vmatprep.subr.bf16.mxu0 0
    %922 = vmatpush1.bf16.msra.mxu0 0
    %923 = vmatprep.subr.bf16.mxu0 0
    %924 = vmatpush1.bf16.msra.mxu0 0
    %925 = vmatprep.subr.bf16.mxu0 0
    %926 = vmatpush1.bf16.msra.mxu0 0
    %927 = vmatprep.subr.bf16.mxu0 0
    %928 = vmatpush1.bf16.msra.mxu0 0
    %929 = vmatprep.subr.bf16.mxu0 0
    %930 = vmatpush1.bf16.msra.mxu0 0
    %931 = vmatprep.subr.bf16.mxu0 0
    %932 = vmatpush1.bf16.msra.mxu0 0
    %933 = vmatprep.subr.bf16.mxu0 0
    %934 = vmatpush1.bf16.msra.mxu0 0
    %935 = vmatprep.subr.bf16.mxu0 0
    %936 = vmatpush1.bf16.msra.mxu0 0
    %937 = vmatprep.subr.bf16.mxu0 0
    %938 = vmatpush1.bf16.msra.mxu0 0
    %939 = vmatprep.subr.bf16.mxu0 0
    %940 = vmatpush1.bf16.msra.mxu0 0
    %941 = vmatprep.subr.bf16.mxu0 0
    %942 = vmatpush1.bf16.msra.mxu0 0
    %943 = vmatprep.mubr.bf16.mxu0 0
    %944 = vmatmul.mubr.bf16.gmra.mrb[0].mxu0 %v909
    %v945 = vpop.f32.mrb[0].mxu0
    %v946 = vadd.f32 0.0, %v945
    %v947 = vpop.f32.mrb[0].mxu0
    %v948 = vpop.f32.mrb[0].mxu0
    %v949 = vpop.f32.mrb[0].mxu0
    %950 = vdwg.mxu0
    %v951 = vadd.f32 %v309, %v946
    %v952 = vtanh.pop %v951
    %v953 = vmul.f32 %v952, 0.5
    %v954 = vadd.f32 %v953, 0.5
    %956 = vrot.lane.b32.xlu0 %v952, 32
    %v957 = vpop.permute.xlu0 %956
    %v959 = vmul.f32 %v954, %v957
    %961 = vrot.lane.b32.xlu0 %v898, 32
    %v962 = vpop.permute.xlu0 %961
    %v964 = vmul.f32 %v954, %v962
    %966 = vrot.lane.b32.xlu0 %v964, 96
    %v967 = vpop.permute.xlu0 %966
    %v969 = vadd.f32 %v959, %v967
    %v970 = vtanh.pop %v969
    %972 = vrot.lane.b32.xlu0 %v970, 64
    %v973 = vpop.permute.xlu0 %972
    %v975 = vmul.f32 %v954, %v973
    %v976 = vsub.f32 %v975, %v895
    %v977 = vmul.f32 %v902, %v976
    %v978 = vadd.f32 %v895, %v977
    %v980 = vrot.slane %v480, 4
    %v983 = vrot.slane %v646, 4
    %v986 = vrot.slane %v812, 4
    %v989 = vrot.slane %v978, 4
    %vm991 = vcmask 1043456
    %v992 = vsel %vm991, %v398, %v980
    %v993 = vsel %vm991, %v563, %v983
    %v994 = vsel %vm991, %v729, %v986
    %v995 = vsel %vm991, %v895, %v989
    %v996 = vsel %vm991, %v989, %v895
    %v997 = vsel %vm991, %v986, %v729
    %v998 = vsel %vm991, %v983, %v563
    %v999 = vsel %vm991, %v980, %v398
    %v1000 = vld [vmem:[%s3] sm:$0xff]
    %v1001 = vld [vmem:[%s3 + $0x8] sm:$0xff]
    %v1002 = vld [vmem:[%s3 + $0x10] sm:$0xff]
    %v1003 = vld [vmem:[%s3 + $0x18] sm:$0xff]
    %1005 = vset.pattern.permute.xlu0 0
    %1006 = vperm.xlu0 %1005, %v1000
    %v1007 = vpop.permute.xlu0 %1006
    %1010 = vset.pattern.permute.xlu0 0
    %1011 = vperm.xlu0 %1010, %v1001
    %v1012 = vpop.permute.xlu0 %1011
    %1015 = vset.pattern.permute.xlu0 0
    %1016 = vperm.xlu0 %1015, %v1002
    %v1017 = vpop.permute.xlu0 %1016
    %1020 = vset.pattern.permute.xlu0 0
    %1021 = vperm.xlu0 %1020, %v1003
    %v1022 = vpop.permute.xlu0 %1021
    %v1024 = vmul.f32 %v992, %v1007
    %v1025 = vmul.f32 %v993, %v1012
    %v1026 = vmul.f32 %v994, %v1017
    %v1027 = vmul.f32 %v995, %v1022
    %v1028 = vmul.f32 %v996, %v1007
    %v1029 = vmul.f32 %v997, %v1012
    %v1030 = vmul.f32 %v998, %v1017
    %v1031 = vmul.f32 %v999, %v1022
    %v1032 = vpack.c.bf16 %v1025, %v1024
    %v1033 = vpack.c.bf16 %v1027, %v1026
    %v1034 = vpack.c.bf16 %v1029, %v1028
    %v1035 = vpack.c.bf16 %v1031, %v1030
    %1038 = vrot.lane.b32.xlu0 %v1034, 32
    %v1039 = vpop.permute.xlu0 %1038
    %1040 = vrot.lane.b32.xlu0 %v1035, 32
    %v1041 = vpop.permute.xlu0 %1040
    %v1043 = vsel %vm224, %v1039, 0
    %v1046 = vsel %vm224, %v1041, 0
    %1048 = vmatprep.subr.bf16.mxu0 0
    %1049 = vmatpush1.bf16.xpose.msra.mxu0 %v1043
    %1050 = vmatprep.subr.bf16.mxu0 0
    %1051 = vmatpush1.bf16.xpose.msra.mxu0 %v1046
    %1052 = vmatprep.subr.bf16.mxu0 0
    %1053 = vmatpush1.bf16.xpose.msra.mxu0 0
    %1054 = vmatprep.subr.bf16.mxu0 0
    %1055 = vmatpush1.bf16.xpose.msra.mxu0 0
    %1056 = vmatprep.subr.bf16.mxu0 0
    %1057 = vmatpush1.bf16.xpose.msra.mxu0 0
    %1058 = vmatprep.subr.bf16.mxu0 0
    %1059 = vmatpush1.bf16.xpose.msra.mxu0 0
    %1060 = vmatprep.subr.bf16.mxu0 0
    %1061 = vmatpush1.bf16.xpose.msra.mxu0 0
    %1062 = vmatprep.subr.bf16.mxu0 0
    %1063 = vmatpush1.bf16.xpose.msra.mxu0 0
    %1064 = vmatprep.subr.bf16.mxu0 0
    %1065 = vmatpush1.bf16.xpose.msra.mxu0 0
    %1066 = vmatprep.subr.bf16.mxu0 0
    %1067 = vmatpush1.bf16.xpose.msra.mxu0 0
    %1068 = vmatprep.subr.bf16.mxu0 0
    %1069 = vmatpush1.bf16.xpose.msra.mxu0 0
    %1070 = vmatprep.subr.bf16.mxu0 0
    %1071 = vmatpush1.bf16.xpose.msra.mxu0 0
    %1072 = vmatprep.subr.bf16.mxu0 0
    %1073 = vmatpush1.bf16.xpose.msra.mxu0 0
    %1074 = vmatprep.subr.bf16.mxu0 0
    %1075 = vmatpush1.bf16.xpose.msra.mxu0 0
    %1076 = vmatprep.subr.bf16.mxu0 0
    %1077 = vmatpush1.bf16.xpose.msra.mxu0 0
    %1078 = vmatprep.subr.bf16.mxu0 0
    %1079 = vmatpush1.bf16.xpose.msra.mxu0 0
    %1080 = vmatprep.mubr.bf16.mxu0 0
    %1081 = vmatmul.mubr.bf16.gmra.mrb[0].mxu0 %v1043
    %v1082 = vpop.f32.mrb[0].mxu0
    %v1083 = vadd.f32 0.0, %v1082
    %v1084 = vpop.f32.mrb[0].mxu0
    %v1085 = vpop.f32.mrb[0].mxu0
    %v1086 = vadd.f32 0.0, %v1085
    %v1087 = vpop.f32.mrb[0].mxu0
    %1088 = vmatprep.mubr.bf16.mxu0 0
    %1089 = vmatmul.mubr.bf16.gmra.mrb[0].mxu0 %v1046
    %v1090 = vpop.f32.mrb[0].mxu0
    %v1091 = vadd.f32 0.0, %v1090
    %v1092 = vpop.f32.mrb[0].mxu0
    %v1093 = vpop.f32.mrb[0].mxu0
    %v1094 = vadd.f32 0.0, %v1093
    %v1095 = vpop.f32.mrb[0].mxu0
    %1096 = vdwg.mxu0
    %1099 = vrot.lane.b32.xlu0 %v1032, 32
    %v1100 = vpop.permute.xlu0 %1099
    %1101 = vrot.lane.b32.xlu0 %v1033, 32
    %v1102 = vpop.permute.xlu0 %1101
    %v1104 = vsel %vm224, %v1100, 0
    %v1107 = vsel %vm224, %v1102, 0
    %1109 = vmatprep.subr.bf16.mxu0 0
    %1110 = vmatpush1.bf16.xpose.msra.mxu0 %v1104
    %1111 = vmatprep.subr.bf16.mxu0 0
    %1112 = vmatpush1.bf16.xpose.msra.mxu0 %v1107
    %1113 = vmatprep.subr.bf16.mxu0 0
    %1114 = vmatpush1.bf16.xpose.msra.mxu0 0
    %1115 = vmatprep.subr.bf16.mxu0 0
    %1116 = vmatpush1.bf16.xpose.msra.mxu0 0
    %1117 = vmatprep.subr.bf16.mxu0 0
    %1118 = vmatpush1.bf16.xpose.msra.mxu0 0
    %1119 = vmatprep.subr.bf16.mxu0 0
    %1120 = vmatpush1.bf16.xpose.msra.mxu0 0
    %1121 = vmatprep.subr.bf16.mxu0 0
    %1122 = vmatpush1.bf16.xpose.msra.mxu0 0
    %1123 = vmatprep.subr.bf16.mxu0 0
    %1124 = vmatpush1.bf16.xpose.msra.mxu0 0
    %1125 = vmatprep.subr.bf16.mxu0 0
    %1126 = vmatpush1.bf16.xpose.msra.mxu0 0
    %1127 = vmatprep.subr.bf16.mxu0 0
    %1128 = vmatpush1.bf16.xpose.msra.mxu0 0
    %1129 = vmatprep.subr.bf16.mxu0 0
    %1130 = vmatpush1.bf16.xpose.msra.mxu0 0
    %1131 = vmatprep.subr.bf16.mxu0 0
    %1132 = vmatpush1.bf16.xpose.msra.mxu0 0
    %1133 = vmatprep.subr.bf16.mxu0 0
    %1134 = vmatpush1.bf16.xpose.msra.mxu0 0
    %1135 = vmatprep.subr.bf16.mxu0 0
    %1136 = vmatpush1.bf16.xpose.msra.mxu0 0
    %1137 = vmatprep.subr.bf16.mxu0 0
    %1138 = vmatpush1.bf16.xpose.msra.mxu0 0
    %1139 = vmatprep.subr.bf16.mxu0 0
    %1140 = vmatpush1.bf16.xpose.msra.mxu0 0
    %1141 = vmatprep.mubr.bf16.mxu0 0
    %1142 = vmatmul.mubr.bf16.gmra.mrb[0].mxu0 %v1104
    %v1143 = vpop.f32.mrb[0].mxu0
    %v1144 = vadd.f32 %v1083, %v1143
    %v1145 = vpop.f32.mrb[0].mxu0
    %v1146 = vpop.f32.mrb[0].mxu0
    %v1147 = vadd.f32 %v1086, %v1146
    %v1148 = vpop.f32.mrb[0].mxu0
    %1149 = vmatprep.mubr.bf16.mxu0 0
    %1150 = vmatmul.mubr.bf16.gmra.mrb[0].mxu0 %v1107
    %v1151 = vpop.f32.mrb[0].mxu0
    %v1152 = vadd.f32 %v1091, %v1151
    %v1153 = vpop.f32.mrb[0].mxu0
    %v1154 = vpop.f32.mrb[0].mxu0
    %v1155 = vadd.f32 %v1094, %v1154
    %v1156 = vpop.f32.mrb[0].mxu0
    %1157 = vdwg.mxu0
    %v1158 = vlaneseq
    %v1159 = vshrl.u32 %v1158, 7
    %v1160 = vadd.s32 %v1159, 8
    %v1161 = vadd.s32 %v1159, 16
    %v1162 = vadd.s32 %v1159, 24
    %v1163 = vand.u32 %v1159, 1
    %v1164 = vand.u32 %v1160, 1
    %v1165 = vand.u32 %v1161, 1
    %v1166 = vand.u32 %v1162, 1
    %v1167 = vand.u32 %v62, 1
    %vm1168 = vcmp.eq.s32.totalorder %v1163, %v1167
    %vm1169 = vcmp.eq.s32.totalorder %v1164, %v1167
    %vm1170 = vcmp.eq.s32.totalorder %v1165, %v1167
    %vm1171 = vcmp.eq.s32.totalorder %v1166, %v1167
    %v1172 = vand.u32 %v1159, 2
    %v1173 = vand.u32 %v1160, 2
    %v1174 = vand.u32 %v1161, 2
    %v1175 = vand.u32 %v1162, 2
    %v1176 = vand.u32 %v62, 2
    %vm1177 = vcmp.ne.s32.totalorder %v1172, %v1176
    %vm1178 = vcmp.ne.s32.totalorder %v1173, %v1176
    %vm1179 = vcmp.ne.s32.totalorder %v1174, %v1176
    %vm1180 = vcmp.ne.s32.totalorder %v1175, %v1176
    %vm1181 = vmand %vm1168, %vm1177
    %vm1182 = vmand %vm1169, %vm1178
    %vm1183 = vmand %vm1170, %vm1179
    %vm1184 = vmand %vm1171, %vm1180
    %v1185 = vsel %vm1181, 1.0, 0.0
    %v1186 = vsel %vm1182, 1.0, 0.0
    %v1187 = vsel %vm1183, 1.0, 0.0
    %v1188 = vsel %vm1184, 1.0, 0.0
    %v1189 = vld [vmem:[%s4] sm:$0x1]
    %v1191 = vlaneseq
    %v1192 = vshrl.u32 %v1191, 7
    %v1193 = vsub.s32 0, %v1192
    %v1194 = vrot.slane %v1189, %v1193
    %v1196 = vmul.f32 %v1185, %v1194
    %v1197 = vmul.f32 %v1186, %v1194
    %v1198 = vmul.f32 %v1187, %v1194
    %v1199 = vmul.f32 %v1188, %v1194
    %vm1200 = vcmp.gt.f32.partialorder %v1196, 0.0
    %vm1201 = vcmp.gt.f32.partialorder %v1197, 0.0
    %vm1202 = vcmp.gt.f32.partialorder %v1198, 0.0
    %vm1203 = vcmp.gt.f32.partialorder %v1199, 0.0
    %v1204 = vsel %vm1200, %v1144, -1e+30
    %v1205 = vsel %vm1201, %v1147, -1e+30
    %v1206 = vsel %vm1202, %v1152, -1e+30
    %v1207 = vsel %vm1203, %v1155, -1e+30
    %v1208 = vsel %vm224, %v1204, -inf
    %1209 = vmax.xlane.f32.xlu0 %v1208
    %v1210 = vpop.xlane.xlu0 %1209
    %v1211 = vsel %vm224, %v1205, -inf
    %1212 = vmax.xlane.f32.xlu0 %v1211
    %v1213 = vpop.xlane.xlu0 %1212
    %v1214 = vsel %vm224, %v1206, -inf
    %1215 = vmax.xlane.f32.xlu0 %v1214
    %v1216 = vpop.xlane.xlu0 %1215
    %v1217 = vsel %vm224, %v1207, -inf
    %1218 = vmax.xlane.f32.xlu0 %v1217
    %v1219 = vpop.xlane.xlu0 %1218
    %v1220 = vsub.f32 %v1204, %v1210
    %v1221 = vsub.f32 %v1205, %v1213
    %v1222 = vsub.f32 %v1206, %v1216
    %v1223 = vsub.f32 %v1207, %v1219
    %v1224 = vmul.f32 %v1220, 1.442695
    %v1225 = vpow.pop %v1224
    %v1226 = vmul.f32 %v1221, 1.442695
    %v1227 = vpow.pop %v1226
    %v1228 = vmul.f32 %v1222, 1.442695
    %v1229 = vpow.pop %v1228
    %v1230 = vmul.f32 %v1223, 1.442695
    %v1231 = vpow.pop %v1230
    %v1232 = vmul.f32 %v1225, %v1196
    %v1233 = vmul.f32 %v1227, %v1197
    %v1234 = vmul.f32 %v1229, %v1198
    %v1235 = vmul.f32 %v1231, %v1199
    %v1236 = vsel %vm224, %v1232, 0.0
    %1237 = vadd.xlane.f32.xlu0 %v1236
    %v1238 = vpop.xlane.xlu0 %1237
    %v1239 = vsel %vm224, %v1233, 0.0
    %1240 = vadd.xlane.f32.xlu0 %v1239
    %v1241 = vpop.xlane.xlu0 %1240
    %v1242 = vsel %vm224, %v1234, 0.0
    %1243 = vadd.xlane.f32.xlu0 %v1242
    %v1244 = vpop.xlane.xlu0 %1243
    %v1245 = vsel %vm224, %v1235, 0.0
    %1246 = vadd.xlane.f32.xlu0 %v1245
    %v1247 = vpop.xlane.xlu0 %1246
    %v1248 = vrcp.pop %v1238
    %v1249 = vmul.f32 %v1232, %v1248
    %v1250 = vrcp.pop %v1241
    %v1251 = vmul.f32 %v1233, %v1250
    %v1252 = vrcp.pop %v1244
    %v1253 = vmul.f32 %v1234, %v1252
    %v1254 = vrcp.pop %v1247
    %v1255 = vmul.f32 %v1235, %v1254
    %v1256 = vpack.c.bf16 %v1251, %v1249
    %v1257 = vpack.c.bf16 %v1255, %v1253
    %v1261 = vsel %vm224, %v1256, 0
    %v1264 = vsel %vm224, %v1257, 0
    %1266 = vmatprep.subr.bf16.mxu0 0
    %1267 = vmatpush1.bf16.msra.mxu0 %v1100
    %1268 = vmatprep.subr.bf16.mxu0 0
    %1269 = vmatpush1.bf16.msra.mxu0 %v1102
    %1270 = vmatprep.subr.bf16.mxu0 0
    %1271 = vmatpush1.bf16.msra.mxu0 0
    %1272 = vmatprep.subr.bf16.mxu0 0
    %1273 = vmatpush1.bf16.msra.mxu0 0
    %1274 = vmatprep.subr.bf16.mxu0 0
    %1275 = vmatpush1.bf16.msra.mxu0 0
    %1276 = vmatprep.subr.bf16.mxu0 0
    %1277 = vmatpush1.bf16.msra.mxu0 0
    %1278 = vmatprep.subr.bf16.mxu0 0
    %1279 = vmatpush1.bf16.msra.mxu0 0
    %1280 = vmatprep.subr.bf16.mxu0 0
    %1281 = vmatpush1.bf16.msra.mxu0 0
    %1282 = vmatprep.subr.bf16.mxu0 0
    %1283 = vmatpush1.bf16.msra.mxu0 0
    %1284 = vmatprep.subr.bf16.mxu0 0
    %1285 = vmatpush1.bf16.msra.mxu0 0
    %1286 = vmatprep.subr.bf16.mxu0 0
    %1287 = vmatpush1.bf16.msra.mxu0 0
    %1288 = vmatprep.subr.bf16.mxu0 0
    %1289 = vmatpush1.bf16.msra.mxu0 0
    %1290 = vmatprep.subr.bf16.mxu0 0
    %1291 = vmatpush1.bf16.msra.mxu0 0
    %1292 = vmatprep.subr.bf16.mxu0 0
    %1293 = vmatpush1.bf16.msra.mxu0 0
    %1294 = vmatprep.subr.bf16.mxu0 0
    %1295 = vmatpush1.bf16.msra.mxu0 0
    %1296 = vmatprep.subr.bf16.mxu0 0
    %1297 = vmatpush1.bf16.msra.mxu0 0
    %1298 = vmatprep.mubr.bf16.mxu0 0
    %1299 = vmatmul.mubr.bf16.gmra.mrb[0].mxu0 %v1261
    %v1300 = vpop.f32.mrb[0].mxu0
    %v1301 = vadd.f32 0.0, %v1300
    %v1302 = vpop.f32.mrb[0].mxu0
    %v1303 = vpop.f32.mrb[0].mxu0
    %v1304 = vadd.f32 0.0, %v1303
    %v1305 = vpop.f32.mrb[0].mxu0
    %1306 = vmatprep.mubr.bf16.mxu0 0
    %1307 = vmatmul.mubr.bf16.gmra.mrb[0].mxu0 %v1264
    %v1308 = vpop.f32.mrb[0].mxu0
    %v1309 = vadd.f32 0.0, %v1308
    %v1310 = vpop.f32.mrb[0].mxu0
    %v1311 = vpop.f32.mrb[0].mxu0
    %v1312 = vadd.f32 0.0, %v1311
    %v1313 = vpop.f32.mrb[0].mxu0
    %1314 = vdwg.mxu0
    %1317 = vmatprep.subr.bf16.mxu0 0
    %1318 = vmatpush1.bf16.msra.mxu0 %v1039
    %1319 = vmatprep.subr.bf16.mxu0 0
    %1320 = vmatpush1.bf16.msra.mxu0 %v1041
    %1321 = vmatprep.subr.bf16.mxu0 0
    %1322 = vmatpush1.bf16.msra.mxu0 0
    %1323 = vmatprep.subr.bf16.mxu0 0
    %1324 = vmatpush1.bf16.msra.mxu0 0
    %1325 = vmatprep.subr.bf16.mxu0 0
    %1326 = vmatpush1.bf16.msra.mxu0 0
    %1327 = vmatprep.subr.bf16.mxu0 0
    %1328 = vmatpush1.bf16.msra.mxu0 0
    %1329 = vmatprep.subr.bf16.mxu0 0
    %1330 = vmatpush1.bf16.msra.mxu0 0
    %1331 = vmatprep.subr.bf16.mxu0 0
    %1332 = vmatpush1.bf16.msra.mxu0 0
    %1333 = vmatprep.subr.bf16.mxu0 0
    %1334 = vmatpush1.bf16.msra.mxu0 0
    %1335 = vmatprep.subr.bf16.mxu0 0
    %1336 = vmatpush1.bf16.msra.mxu0 0
    %1337 = vmatprep.subr.bf16.mxu0 0
    %1338 = vmatpush1.bf16.msra.mxu0 0
    %1339 = vmatprep.subr.bf16.mxu0 0
    %1340 = vmatpush1.bf16.msra.mxu0 0
    %1341 = vmatprep.subr.bf16.mxu0 0
    %1342 = vmatpush1.bf16.msra.mxu0 0
    %1343 = vmatprep.subr.bf16.mxu0 0
    %1344 = vmatpush1.bf16.msra.mxu0 0
    %1345 = vmatprep.subr.bf16.mxu0 0
    %1346 = vmatpush1.bf16.msra.mxu0 0
    %1347 = vmatprep.subr.bf16.mxu0 0
    %1348 = vmatpush1.bf16.msra.mxu0 0
    %1349 = vmatprep.mubr.bf16.mxu0 0
    %1350 = vmatmul.mubr.bf16.gmra.mrb[0].mxu0 %v1261
    %v1351 = vpop.f32.mrb[0].mxu0
    %v1352 = vadd.f32 0.0, %v1351
    %v1353 = vpop.f32.mrb[0].mxu0
    %v1354 = vpop.f32.mrb[0].mxu0
    %v1355 = vadd.f32 0.0, %v1354
    %v1356 = vpop.f32.mrb[0].mxu0
    %1357 = vmatprep.mubr.bf16.mxu0 0
    %1358 = vmatmul.mubr.bf16.gmra.mrb[0].mxu0 %v1264
    %v1359 = vpop.f32.mrb[0].mxu0
    %v1360 = vadd.f32 0.0, %v1359
    %v1361 = vpop.f32.mrb[0].mxu0
    %v1362 = vpop.f32.mrb[0].mxu0
    %v1363 = vadd.f32 0.0, %v1362
    %v1364 = vpop.f32.mrb[0].mxu0
    %1365 = vdwg.mxu0
    %v1366 = vld [vmem:[%s12] sm:$0xff]
    %v1367 = vld [vmem:[%s12 + $0x8] sm:$0xff]
    %v1368 = vld [vmem:[%s12 + $0x10] sm:$0xff]
    %v1369 = vld [vmem:[%s12 + $0x18] sm:$0xff]
    %v1370 = vld [vmem:[%s12 + $0x20] sm:$0xff]
    %v1371 = vld [vmem:[%s12 + $0x28] sm:$0xff]
    %v1372 = vld [vmem:[%s12 + $0x30] sm:$0xff]
    %v1373 = vld [vmem:[%s12 + $0x38] sm:$0xff]
    %v1374 = vld [vmem:[%s12 + $0x40] sm:$0xff]
    %v1375 = vld [vmem:[%s12 + $0x48] sm:$0xff]
    %v1376 = vld [vmem:[%s12 + $0x50] sm:$0xff]
    %v1377 = vld [vmem:[%s12 + $0x58] sm:$0xff]
    %v1378 = vld [vmem:[%s12 + $0x60] sm:$0xff]
    %v1379 = vld [vmem:[%s12 + $0x68] sm:$0xff]
    %v1380 = vld [vmem:[%s12 + $0x70] sm:$0xff]
    %v1381 = vld [vmem:[%s12 + $0x78] sm:$0xff]
    %v1382 = vld [vmem:[%s12 + $0x80] sm:$0xff]
    %v1383 = vld [vmem:[%s12 + $0x88] sm:$0xff]
    %v1384 = vld [vmem:[%s12 + $0x90] sm:$0xff]
    %v1385 = vld [vmem:[%s12 + $0x98] sm:$0xff]
    %v1386 = vld [vmem:[%s12 + $0xa0] sm:$0xff]
    %v1387 = vld [vmem:[%s12 + $0xa8] sm:$0xff]
    %v1388 = vld [vmem:[%s12 + $0xb0] sm:$0xff]
    %v1389 = vld [vmem:[%s12 + $0xb8] sm:$0xff]
    %v1390 = vld [vmem:[%s12 + $0xc0] sm:$0xff]
    %v1391 = vld [vmem:[%s12 + $0xc8] sm:$0xff]
    %v1392 = vld [vmem:[%s12 + $0xd0] sm:$0xff]
    %v1393 = vld [vmem:[%s12 + $0xd8] sm:$0xff]
    %v1394 = vld [vmem:[%s12 + $0xe0] sm:$0xff]
    %v1395 = vld [vmem:[%s12 + $0xe8] sm:$0xff]
    %v1396 = vld [vmem:[%s12 + $0xf0] sm:$0xff]
    %v1397 = vld [vmem:[%s12 + $0xf8] sm:$0xff]
    %v1398 = vadd.f32 %v1366, %v1390
    %v1399 = vadd.f32 %v1367, %v1391
    %v1400 = vadd.f32 %v1368, %v1392
    %v1401 = vadd.f32 %v1369, %v1393
    %v1402 = vpack.c.bf16 %v1399, %v1398
    %v1403 = vpack.c.bf16 %v1401, %v1400
    %v1404 = vadd.f32 %v1370, %v1394
    %v1405 = vadd.f32 %v1371, %v1395
    %v1406 = vadd.f32 %v1372, %v1396
    %v1407 = vadd.f32 %v1373, %v1397
    %v1408 = vpack.c.bf16 %v1405, %v1404
    %v1409 = vpack.c.bf16 %v1407, %v1406
    %v1410 = vsub.f32 %v1374, %v1390
    %v1411 = vsub.f32 %v1375, %v1391
    %v1412 = vsub.f32 %v1376, %v1392
    %v1413 = vsub.f32 %v1377, %v1393
    %v1414 = vpack.c.bf16 %v1411, %v1410
    %v1415 = vpack.c.bf16 %v1413, %v1412
    %v1416 = vsub.f32 %v1378, %v1394
    %v1417 = vsub.f32 %v1379, %v1395
    %v1418 = vsub.f32 %v1380, %v1396
    %v1419 = vsub.f32 %v1381, %v1397
    %v1420 = vpack.c.bf16 %v1417, %v1416
    %v1421 = vpack.c.bf16 %v1419, %v1418
    %v1422 = vpack.c.bf16 %v1383, %v1382
    %v1423 = vpack.c.bf16 %v1385, %v1384
    %v1424 = vpack.c.bf16 %v1387, %v1386
    %v1425 = vpack.c.bf16 %v1389, %v1388
    %1426 = vmatprep.subr.bf16.mxu0 0
    %1427 = vmatpush1.bf16.msra.mxu0 %v1408
    %1428 = vmatprep.subr.bf16.mxu0 0
    %1429 = vmatpush1.bf16.msra.mxu0 %v1409
    %1430 = vmatprep.subr.bf16.mxu0 0
    %1431 = vmatpush1.bf16.msra.mxu0 0
    %1432 = vmatprep.subr.bf16.mxu0 0
    %1433 = vmatpush1.bf16.msra.mxu0 0
    %1434 = vmatprep.subr.bf16.mxu0 0
    %1435 = vmatpush1.bf16.msra.mxu0 0
    %1436 = vmatprep.subr.bf16.mxu0 0
    %1437 = vmatpush1.bf16.msra.mxu0 0
    %1438 = vmatprep.subr.bf16.mxu0 0
    %1439 = vmatpush1.bf16.msra.mxu0 0
    %1440 = vmatprep.subr.bf16.mxu0 0
    %1441 = vmatpush1.bf16.msra.mxu0 0
    %1442 = vmatprep.subr.bf16.mxu0 0
    %1443 = vmatpush1.bf16.msra.mxu0 0
    %1444 = vmatprep.subr.bf16.mxu0 0
    %1445 = vmatpush1.bf16.msra.mxu0 0
    %1446 = vmatprep.subr.bf16.mxu0 0
    %1447 = vmatpush1.bf16.msra.mxu0 0
    %1448 = vmatprep.subr.bf16.mxu0 0
    %1449 = vmatpush1.bf16.msra.mxu0 0
    %1450 = vmatprep.subr.bf16.mxu0 0
    %1451 = vmatpush1.bf16.msra.mxu0 0
    %1452 = vmatprep.subr.bf16.mxu0 0
    %1453 = vmatpush1.bf16.msra.mxu0 0
    %1454 = vmatprep.subr.bf16.mxu0 0
    %1455 = vmatpush1.bf16.msra.mxu0 0
    %1456 = vmatprep.subr.bf16.mxu0 0
    %1457 = vmatpush1.bf16.msra.mxu0 0
    %1458 = vmatprep.mubr.bf16.mxu0 0
    %1459 = vmatmul.mubr.bf16.gmra.mrb[0].mxu0 %v1043
    %v1460 = vpop.f32.mrb[0].mxu0
    %v1461 = vadd.f32 0.0, %v1460
    %v1462 = vpop.f32.mrb[0].mxu0
    %v1463 = vpop.f32.mrb[0].mxu0
    %v1464 = vadd.f32 0.0, %v1463
    %v1465 = vpop.f32.mrb[0].mxu0
    %1466 = vmatprep.mubr.bf16.mxu0 0
    %1467 = vmatmul.mubr.bf16.gmra.mrb[0].mxu0 %v1046
    %v1468 = vpop.f32.mrb[0].mxu0
    %v1469 = vadd.f32 0.0, %v1468
    %v1470 = vpop.f32.mrb[0].mxu0
    %v1471 = vpop.f32.mrb[0].mxu0
    %v1472 = vadd.f32 0.0, %v1471
    %v1473 = vpop.f32.mrb[0].mxu0
    %1474 = vdwg.mxu0
    %1475 = vmatprep.subr.bf16.mxu0 0
    %1476 = vmatpush1.bf16.msra.mxu0 %v1402
    %1477 = vmatprep.subr.bf16.mxu0 0
    %1478 = vmatpush1.bf16.msra.mxu0 %v1403
    %1479 = vmatprep.subr.bf16.mxu0 0
    %1480 = vmatpush1.bf16.msra.mxu0 0
    %1481 = vmatprep.subr.bf16.mxu0 0
    %1482 = vmatpush1.bf16.msra.mxu0 0
    %1483 = vmatprep.subr.bf16.mxu0 0
    %1484 = vmatpush1.bf16.msra.mxu0 0
    %1485 = vmatprep.subr.bf16.mxu0 0
    %1486 = vmatpush1.bf16.msra.mxu0 0
    %1487 = vmatprep.subr.bf16.mxu0 0
    %1488 = vmatpush1.bf16.msra.mxu0 0
    %1489 = vmatprep.subr.bf16.mxu0 0
    %1490 = vmatpush1.bf16.msra.mxu0 0
    %1491 = vmatprep.subr.bf16.mxu0 0
    %1492 = vmatpush1.bf16.msra.mxu0 0
    %1493 = vmatprep.subr.bf16.mxu0 0
    %1494 = vmatpush1.bf16.msra.mxu0 0
    %1495 = vmatprep.subr.bf16.mxu0 0
    %1496 = vmatpush1.bf16.msra.mxu0 0
    %1497 = vmatprep.subr.bf16.mxu0 0
    %1498 = vmatpush1.bf16.msra.mxu0 0
    %1499 = vmatprep.subr.bf16.mxu0 0
    %1500 = vmatpush1.bf16.msra.mxu0 0
    %1501 = vmatprep.subr.bf16.mxu0 0
    %1502 = vmatpush1.bf16.msra.mxu0 0
    %1503 = vmatprep.subr.bf16.mxu0 0
    %1504 = vmatpush1.bf16.msra.mxu0 0
    %1505 = vmatprep.subr.bf16.mxu0 0
    %1506 = vmatpush1.bf16.msra.mxu0 0
    %1507 = vmatprep.mubr.bf16.mxu0 0
    %1508 = vmatmul.mubr.bf16.gmra.mrb[0].mxu0 %v1104
    %v1509 = vpop.f32.mrb[0].mxu0
    %v1510 = vadd.f32 %v1461, %v1509
    %v1511 = vpop.f32.mrb[0].mxu0
    %v1512 = vpop.f32.mrb[0].mxu0
    %v1513 = vadd.f32 %v1464, %v1512
    %v1514 = vpop.f32.mrb[0].mxu0
    %1515 = vmatprep.mubr.bf16.mxu0 0
    %1516 = vmatmul.mubr.bf16.gmra.mrb[0].mxu0 %v1107
    %v1517 = vpop.f32.mrb[0].mxu0
    %v1518 = vadd.f32 %v1469, %v1517
    %v1519 = vpop.f32.mrb[0].mxu0
    %v1520 = vpop.f32.mrb[0].mxu0
    %v1521 = vadd.f32 %v1472, %v1520
    %v1522 = vpop.f32.mrb[0].mxu0
    %1523 = vdwg.mxu0
    %v1524 = vpack.c.bf16 %v1304, %v1301
    %v1525 = vpack.c.bf16 %v1312, %v1309
    %v1527 = vsel %vm224, %v1524, 0
    %v1530 = vsel %vm224, %v1525, 0
    %1532 = vmatprep.subr.bf16.mxu0 0
    %1533 = vmatpush1.bf16.msra.mxu0 %v1414
    %1534 = vmatprep.subr.bf16.mxu0 0
    %1535 = vmatpush1.bf16.msra.mxu0 %v1415
    %1536 = vmatprep.subr.bf16.mxu0 0
    %1537 = vmatpush1.bf16.msra.mxu0 0
    %1538 = vmatprep.subr.bf16.mxu0 0
    %1539 = vmatpush1.bf16.msra.mxu0 0
    %1540 = vmatprep.subr.bf16.mxu0 0
    %1541 = vmatpush1.bf16.msra.mxu0 0
    %1542 = vmatprep.subr.bf16.mxu0 0
    %1543 = vmatpush1.bf16.msra.mxu0 0
    %1544 = vmatprep.subr.bf16.mxu0 0
    %1545 = vmatpush1.bf16.msra.mxu0 0
    %1546 = vmatprep.subr.bf16.mxu0 0
    %1547 = vmatpush1.bf16.msra.mxu0 0
    %1548 = vmatprep.subr.bf16.mxu0 0
    %1549 = vmatpush1.bf16.msra.mxu0 0
    %1550 = vmatprep.subr.bf16.mxu0 0
    %1551 = vmatpush1.bf16.msra.mxu0 0
    %1552 = vmatprep.subr.bf16.mxu0 0
    %1553 = vmatpush1.bf16.msra.mxu0 0
    %1554 = vmatprep.subr.bf16.mxu0 0
    %1555 = vmatpush1.bf16.msra.mxu0 0
    %1556 = vmatprep.subr.bf16.mxu0 0
    %1557 = vmatpush1.bf16.msra.mxu0 0
    %1558 = vmatprep.subr.bf16.mxu0 0
    %1559 = vmatpush1.bf16.msra.mxu0 0
    %1560 = vmatprep.subr.bf16.mxu0 0
    %1561 = vmatpush1.bf16.msra.mxu0 0
    %1562 = vmatprep.subr.bf16.mxu0 0
    %1563 = vmatpush1.bf16.msra.mxu0 0
    %1564 = vmatprep.mubr.bf16.mxu0 0
    %1565 = vmatmul.mubr.bf16.gmra.mrb[0].mxu0 %v1527
    %v1566 = vpop.f32.mrb[0].mxu0
    %v1567 = vadd.f32 0.0, %v1566
    %v1568 = vpop.f32.mrb[0].mxu0
    %v1569 = vpop.f32.mrb[0].mxu0
    %v1570 = vadd.f32 0.0, %v1569
    %v1571 = vpop.f32.mrb[0].mxu0
    %1572 = vmatprep.mubr.bf16.mxu0 0
    %1573 = vmatmul.mubr.bf16.gmra.mrb[0].mxu0 %v1530
    %v1574 = vpop.f32.mrb[0].mxu0
    %v1575 = vadd.f32 0.0, %v1574
    %v1576 = vpop.f32.mrb[0].mxu0
    %v1577 = vpop.f32.mrb[0].mxu0
    %v1578 = vadd.f32 0.0, %v1577
    %v1579 = vpop.f32.mrb[0].mxu0
    %1580 = vdwg.mxu0
    %v1581 = vadd.f32 %v1510, %v1567
    %v1582 = vadd.f32 %v1513, %v1570
    %v1583 = vadd.f32 %v1518, %v1575
    %v1584 = vadd.f32 %v1521, %v1578
    %v1585 = vpack.c.bf16 %v1355, %v1352
    %v1586 = vpack.c.bf16 %v1363, %v1360
    %v1588 = vsel %vm224, %v1585, 0
    %v1591 = vsel %vm224, %v1586, 0
    %1593 = vmatprep.subr.bf16.mxu0 0
    %1594 = vmatpush1.bf16.msra.mxu0 %v1420
    %1595 = vmatprep.subr.bf16.mxu0 0
    %1596 = vmatpush1.bf16.msra.mxu0 %v1421
    %1597 = vmatprep.subr.bf16.mxu0 0
    %1598 = vmatpush1.bf16.msra.mxu0 0
    %1599 = vmatprep.subr.bf16.mxu0 0
    %1600 = vmatpush1.bf16.msra.mxu0 0
    %1601 = vmatprep.subr.bf16.mxu0 0
    %1602 = vmatpush1.bf16.msra.mxu0 0
    %1603 = vmatprep.subr.bf16.mxu0 0
    %1604 = vmatpush1.bf16.msra.mxu0 0
    %1605 = vmatprep.subr.bf16.mxu0 0
    %1606 = vmatpush1.bf16.msra.mxu0 0
    %1607 = vmatprep.subr.bf16.mxu0 0
    %1608 = vmatpush1.bf16.msra.mxu0 0
    %1609 = vmatprep.subr.bf16.mxu0 0
    %1610 = vmatpush1.bf16.msra.mxu0 0
    %1611 = vmatprep.subr.bf16.mxu0 0
    %1612 = vmatpush1.bf16.msra.mxu0 0
    %1613 = vmatprep.subr.bf16.mxu0 0
    %1614 = vmatpush1.bf16.msra.mxu0 0
    %1615 = vmatprep.subr.bf16.mxu0 0
    %1616 = vmatpush1.bf16.msra.mxu0 0
    %1617 = vmatprep.subr.bf16.mxu0 0
    %1618 = vmatpush1.bf16.msra.mxu0 0
    %1619 = vmatprep.subr.bf16.mxu0 0
    %1620 = vmatpush1.bf16.msra.mxu0 0
    %1621 = vmatprep.subr.bf16.mxu0 0
    %1622 = vmatpush1.bf16.msra.mxu0 0
    %1623 = vmatprep.subr.bf16.mxu0 0
    %1624 = vmatpush1.bf16.msra.mxu0 0
    %1625 = vmatprep.mubr.bf16.mxu0 0
    %1626 = vmatmul.mubr.bf16.gmra.mrb[0].mxu0 %v1588
    %v1627 = vpop.f32.mrb[0].mxu0
    %v1628 = vadd.f32 0.0, %v1627
    %v1629 = vpop.f32.mrb[0].mxu0
    %v1630 = vpop.f32.mrb[0].mxu0
    %v1631 = vadd.f32 0.0, %v1630
    %v1632 = vpop.f32.mrb[0].mxu0
    %1633 = vmatprep.mubr.bf16.mxu0 0
    %1634 = vmatmul.mubr.bf16.gmra.mrb[0].mxu0 %v1591
    %v1635 = vpop.f32.mrb[0].mxu0
    %v1636 = vadd.f32 0.0, %v1635
    %v1637 = vpop.f32.mrb[0].mxu0
    %v1638 = vpop.f32.mrb[0].mxu0
    %v1639 = vadd.f32 0.0, %v1638
    %v1640 = vpop.f32.mrb[0].mxu0
    %1641 = vdwg.mxu0
    %v1642 = vadd.f32 %v1581, %v1628
    %v1643 = vadd.f32 %v1582, %v1631
    %v1644 = vadd.f32 %v1583, %v1636
    %v1645 = vadd.f32 %v1584, %v1639
    %1650 = vrot.lane.b32.xlu0 %v1301, 96
    %v1651 = vpop.permute.xlu0 %1650
    %1652 = vrot.lane.b32.xlu0 %v1304, 96
    %v1653 = vpop.permute.xlu0 %1652
    %1654 = vrot.lane.b32.xlu0 %v1309, 96
    %v1655 = vpop.permute.xlu0 %1654
    %1656 = vrot.lane.b32.xlu0 %v1312, 96
    %v1657 = vpop.permute.xlu0 %1656
    %v1662 = vmul.f32 %v1024, %v1651
    %v1663 = vmul.f32 %v1025, %v1653
    %v1664 = vmul.f32 %v1026, %v1655
    %v1665 = vmul.f32 %v1027, %v1657
    %v1666 = vpack.c.bf16 %v1663, %v1662
    %v1667 = vpack.c.bf16 %v1665, %v1664
    %1670 = vrot.lane.b32.xlu0 %v1666, 32
    %v1671 = vpop.permute.xlu0 %1670
    %1672 = vrot.lane.b32.xlu0 %v1667, 32
    %v1673 = vpop.permute.xlu0 %1672
    %v1675 = vsel %vm224, %v1671, 0
    %v1678 = vsel %vm224, %v1673, 0
    %1680 = vmatprep.subr.bf16.mxu0 0
    %1681 = vmatpush1.bf16.msra.mxu0 %v1422
    %1682 = vmatprep.subr.bf16.mxu0 0
    %1683 = vmatpush1.bf16.msra.mxu0 %v1423
    %1684 = vmatprep.subr.bf16.mxu0 0
    %1685 = vmatpush1.bf16.msra.mxu0 0
    %1686 = vmatprep.subr.bf16.mxu0 0
    %1687 = vmatpush1.bf16.msra.mxu0 0
    %1688 = vmatprep.subr.bf16.mxu0 0
    %1689 = vmatpush1.bf16.msra.mxu0 0
    %1690 = vmatprep.subr.bf16.mxu0 0
    %1691 = vmatpush1.bf16.msra.mxu0 0
    %1692 = vmatprep.subr.bf16.mxu0 0
    %1693 = vmatpush1.bf16.msra.mxu0 0
    %1694 = vmatprep.subr.bf16.mxu0 0
    %1695 = vmatpush1.bf16.msra.mxu0 0
    %1696 = vmatprep.subr.bf16.mxu0 0
    %1697 = vmatpush1.bf16.msra.mxu0 0
    %1698 = vmatprep.subr.bf16.mxu0 0
    %1699 = vmatpush1.bf16.msra.mxu0 0
    %1700 = vmatprep.subr.bf16.mxu0 0
    %1701 = vmatpush1.bf16.msra.mxu0 0
    %1702 = vmatprep.subr.bf16.mxu0 0
    %1703 = vmatpush1.bf16.msra.mxu0 0
    %1704 = vmatprep.subr.bf16.mxu0 0
    %1705 = vmatpush1.bf16.msra.mxu0 0
    %1706 = vmatprep.subr.bf16.mxu0 0
    %1707 = vmatpush1.bf16.msra.mxu0 0
    %1708 = vmatprep.subr.bf16.mxu0 0
    %1709 = vmatpush1.bf16.msra.mxu0 0
    %1710 = vmatprep.subr.bf16.mxu0 0
    %1711 = vmatpush1.bf16.msra.mxu0 0
    %1712 = vmatprep.mubr.bf16.mxu0 0
    %1713 = vmatmul.mubr.bf16.gmra.mrb[0].mxu0 %v1675
    %v1714 = vpop.f32.mrb[0].mxu0
    %v1715 = vadd.f32 0.0, %v1714
    %v1716 = vpop.f32.mrb[0].mxu0
    %v1717 = vpop.f32.mrb[0].mxu0
    %v1718 = vadd.f32 0.0, %v1717
    %v1719 = vpop.f32.mrb[0].mxu0
    %1720 = vmatprep.mubr.bf16.mxu0 0
    %1721 = vmatmul.mubr.bf16.gmra.mrb[0].mxu0 %v1678
    %v1722 = vpop.f32.mrb[0].mxu0
    %v1723 = vadd.f32 0.0, %v1722
    %v1724 = vpop.f32.mrb[0].mxu0
    %v1725 = vpop.f32.mrb[0].mxu0
    %v1726 = vadd.f32 0.0, %v1725
    %v1727 = vpop.f32.mrb[0].mxu0
    %1728 = vdwg.mxu0
    %v1729 = vadd.f32 %v1642, %v1715
    %v1730 = vadd.f32 %v1643, %v1718
    %v1731 = vadd.f32 %v1644, %v1723
    %v1732 = vadd.f32 %v1645, %v1726
    %1737 = vrot.lane.b32.xlu0 %v1352, 96
    %v1738 = vpop.permute.xlu0 %1737
    %1739 = vrot.lane.b32.xlu0 %v1355, 96
    %v1740 = vpop.permute.xlu0 %1739
    %1741 = vrot.lane.b32.xlu0 %v1360, 96
    %v1742 = vpop.permute.xlu0 %1741
    %1743 = vrot.lane.b32.xlu0 %v1363, 96
    %v1744 = vpop.permute.xlu0 %1743
    %v1749 = vmul.f32 %v1028, %v1738
    %v1750 = vmul.f32 %v1029, %v1740
    %v1751 = vmul.f32 %v1030, %v1742
    %v1752 = vmul.f32 %v1031, %v1744
    %v1753 = vpack.c.bf16 %v1750, %v1749
    %v1754 = vpack.c.bf16 %v1752, %v1751
    %1757 = vrot.lane.b32.xlu0 %v1753, 32
    %v1758 = vpop.permute.xlu0 %1757
    %1759 = vrot.lane.b32.xlu0 %v1754, 32
    %v1760 = vpop.permute.xlu0 %1759
    %v1762 = vsel %vm224, %v1758, 0
    %v1765 = vsel %vm224, %v1760, 0
    %1767 = vmatprep.subr.bf16.mxu0 0
    %1768 = vmatpush1.bf16.msra.mxu0 %v1424
    %1769 = vmatprep.subr.bf16.mxu0 0
    %1770 = vmatpush1.bf16.msra.mxu0 %v1425
    %1771 = vmatprep.subr.bf16.mxu0 0
    %1772 = vmatpush1.bf16.msra.mxu0 0
    %1773 = vmatprep.subr.bf16.mxu0 0
    %1774 = vmatpush1.bf16.msra.mxu0 0
    %1775 = vmatprep.subr.bf16.mxu0 0
    %1776 = vmatpush1.bf16.msra.mxu0 0
    %1777 = vmatprep.subr.bf16.mxu0 0
    %1778 = vmatpush1.bf16.msra.mxu0 0
    %1779 = vmatprep.subr.bf16.mxu0 0
    %1780 = vmatpush1.bf16.msra.mxu0 0
    %1781 = vmatprep.subr.bf16.mxu0 0
    %1782 = vmatpush1.bf16.msra.mxu0 0
    %1783 = vmatprep.subr.bf16.mxu0 0
    %1784 = vmatpush1.bf16.msra.mxu0 0
    %1785 = vmatprep.subr.bf16.mxu0 0
    %1786 = vmatpush1.bf16.msra.mxu0 0
    %1787 = vmatprep.subr.bf16.mxu0 0
    %1788 = vmatpush1.bf16.msra.mxu0 0
    %1789 = vmatprep.subr.bf16.mxu0 0
    %1790 = vmatpush1.bf16.msra.mxu0 0
    %1791 = vmatprep.subr.bf16.mxu0 0
    %1792 = vmatpush1.bf16.msra.mxu0 0
    %1793 = vmatprep.subr.bf16.mxu0 0
    %1794 = vmatpush1.bf16.msra.mxu0 0
    %1795 = vmatprep.subr.bf16.mxu0 0
    %1796 = vmatpush1.bf16.msra.mxu0 0
    %1797 = vmatprep.subr.bf16.mxu0 0
    %1798 = vmatpush1.bf16.msra.mxu0 0
    %1799 = vmatprep.mubr.bf16.mxu0 0
    %1800 = vmatmul.mubr.bf16.gmra.mrb[0].mxu0 %v1762
    %v1801 = vpop.f32.mrb[0].mxu0
    %v1802 = vadd.f32 0.0, %v1801
    %v1803 = vpop.f32.mrb[0].mxu0
    %v1804 = vpop.f32.mrb[0].mxu0
    %v1805 = vadd.f32 0.0, %v1804
    %v1806 = vpop.f32.mrb[0].mxu0
    %1807 = vmatprep.mubr.bf16.mxu0 0
    %1808 = vmatmul.mubr.bf16.gmra.mrb[0].mxu0 %v1765
    %v1809 = vpop.f32.mrb[0].mxu0
    %v1810 = vadd.f32 0.0, %v1809
    %v1811 = vpop.f32.mrb[0].mxu0
    %v1812 = vpop.f32.mrb[0].mxu0
    %v1813 = vadd.f32 0.0, %v1812
    %v1814 = vpop.f32.mrb[0].mxu0
    %1815 = vdwg.mxu0
    %v1816 = vadd.f32 %v1729, %v1802
    %v1817 = vadd.f32 %v1730, %v1805
    %v1818 = vadd.f32 %v1731, %v1810
    %v1819 = vadd.f32 %v1732, %v1813
    %v1820 = vld [vmem:[%s13] sm:$0x1]
    %v1822 = vlaneseq
    %v1823 = vshrl.u32 %v1822, 7
    %v1824 = vsub.s32 0, %v1823
    %v1825 = vrot.slane %v1820, %v1824
    %v1827 = vadd.f32 %v1816, %v1825
    %v1828 = vadd.f32 %v1817, %v1825
    %v1829 = vadd.f32 %v1818, %v1825
    %v1830 = vadd.f32 %v1819, %v1825
    %v1831 = vmax.f32 %v1827, 0.0
    %v1832 = vmax.f32 %v1828, 0.0
    %v1833 = vmax.f32 %v1829, 0.0
    %v1834 = vmax.f32 %v1830, 0.0
    %v1835 = vpack.c.bf16 %v1832, %v1831
    %v1836 = vpack.c.bf16 %v1834, %v1833
    %v1837 = vld [vmem:[%s9] sm:$0xff]
    %v1838 = vld [vmem:[%s9 + $0x8] sm:$0xff]
    %v1839 = vld [vmem:[%s9 + $0x10] sm:$0xff]
    %v1840 = vld [vmem:[%s9 + $0x18] sm:$0xff]
    %v1841 = vpack.c.bf16 %v1838, %v1837
    %v1842 = vpack.c.bf16 %v1840, %v1839
    %v1843 = vld [vmem:[%s10] sm:$0x1]
    %v1845 = vlaneseq
    %v1846 = vshrl.u32 %v1845, 7
    %v1847 = vsub.s32 0, %v1846
    %v1848 = vrot.slane %v1843, %v1847
    %v1851 = vsel %vm224, %v1835, 0
    %v1854 = vsel %vm224, %v1836, 0
    %1856 = vmatprep.subr.bf16.mxu0 0
    %1857 = vmatpush1.bf16.msra.mxu0 %v1841
    %1858 = vmatprep.subr.bf16.mxu0 0
    %1859 = vmatpush1.bf16.msra.mxu0 %v1842
    %1860 = vmatprep.subr.bf16.mxu0 0
    %1861 = vmatpush1.bf16.msra.mxu0 0
    %1862 = vmatprep.subr.bf16.mxu0 0
    %1863 = vmatpush1.bf16.msra.mxu0 0
    %1864 = vmatprep.subr.bf16.mxu0 0
    %1865 = vmatpush1.bf16.msra.mxu0 0
    %1866 = vmatprep.subr.bf16.mxu0 0
    %1867 = vmatpush1.bf16.msra.mxu0 0
    %1868 = vmatprep.subr.bf16.mxu0 0
    %1869 = vmatpush1.bf16.msra.mxu0 0
    %1870 = vmatprep.subr.bf16.mxu0 0
    %1871 = vmatpush1.bf16.msra.mxu0 0
    %1872 = vmatprep.subr.bf16.mxu0 0
    %1873 = vmatpush1.bf16.msra.mxu0 0
    %1874 = vmatprep.subr.bf16.mxu0 0
    %1875 = vmatpush1.bf16.msra.mxu0 0
    %1876 = vmatprep.subr.bf16.mxu0 0
    %1877 = vmatpush1.bf16.msra.mxu0 0
    %1878 = vmatprep.subr.bf16.mxu0 0
    %1879 = vmatpush1.bf16.msra.mxu0 0
    %1880 = vmatprep.subr.bf16.mxu0 0
    %1881 = vmatpush1.bf16.msra.mxu0 0
    %1882 = vmatprep.subr.bf16.mxu0 0
    %1883 = vmatpush1.bf16.msra.mxu0 0
    %1884 = vmatprep.subr.bf16.mxu0 0
    %1885 = vmatpush1.bf16.msra.mxu0 0
    %1886 = vmatprep.subr.bf16.mxu0 0
    %1887 = vmatpush1.bf16.msra.mxu0 0
    %1888 = vmatprep.mubr.bf16.mxu0 0
    %1889 = vmatmul.mubr.bf16.gmra.mrb[0].mxu0 %v1851
    %v1890 = vpop.f32.mrb[0].mxu0
    %v1891 = vadd.f32 %v1848, %v1890
    %v1892 = vpop.f32.mrb[0].mxu0
    %v1893 = vpop.f32.mrb[0].mxu0
    %v1894 = vadd.f32 %v1848, %v1893
    %v1895 = vpop.f32.mrb[0].mxu0
    %1896 = vmatprep.mubr.bf16.mxu0 0
    %1897 = vmatmul.mubr.bf16.gmra.mrb[0].mxu0 %v1854
    %v1898 = vpop.f32.mrb[0].mxu0
    %v1899 = vadd.f32 %v1848, %v1898
    %v1900 = vpop.f32.mrb[0].mxu0
    %v1901 = vpop.f32.mrb[0].mxu0
    %v1902 = vadd.f32 %v1848, %v1901
    %v1903 = vpop.f32.mrb[0].mxu0
    %1904 = vdwg.mxu0
    %v1905 = vmul.f32 %v1891, %v64
    %v1906 = vmul.f32 %v1894, %v64
    %v1907 = vmul.f32 %v1899, %v64
    %v1908 = vmul.f32 %v1902, %v64
    %v1909 = vld [vmem:[%s11] sm:$0xff]
    %v1910 = vld [vmem:[%s11 + $0x8] sm:$0xff]
    %v1911 = vld [vmem:[%s11 + $0x10] sm:$0xff]
    %v1912 = vld [vmem:[%s11 + $0x18] sm:$0xff]
    %v1913 = vmul.f32 %v1909, %v64
    %v1914 = vmul.f32 %v1910, %v64
    %v1915 = vmul.f32 %v1911, %v64
    %v1916 = vmul.f32 %v1912, %v64
    %v1917 = vpack.c.bf16 %v1914, %v1913
    %v1918 = vpack.c.bf16 %v1916, %v1915
    %v1919 = vld [vmem:[%s2] sm:$0xff]
    %v1920 = vld [vmem:[%s2 + $0x8] sm:$0xff]
    %v1921 = vld [vmem:[%s2 + $0x10] sm:$0xff]
    %v1922 = vld [vmem:[%s2 + $0x18] sm:$0xff]
    %v1923 = vld [vmem:[%s2 + $0x20] sm:$0xff]
    %v1924 = vld [vmem:[%s2 + $0x28] sm:$0xff]
    %v1925 = vld [vmem:[%s2 + $0x30] sm:$0xff]
    %v1926 = vld [vmem:[%s2 + $0x38] sm:$0xff]
    %v1927 = vsel %vm991, %v1905, %v1908
    %1929 = vset.pattern.permute.xlu0 0
    %1930 = vperm.xlu0 %1929, %v1919
    %v1931 = vpop.permute.xlu0 %1930
    %1933 = vmatprep.subr.bf16.mxu0 0
    %1934 = vmatpush1.bf16.msra.mxu0 %v1917
    %1935 = vmatprep.subr.bf16.mxu0 0
    %1936 = vmatpush1.bf16.msra.mxu0 %v1918
    %1937 = vmatprep.subr.bf16.mxu0 0
    %1938 = vmatpush1.bf16.msra.mxu0 0
    %1939 = vmatprep.subr.bf16.mxu0 0
    %1940 = vmatpush1.bf16.msra.mxu0 0
    %1941 = vmatprep.subr.bf16.mxu0 0
    %1942 = vmatpush1.bf16.msra.mxu0 0
    %1943 = vmatprep.subr.bf16.mxu0 0
    %1944 = vmatpush1.bf16.msra.mxu0 0
    %1945 = vmatprep.subr.bf16.mxu0 0
    %1946 = vmatpush1.bf16.msra.mxu0 0
    %1947 = vmatprep.subr.bf16.mxu0 0
    %1948 = vmatpush1.bf16.msra.mxu0 0
    %1949 = vmatprep.subr.bf16.mxu0 0
    %1950 = vmatpush1.bf16.msra.mxu0 0
    %1951 = vmatprep.subr.bf16.mxu0 0
    %1952 = vmatpush1.bf16.msra.mxu0 0
    %1953 = vmatprep.subr.bf16.mxu0 0
    %1954 = vmatpush1.bf16.msra.mxu0 0
    %1955 = vmatprep.subr.bf16.mxu0 0
    %1956 = vmatpush1.bf16.msra.mxu0 0
    %1957 = vmatprep.subr.bf16.mxu0 0
    %1958 = vmatpush1.bf16.msra.mxu0 0
    %1959 = vmatprep.subr.bf16.mxu0 0
    %1960 = vmatpush1.bf16.msra.mxu0 0
    %1961 = vmatprep.subr.bf16.mxu0 0
    %1962 = vmatpush1.bf16.msra.mxu0 0
    %1963 = vmatprep.subr.bf16.mxu0 0
    %1964 = vmatpush1.bf16.msra.mxu0 0
    %1965 = vmatprep.mubr.bf16.mxu0 0
    %1966 = vmatmul.mubr.bf16.gmra.mrb[0].mxu0 %v334
    %v1967 = vpop.f32.mrb[0].mxu0
    %v1968 = vadd.f32 0.0, %v1967
    %v1969 = vpop.f32.mrb[0].mxu0
    %v1970 = vpop.f32.mrb[0].mxu0
    %v1971 = vpop.f32.mrb[0].mxu0
    %1972 = vdwg.mxu0
    %v1973 = vadd.f32 %v1927, %v1968
    %v1974 = vtanh.pop %v1973
    %v1975 = vmul.f32 %v1974, 0.5
    %v1976 = vadd.f32 %v1975, 0.5
    %1978 = vrot.lane.b32.xlu0 %v1974, 32
    %v1979 = vpop.permute.xlu0 %1978
    %v1981 = vmul.f32 %v1976, %v1979
    %v1982 = vmul.f32 %v1976, 0.0
    %1984 = vrot.lane.b32.xlu0 %v1982, 96
    %v1985 = vpop.permute.xlu0 %1984
    %v1987 = vadd.f32 %v1981, %v1985
    %v1988 = vtanh.pop %v1987
    %1990 = vrot.lane.b32.xlu0 %v1988, 64
    %v1991 = vpop.permute.xlu0 %1990
    %v1993 = vmul.f32 %v1976, %v1991
    %v1994 = vmul.f32 %v1931, %v1993
    %v1995 = vadd.f32 %v1994, 0.0
    %v1996 = vmul.f32 %v1931, %v1987
    %v1997 = vadd.f32 %v1996, 0.0
    %v1999 = vrot.slane %v1905, 4
    %v2002 = vrot.slane %v1908, 4
    %v2004 = vsel %vm991, %v1999, %v2002
    %2006 = vset.pattern.permute.xlu0 0
    %2007 = vperm.xlu0 %2006, %v1920
    %v2008 = vpop.permute.xlu0 %2007
    %v2010 = vpack.c.bf16 %v1995, %v1995
    %2012 = vrot.lane.b32.xlu0 %v2010, 32
    %v2013 = vpop.permute.xlu0 %2012
    %v2015 = vsel %vm224, %v2013, 0
    %2017 = vmatprep.subr.bf16.mxu0 0
    %2018 = vmatpush1.bf16.msra.mxu0 %v1917
    %2019 = vmatprep.subr.bf16.mxu0 0
    %2020 = vmatpush1.bf16.msra.mxu0 %v1918
    %2021 = vmatprep.subr.bf16.mxu0 0
    %2022 = vmatpush1.bf16.msra.mxu0 0
    %2023 = vmatprep.subr.bf16.mxu0 0
    %2024 = vmatpush1.bf16.msra.mxu0 0
    %2025 = vmatprep.subr.bf16.mxu0 0
    %2026 = vmatpush1.bf16.msra.mxu0 0
    %2027 = vmatprep.subr.bf16.mxu0 0
    %2028 = vmatpush1.bf16.msra.mxu0 0
    %2029 = vmatprep.subr.bf16.mxu0 0
    %2030 = vmatpush1.bf16.msra.mxu0 0
    %2031 = vmatprep.subr.bf16.mxu0 0
    %2032 = vmatpush1.bf16.msra.mxu0 0
    %2033 = vmatprep.subr.bf16.mxu0 0
    %2034 = vmatpush1.bf16.msra.mxu0 0
    %2035 = vmatprep.subr.bf16.mxu0 0
    %2036 = vmatpush1.bf16.msra.mxu0 0
    %2037 = vmatprep.subr.bf16.mxu0 0
    %2038 = vmatpush1.bf16.msra.mxu0 0
    %2039 = vmatprep.subr.bf16.mxu0 0
    %2040 = vmatpush1.bf16.msra.mxu0 0
    %2041 = vmatprep.subr.bf16.mxu0 0
    %2042 = vmatpush1.bf16.msra.mxu0 0
    %2043 = vmatprep.subr.bf16.mxu0 0
    %2044 = vmatpush1.bf16.msra.mxu0 0
    %2045 = vmatprep.subr.bf16.mxu0 0
    %2046 = vmatpush1.bf16.msra.mxu0 0
    %2047 = vmatprep.subr.bf16.mxu0 0
    %2048 = vmatpush1.bf16.msra.mxu0 0
    %2049 = vmatprep.mubr.bf16.mxu0 0
    %2050 = vmatmul.mubr.bf16.gmra.mrb[0].mxu0 %v2015
    %v2051 = vpop.f32.mrb[0].mxu0
    %v2052 = vadd.f32 0.0, %v2051
    %v2053 = vpop.f32.mrb[0].mxu0
    %v2054 = vpop.f32.mrb[0].mxu0
    %v2055 = vpop.f32.mrb[0].mxu0
    %2056 = vdwg.mxu0
    %v2057 = vadd.f32 %v2004, %v2052
    %v2058 = vtanh.pop %v2057
    %v2059 = vmul.f32 %v2058, 0.5
    %v2060 = vadd.f32 %v2059, 0.5
    %2062 = vrot.lane.b32.xlu0 %v2058, 32
    %v2063 = vpop.permute.xlu0 %2062
    %v2065 = vmul.f32 %v2060, %v2063
    %2067 = vrot.lane.b32.xlu0 %v1997, 32
    %v2068 = vpop.permute.xlu0 %2067
    %v2070 = vmul.f32 %v2060, %v2068
    %2072 = vrot.lane.b32.xlu0 %v2070, 96
    %v2073 = vpop.permute.xlu0 %2072
    %v2075 = vadd.f32 %v2065, %v2073
    %v2076 = vtanh.pop %v2075
    %2078 = vrot.lane.b32.xlu0 %v2076, 64
    %v2079 = vpop.permute.xlu0 %2078
    %v2081 = vmul.f32 %v2060, %v2079
    %v2082 = vsub.f32 %v2081, %v1995
    %v2083 = vmul.f32 %v2008, %v2082
    %v2084 = vadd.f32 %v1995, %v2083
    %v2085 = vsub.f32 %v2075, %v1997
    %v2086 = vmul.f32 %v2008, %v2085
    %v2087 = vadd.f32 %v1997, %v2086
    %v2088 = vadd.f32 %v1995, %v2084
    %v2089 = vmax.f32 %v1995, %v2084
    %v2090 = vsel %vm991, %v1906, %v1907
    %2092 = vset.pattern.permute.xlu0 0
    %2093 = vperm.xlu0 %2092, %v1921
    %v2094 = vpop.permute.xlu0 %2093
    %v2096 = vpack.c.bf16 %v2084, %v2084
    %2098 = vrot.lane.b32.xlu0 %v2096, 32
    %v2099 = vpop.permute.xlu0 %2098
    %v2101 = vsel %vm224, %v2099, 0
    %2103 = vmatprep.subr.bf16.mxu0 0
    %2104 = vmatpush1.bf16.msra.mxu0 %v1917
    %2105 = vmatprep.subr.bf16.mxu0 0
    %2106 = vmatpush1.bf16.msra.mxu0 %v1918
    %2107 = vmatprep.subr.bf16.mxu0 0
    %2108 = vmatpush1.bf16.msra.mxu0 0
    %2109 = vmatprep.subr.bf16.mxu0 0
    %2110 = vmatpush1.bf16.msra.mxu0 0
    %2111 = vmatprep.subr.bf16.mxu0 0
    %2112 = vmatpush1.bf16.msra.mxu0 0
    %2113 = vmatprep.subr.bf16.mxu0 0
    %2114 = vmatpush1.bf16.msra.mxu0 0
    %2115 = vmatprep.subr.bf16.mxu0 0
    %2116 = vmatpush1.bf16.msra.mxu0 0
    %2117 = vmatprep.subr.bf16.mxu0 0
    %2118 = vmatpush1.bf16.msra.mxu0 0
    %2119 = vmatprep.subr.bf16.mxu0 0
    %2120 = vmatpush1.bf16.msra.mxu0 0
    %2121 = vmatprep.subr.bf16.mxu0 0
    %2122 = vmatpush1.bf16.msra.mxu0 0
    %2123 = vmatprep.subr.bf16.mxu0 0
    %2124 = vmatpush1.bf16.msra.mxu0 0
    %2125 = vmatprep.subr.bf16.mxu0 0
    %2126 = vmatpush1.bf16.msra.mxu0 0
    %2127 = vmatprep.subr.bf16.mxu0 0
    %2128 = vmatpush1.bf16.msra.mxu0 0
    %2129 = vmatprep.subr.bf16.mxu0 0
    %2130 = vmatpush1.bf16.msra.mxu0 0
    %2131 = vmatprep.subr.bf16.mxu0 0
    %2132 = vmatpush1.bf16.msra.mxu0 0
    %2133 = vmatprep.subr.bf16.mxu0 0
    %2134 = vmatpush1.bf16.msra.mxu0 0
    %2135 = vmatprep.mubr.bf16.mxu0 0
    %2136 = vmatmul.mubr.bf16.gmra.mrb[0].mxu0 %v2101
    %v2137 = vpop.f32.mrb[0].mxu0
    %v2138 = vadd.f32 0.0, %v2137
    %v2139 = vpop.f32.mrb[0].mxu0
    %v2140 = vpop.f32.mrb[0].mxu0
    %v2141 = vpop.f32.mrb[0].mxu0
    %2142 = vdwg.mxu0
    %v2143 = vadd.f32 %v2090, %v2138
    %v2144 = vtanh.pop %v2143
    %v2145 = vmul.f32 %v2144, 0.5
    %v2146 = vadd.f32 %v2145, 0.5
    %2148 = vrot.lane.b32.xlu0 %v2144, 32
    %v2149 = vpop.permute.xlu0 %2148
    %v2151 = vmul.f32 %v2146, %v2149
    %2153 = vrot.lane.b32.xlu0 %v2087, 32
    %v2154 = vpop.permute.xlu0 %2153
    %v2156 = vmul.f32 %v2146, %v2154
    %2158 = vrot.lane.b32.xlu0 %v2156, 96
    %v2159 = vpop.permute.xlu0 %2158
    %v2161 = vadd.f32 %v2151, %v2159
    %v2162 = vtanh.pop %v2161
    %2164 = vrot.lane.b32.xlu0 %v2162, 64
    %v2165 = vpop.permute.xlu0 %2164
    %v2167 = vmul.f32 %v2146, %v2165
    %v2168 = vsub.f32 %v2167, %v2084
    %v2169 = vmul.f32 %v2094, %v2168
    %v2170 = vadd.f32 %v2084, %v2169
    %v2171 = vsub.f32 %v2161, %v2087
    %v2172 = vmul.f32 %v2094, %v2171
    %v2173 = vadd.f32 %v2087, %v2172
    %v2174 = vadd.f32 %v2088, %v2170
    %v2175 = vmax.f32 %v2089, %v2170
    %v2177 = vrot.slane %v1906, 4
    %v2180 = vrot.slane %v1907, 4
    %v2182 = vsel %vm991, %v2177, %v2180
    %2184 = vset.pattern.permute.xlu0 0
    %2185 = vperm.xlu0 %2184, %v1922
    %v2186 = vpop.permute.xlu0 %2185
    %v2188 = vpack.c.bf16 %v2170, %v2170
    %2190 = vrot.lane.b32.xlu0 %v2188, 32
    %v2191 = vpop.permute.xlu0 %2190
    %v2193 = vsel %vm224, %v2191, 0
    %2195 = vmatprep.subr.bf16.mxu0 0
    %2196 = vmatpush1.bf16.msra.mxu0 %v1917
    %2197 = vmatprep.subr.bf16.mxu0 0
    %2198 = vmatpush1.bf16.msra.mxu0 %v1918
    %2199 = vmatprep.subr.bf16.mxu0 0
    %2200 = vmatpush1.bf16.msra.mxu0 0
    %2201 = vmatprep.subr.bf16.mxu0 0
    %2202 = vmatpush1.bf16.msra.mxu0 0
    %2203 = vmatprep.subr.bf16.mxu0 0
    %2204 = vmatpush1.bf16.msra.mxu0 0
    %2205 = vmatprep.subr.bf16.mxu0 0
    %2206 = vmatpush1.bf16.msra.mxu0 0
    %2207 = vmatprep.subr.bf16.mxu0 0
    %2208 = vmatpush1.bf16.msra.mxu0 0
    %2209 = vmatprep.subr.bf16.mxu0 0
    %2210 = vmatpush1.bf16.msra.mxu0 0
    %2211 = vmatprep.subr.bf16.mxu0 0
    %2212 = vmatpush1.bf16.msra.mxu0 0
    %2213 = vmatprep.subr.bf16.mxu0 0
    %2214 = vmatpush1.bf16.msra.mxu0 0
    %2215 = vmatprep.subr.bf16.mxu0 0
    %2216 = vmatpush1.bf16.msra.mxu0 0
    %2217 = vmatprep.subr.bf16.mxu0 0
    %2218 = vmatpush1.bf16.msra.mxu0 0
    %2219 = vmatprep.subr.bf16.mxu0 0
    %2220 = vmatpush1.bf16.msra.mxu0 0
    %2221 = vmatprep.subr.bf16.mxu0 0
    %2222 = vmatpush1.bf16.msra.mxu0 0
    %2223 = vmatprep.subr.bf16.mxu0 0
    %2224 = vmatpush1.bf16.msra.mxu0 0
    %2225 = vmatprep.subr.bf16.mxu0 0
    %2226 = vmatpush1.bf16.msra.mxu0 0
    %2227 = vmatprep.mubr.bf16.mxu0 0
    %2228 = vmatmul.mubr.bf16.gmra.mrb[0].mxu0 %v2193
    %v2229 = vpop.f32.mrb[0].mxu0
    %v2230 = vadd.f32 0.0, %v2229
    %v2231 = vpop.f32.mrb[0].mxu0
    %v2232 = vpop.f32.mrb[0].mxu0
    %v2233 = vpop.f32.mrb[0].mxu0
    %2234 = vdwg.mxu0
    %v2235 = vadd.f32 %v2182, %v2230
    %v2236 = vtanh.pop %v2235
    %v2237 = vmul.f32 %v2236, 0.5
    %v2238 = vadd.f32 %v2237, 0.5
    %2240 = vrot.lane.b32.xlu0 %v2236, 32
    %v2241 = vpop.permute.xlu0 %2240
    %v2243 = vmul.f32 %v2238, %v2241
    %2245 = vrot.lane.b32.xlu0 %v2173, 32
    %v2246 = vpop.permute.xlu0 %2245
    %v2248 = vmul.f32 %v2238, %v2246
    %2250 = vrot.lane.b32.xlu0 %v2248, 96
    %v2251 = vpop.permute.xlu0 %2250
    %v2253 = vadd.f32 %v2243, %v2251
    %v2254 = vtanh.pop %v2253
    %2256 = vrot.lane.b32.xlu0 %v2254, 64
    %v2257 = vpop.permute.xlu0 %2256
    %v2259 = vmul.f32 %v2238, %v2257
    %v2260 = vsub.f32 %v2259, %v2170
    %v2261 = vmul.f32 %v2186, %v2260
    %v2262 = vadd.f32 %v2170, %v2261
    %v2263 = vsub.f32 %v2253, %v2173
    %v2264 = vmul.f32 %v2186, %v2263
    %v2265 = vadd.f32 %v2173, %v2264
    %v2266 = vadd.f32 %v2174, %v2262
    %v2267 = vmax.f32 %v2175, %v2262
    %v2268 = vsel %vm991, %v1907, %v1906
    %2270 = vset.pattern.permute.xlu0 0
    %2271 = vperm.xlu0 %2270, %v1923
    %v2272 = vpop.permute.xlu0 %2271
    %v2274 = vpack.c.bf16 %v2262, %v2262
    %2276 = vrot.lane.b32.xlu0 %v2274, 32
    %v2277 = vpop.permute.xlu0 %2276
    %v2279 = vsel %vm224, %v2277, 0
    %2281 = vmatprep.subr.bf16.mxu0 0
    %2282 = vmatpush1.bf16.msra.mxu0 %v1917
    %2283 = vmatprep.subr.bf16.mxu0 0
    %2284 = vmatpush1.bf16.msra.mxu0 %v1918
    %2285 = vmatprep.subr.bf16.mxu0 0
    %2286 = vmatpush1.bf16.msra.mxu0 0
    %2287 = vmatprep.subr.bf16.mxu0 0
    %2288 = vmatpush1.bf16.msra.mxu0 0
    %2289 = vmatprep.subr.bf16.mxu0 0
    %2290 = vmatpush1.bf16.msra.mxu0 0
    %2291 = vmatprep.subr.bf16.mxu0 0
    %2292 = vmatpush1.bf16.msra.mxu0 0
    %2293 = vmatprep.subr.bf16.mxu0 0
    %2294 = vmatpush1.bf16.msra.mxu0 0
    %2295 = vmatprep.subr.bf16.mxu0 0
    %2296 = vmatpush1.bf16.msra.mxu0 0
    %2297 = vmatprep.subr.bf16.mxu0 0
    %2298 = vmatpush1.bf16.msra.mxu0 0
    %2299 = vmatprep.subr.bf16.mxu0 0
    %2300 = vmatpush1.bf16.msra.mxu0 0
    %2301 = vmatprep.subr.bf16.mxu0 0
    %2302 = vmatpush1.bf16.msra.mxu0 0
    %2303 = vmatprep.subr.bf16.mxu0 0
    %2304 = vmatpush1.bf16.msra.mxu0 0
    %2305 = vmatprep.subr.bf16.mxu0 0
    %2306 = vmatpush1.bf16.msra.mxu0 0
    %2307 = vmatprep.subr.bf16.mxu0 0
    %2308 = vmatpush1.bf16.msra.mxu0 0
    %2309 = vmatprep.subr.bf16.mxu0 0
    %2310 = vmatpush1.bf16.msra.mxu0 0
    %2311 = vmatprep.subr.bf16.mxu0 0
    %2312 = vmatpush1.bf16.msra.mxu0 0
    %2313 = vmatprep.mubr.bf16.mxu0 0
    %2314 = vmatmul.mubr.bf16.gmra.mrb[0].mxu0 %v2279
    %v2315 = vpop.f32.mrb[0].mxu0
    %v2316 = vadd.f32 0.0, %v2315
    %v2317 = vpop.f32.mrb[0].mxu0
    %v2318 = vpop.f32.mrb[0].mxu0
    %v2319 = vpop.f32.mrb[0].mxu0
    %2320 = vdwg.mxu0
    %v2321 = vadd.f32 %v2268, %v2316
    %v2322 = vtanh.pop %v2321
    %v2323 = vmul.f32 %v2322, 0.5
    %v2324 = vadd.f32 %v2323, 0.5
    %2326 = vrot.lane.b32.xlu0 %v2322, 32
    %v2327 = vpop.permute.xlu0 %2326
    %v2329 = vmul.f32 %v2324, %v2327
    %2331 = vrot.lane.b32.xlu0 %v2265, 32
    %v2332 = vpop.permute.xlu0 %2331
    %v2334 = vmul.f32 %v2324, %v2332
    %2336 = vrot.lane.b32.xlu0 %v2334, 96
    %v2337 = vpop.permute.xlu0 %2336
    %v2339 = vadd.f32 %v2329, %v2337
    %v2340 = vtanh.pop %v2339
    %2342 = vrot.lane.b32.xlu0 %v2340, 64
    %v2343 = vpop.permute.xlu0 %2342
    %v2345 = vmul.f32 %v2324, %v2343
    %v2346 = vsub.f32 %v2345, %v2262
    %v2347 = vmul.f32 %v2272, %v2346
    %v2348 = vadd.f32 %v2262, %v2347
    %v2349 = vsub.f32 %v2339, %v2265
    %v2350 = vmul.f32 %v2272, %v2349
    %v2351 = vadd.f32 %v2265, %v2350
    %v2352 = vadd.f32 %v2266, %v2348
    %v2353 = vmax.f32 %v2267, %v2348
    %v2354 = vsel %vm991, %v2180, %v2177
    %2356 = vset.pattern.permute.xlu0 0
    %2357 = vperm.xlu0 %2356, %v1924
    %v2358 = vpop.permute.xlu0 %2357
    %v2360 = vpack.c.bf16 %v2348, %v2348
    %2362 = vrot.lane.b32.xlu0 %v2360, 32
    %v2363 = vpop.permute.xlu0 %2362
    %v2365 = vsel %vm224, %v2363, 0
    %2367 = vmatprep.subr.bf16.mxu0 0
    %2368 = vmatpush1.bf16.msra.mxu0 %v1917
    %2369 = vmatprep.subr.bf16.mxu0 0
    %2370 = vmatpush1.bf16.msra.mxu0 %v1918
    %2371 = vmatprep.subr.bf16.mxu0 0
    %2372 = vmatpush1.bf16.msra.mxu0 0
    %2373 = vmatprep.subr.bf16.mxu0 0
    %2374 = vmatpush1.bf16.msra.mxu0 0
    %2375 = vmatprep.subr.bf16.mxu0 0
    %2376 = vmatpush1.bf16.msra.mxu0 0
    %2377 = vmatprep.subr.bf16.mxu0 0
    %2378 = vmatpush1.bf16.msra.mxu0 0
    %2379 = vmatprep.subr.bf16.mxu0 0
    %2380 = vmatpush1.bf16.msra.mxu0 0
    %2381 = vmatprep.subr.bf16.mxu0 0
    %2382 = vmatpush1.bf16.msra.mxu0 0
    %2383 = vmatprep.subr.bf16.mxu0 0
    %2384 = vmatpush1.bf16.msra.mxu0 0
    %2385 = vmatprep.subr.bf16.mxu0 0
    %2386 = vmatpush1.bf16.msra.mxu0 0
    %2387 = vmatprep.subr.bf16.mxu0 0
    %2388 = vmatpush1.bf16.msra.mxu0 0
    %2389 = vmatprep.subr.bf16.mxu0 0
    %2390 = vmatpush1.bf16.msra.mxu0 0
    %2391 = vmatprep.subr.bf16.mxu0 0
    %2392 = vmatpush1.bf16.msra.mxu0 0
    %2393 = vmatprep.subr.bf16.mxu0 0
    %2394 = vmatpush1.bf16.msra.mxu0 0
    %2395 = vmatprep.subr.bf16.mxu0 0
    %2396 = vmatpush1.bf16.msra.mxu0 0
    %2397 = vmatprep.subr.bf16.mxu0 0
    %2398 = vmatpush1.bf16.msra.mxu0 0
    %2399 = vmatprep.mubr.bf16.mxu0 0
    %2400 = vmatmul.mubr.bf16.gmra.mrb[0].mxu0 %v2365
    %v2401 = vpop.f32.mrb[0].mxu0
    %v2402 = vadd.f32 0.0, %v2401
    %v2403 = vpop.f32.mrb[0].mxu0
    %v2404 = vpop.f32.mrb[0].mxu0
    %v2405 = vpop.f32.mrb[0].mxu0
    %2406 = vdwg.mxu0
    %v2407 = vadd.f32 %v2354, %v2402
    %v2408 = vtanh.pop %v2407
    %v2409 = vmul.f32 %v2408, 0.5
    %v2410 = vadd.f32 %v2409, 0.5
    %2412 = vrot.lane.b32.xlu0 %v2408, 32
    %v2413 = vpop.permute.xlu0 %2412
    %v2415 = vmul.f32 %v2410, %v2413
    %2417 = vrot.lane.b32.xlu0 %v2351, 32
    %v2418 = vpop.permute.xlu0 %2417
    %v2420 = vmul.f32 %v2410, %v2418
    %2422 = vrot.lane.b32.xlu0 %v2420, 96
    %v2423 = vpop.permute.xlu0 %2422
    %v2425 = vadd.f32 %v2415, %v2423
    %v2426 = vtanh.pop %v2425
    %2428 = vrot.lane.b32.xlu0 %v2426, 64
    %v2429 = vpop.permute.xlu0 %2428
    %v2431 = vmul.f32 %v2410, %v2429
    %v2432 = vsub.f32 %v2431, %v2348
    %v2433 = vmul.f32 %v2358, %v2432
    %v2434 = vadd.f32 %v2348, %v2433
    %v2435 = vsub.f32 %v2425, %v2351
    %v2436 = vmul.f32 %v2358, %v2435
    %v2437 = vadd.f32 %v2351, %v2436
    %v2438 = vadd.f32 %v2352, %v2434
    %v2439 = vmax.f32 %v2353, %v2434
    %v2440 = vsel %vm991, %v1908, %v1905
    %2442 = vset.pattern.permute.xlu0 0
    %2443 = vperm.xlu0 %2442, %v1925
    %v2444 = vpop.permute.xlu0 %2443
    %v2446 = vpack.c.bf16 %v2434, %v2434
    %2448 = vrot.lane.b32.xlu0 %v2446, 32
    %v2449 = vpop.permute.xlu0 %2448
    %v2451 = vsel %vm224, %v2449, 0
    %2453 = vmatprep.subr.bf16.mxu0 0
    %2454 = vmatpush1.bf16.msra.mxu0 %v1917
    %2455 = vmatprep.subr.bf16.mxu0 0
    %2456 = vmatpush1.bf16.msra.mxu0 %v1918
    %2457 = vmatprep.subr.bf16.mxu0 0
    %2458 = vmatpush1.bf16.msra.mxu0 0
    %2459 = vmatprep.subr.bf16.mxu0 0
    %2460 = vmatpush1.bf16.msra.mxu0 0
    %2461 = vmatprep.subr.bf16.mxu0 0
    %2462 = vmatpush1.bf16.msra.mxu0 0
    %2463 = vmatprep.subr.bf16.mxu0 0
    %2464 = vmatpush1.bf16.msra.mxu0 0
    %2465 = vmatprep.subr.bf16.mxu0 0
    %2466 = vmatpush1.bf16.msra.mxu0 0
    %2467 = vmatprep.subr.bf16.mxu0 0
    %2468 = vmatpush1.bf16.msra.mxu0 0
    %2469 = vmatprep.subr.bf16.mxu0 0
    %2470 = vmatpush1.bf16.msra.mxu0 0
    %2471 = vmatprep.subr.bf16.mxu0 0
    %2472 = vmatpush1.bf16.msra.mxu0 0
    %2473 = vmatprep.subr.bf16.mxu0 0
    %2474 = vmatpush1.bf16.msra.mxu0 0
    %2475 = vmatprep.subr.bf16.mxu0 0
    %2476 = vmatpush1.bf16.msra.mxu0 0
    %2477 = vmatprep.subr.bf16.mxu0 0
    %2478 = vmatpush1.bf16.msra.mxu0 0
    %2479 = vmatprep.subr.bf16.mxu0 0
    %2480 = vmatpush1.bf16.msra.mxu0 0
    %2481 = vmatprep.subr.bf16.mxu0 0
    %2482 = vmatpush1.bf16.msra.mxu0 0
    %2483 = vmatprep.subr.bf16.mxu0 0
    %2484 = vmatpush1.bf16.msra.mxu0 0
    %2485 = vmatprep.mubr.bf16.mxu0 0
    %2486 = vmatmul.mubr.bf16.gmra.mrb[0].mxu0 %v2451
    %v2487 = vpop.f32.mrb[0].mxu0
    %v2488 = vadd.f32 0.0, %v2487
    %v2489 = vpop.f32.mrb[0].mxu0
    %v2490 = vpop.f32.mrb[0].mxu0
    %v2491 = vpop.f32.mrb[0].mxu0
    %2492 = vdwg.mxu0
    %v2493 = vadd.f32 %v2440, %v2488
    %v2494 = vtanh.pop %v2493
    %v2495 = vmul.f32 %v2494, 0.5
    %v2496 = vadd.f32 %v2495, 0.5
    %2498 = vrot.lane.b32.xlu0 %v2494, 32
    %v2499 = vpop.permute.xlu0 %2498
    %v2501 = vmul.f32 %v2496, %v2499
    %2503 = vrot.lane.b32.xlu0 %v2437, 32
    %v2504 = vpop.permute.xlu0 %2503
    %v2506 = vmul.f32 %v2496, %v2504
    %2508 = vrot.lane.b32.xlu0 %v2506, 96
    %v2509 = vpop.permute.xlu0 %2508
    %v2511 = vadd.f32 %v2501, %v2509
    %v2512 = vtanh.pop %v2511
    %2514 = vrot.lane.b32.xlu0 %v2512, 64
    %v2515 = vpop.permute.xlu0 %2514
    %v2517 = vmul.f32 %v2496, %v2515
    %v2518 = vsub.f32 %v2517, %v2434
    %v2519 = vmul.f32 %v2444, %v2518
    %v2520 = vadd.f32 %v2434, %v2519
    %v2521 = vsub.f32 %v2511, %v2437
    %v2522 = vmul.f32 %v2444, %v2521
    %v2523 = vadd.f32 %v2437, %v2522
    %v2524 = vadd.f32 %v2438, %v2520
    %v2525 = vmax.f32 %v2439, %v2520
    %v2526 = vsel %vm991, %v2002, %v1999
    %2528 = vset.pattern.permute.xlu0 0
    %2529 = vperm.xlu0 %2528, %v1926
    %v2530 = vpop.permute.xlu0 %2529
    %v2532 = vpack.c.bf16 %v2520, %v2520
    %2534 = vrot.lane.b32.xlu0 %v2532, 32
    %v2535 = vpop.permute.xlu0 %2534
    %v2537 = vsel %vm224, %v2535, 0
    %2539 = vmatprep.subr.bf16.mxu0 0
    %2540 = vmatpush1.bf16.msra.mxu0 %v1917
    %2541 = vmatprep.subr.bf16.mxu0 0
    %2542 = vmatpush1.bf16.msra.mxu0 %v1918
    %2543 = vmatprep.subr.bf16.mxu0 0
    %2544 = vmatpush1.bf16.msra.mxu0 0
    %2545 = vmatprep.subr.bf16.mxu0 0
    %2546 = vmatpush1.bf16.msra.mxu0 0
    %2547 = vmatprep.subr.bf16.mxu0 0
    %2548 = vmatpush1.bf16.msra.mxu0 0
    %2549 = vmatprep.subr.bf16.mxu0 0
    %2550 = vmatpush1.bf16.msra.mxu0 0
    %2551 = vmatprep.subr.bf16.mxu0 0
    %2552 = vmatpush1.bf16.msra.mxu0 0
    %2553 = vmatprep.subr.bf16.mxu0 0
    %2554 = vmatpush1.bf16.msra.mxu0 0
    %2555 = vmatprep.subr.bf16.mxu0 0
    %2556 = vmatpush1.bf16.msra.mxu0 0
    %2557 = vmatprep.subr.bf16.mxu0 0
    %2558 = vmatpush1.bf16.msra.mxu0 0
    %2559 = vmatprep.subr.bf16.mxu0 0
    %2560 = vmatpush1.bf16.msra.mxu0 0
    %2561 = vmatprep.subr.bf16.mxu0 0
    %2562 = vmatpush1.bf16.msra.mxu0 0
    %2563 = vmatprep.subr.bf16.mxu0 0
    %2564 = vmatpush1.bf16.msra.mxu0 0
    %2565 = vmatprep.subr.bf16.mxu0 0
    %2566 = vmatpush1.bf16.msra.mxu0 0
    %2567 = vmatprep.subr.bf16.mxu0 0
    %2568 = vmatpush1.bf16.msra.mxu0 0
    %2569 = vmatprep.subr.bf16.mxu0 0
    %2570 = vmatpush1.bf16.msra.mxu0 0
    %2571 = vmatprep.mubr.bf16.mxu0 0
    %2572 = vmatmul.mubr.bf16.gmra.mrb[0].mxu0 %v2537
    %v2573 = vpop.f32.mrb[0].mxu0
    %v2574 = vadd.f32 0.0, %v2573
    %v2575 = vpop.f32.mrb[0].mxu0
    %v2576 = vpop.f32.mrb[0].mxu0
    %v2577 = vpop.f32.mrb[0].mxu0
    %2578 = vdwg.mxu0
    %v2579 = vadd.f32 %v2526, %v2574
    %v2580 = vtanh.pop %v2579
    %v2581 = vmul.f32 %v2580, 0.5
    %v2582 = vadd.f32 %v2581, 0.5
    %2584 = vrot.lane.b32.xlu0 %v2580, 32
    %v2585 = vpop.permute.xlu0 %2584
    %v2587 = vmul.f32 %v2582, %v2585
    %2589 = vrot.lane.b32.xlu0 %v2523, 32
    %v2590 = vpop.permute.xlu0 %2589
    %v2592 = vmul.f32 %v2582, %v2590
    %2594 = vrot.lane.b32.xlu0 %v2592, 96
    %v2595 = vpop.permute.xlu0 %2594
    %v2597 = vadd.f32 %v2587, %v2595
    %v2598 = vtanh.pop %v2597
    %2600 = vrot.lane.b32.xlu0 %v2598, 64
    %v2601 = vpop.permute.xlu0 %2600
    %v2603 = vmul.f32 %v2582, %v2601
    %v2604 = vsub.f32 %v2603, %v2520
    %v2605 = vmul.f32 %v2530, %v2604
    %v2606 = vadd.f32 %v2520, %v2605
    %v2607 = vadd.f32 %v2524, %v2606
    %v2608 = vmax.f32 %v2525, %v2606
    %v2609 = vmul.f32 %v2607, 0.125
    %2611 = vrot.lane.b32.xlu0 %v2609, 32
    %v2612 = vpop.permute.xlu0 %2611
    %v2614 = vrot.slane %v2609, 4
    %2615 = vrot.lane.b32.xlu0 %v2614, 64
    %v2616 = vpop.permute.xlu0 %2615
    %2619 = vrot.lane.b32.xlu0 %v2608, 96
    %v2620 = vpop.permute.xlu0 %2619
    %v2622 = vrot.slane %v2608, 4
    %v2624 = vrot.slane %v2609, 2
    %2625 = vrot.lane.b32.xlu0 %v2624, 32
    %v2626 = vpop.permute.xlu0 %2625
    %v2628 = vrot.slane %v2609, 6
    %2629 = vrot.lane.b32.xlu0 %v2628, 64
    %v2630 = vpop.permute.xlu0 %2629
    %v2632 = vrot.slane %v2608, 2
    %2633 = vrot.lane.b32.xlu0 %v2632, 96
    %v2634 = vpop.permute.xlu0 %2633
    %v2636 = vrot.slane %v2608, 6
    %v2638 = vsel %vm224, %v2612, %v2616
    %v2639 = vsel %vm129, %v2638, %v2620
    %vm2640 = vcmask 785408
    %v2641 = vsel %vm2640, %v2639, %v2622
    %v2642 = vsel %vm224, %v2626, %v2630
    %v2643 = vsel %vm129, %v2642, %v2634
    %v2644 = vsel %vm2640, %v2643, %v2636
    %v2645 = vpack.c.bf16 %v2641, %v2641
    %v2646 = vpack.c.bf16 %v2644, %v2644
    %v2647 = vld [vmem:[%s14] sm:$0xff]
    %v2648 = vld [vmem:[%s14 + $0x8] sm:$0xff]
    %v2649 = vld [vmem:[%s14 + $0x10] sm:$0xff]
    %v2650 = vld [vmem:[%s14 + $0x18] sm:$0xff]
    %v2651 = vld [vmem:[%s14 + $0x20] sm:$0xff]
    %v2652 = vld [vmem:[%s14 + $0x28] sm:$0xff]
    %v2653 = vld [vmem:[%s14 + $0x30] sm:$0xff]
    %v2654 = vld [vmem:[%s14 + $0x38] sm:$0xff]
    %v2655 = vld [vmem:[%s14 + $0x40] sm:$0xff]
    %v2656 = vld [vmem:[%s14 + $0x48] sm:$0xff]
    %v2657 = vld [vmem:[%s14 + $0x50] sm:$0xff]
    %v2658 = vld [vmem:[%s14 + $0x58] sm:$0xff]
    %v2659 = vld [vmem:[%s14 + $0x60] sm:$0xff]
    %v2660 = vld [vmem:[%s14 + $0x68] sm:$0xff]
    %v2661 = vld [vmem:[%s14 + $0x70] sm:$0xff]
    %v2662 = vld [vmem:[%s14 + $0x78] sm:$0xff]
    %v2663 = vld [vmem:[%s14 + $0x80] sm:$0xff]
    %v2664 = vld [vmem:[%s14 + $0x88] sm:$0xff]
    %v2665 = vld [vmem:[%s14 + $0x90] sm:$0xff]
    %v2666 = vld [vmem:[%s14 + $0x98] sm:$0xff]
    %v2667 = vld [vmem:[%s14 + $0xa0] sm:$0xff]
    %v2668 = vld [vmem:[%s14 + $0xa8] sm:$0xff]
    %v2669 = vld [vmem:[%s14 + $0xb0] sm:$0xff]
    %v2670 = vld [vmem:[%s14 + $0xb8] sm:$0xff]
    %v2671 = vld [vmem:[%s14 + $0xc0] sm:$0xff]
    %v2672 = vld [vmem:[%s14 + $0xc8] sm:$0xff]
    %v2673 = vld [vmem:[%s14 + $0xd0] sm:$0xff]
    %v2674 = vld [vmem:[%s14 + $0xd8] sm:$0xff]
    %v2675 = vld [vmem:[%s14 + $0xe0] sm:$0xff]
    %v2676 = vld [vmem:[%s14 + $0xe8] sm:$0xff]
    %v2677 = vld [vmem:[%s14 + $0xf0] sm:$0xff]
    %v2678 = vld [vmem:[%s14 + $0xf8] sm:$0xff]
    %v2679 = vpack.c.bf16 %v2648, %v2647
    %v2680 = vpack.c.bf16 %v2650, %v2649
    %v2681 = vpack.c.bf16 %v2652, %v2651
    %v2682 = vpack.c.bf16 %v2654, %v2653
    %v2683 = vpack.c.bf16 %v2656, %v2655
    %v2684 = vpack.c.bf16 %v2658, %v2657
    %v2685 = vpack.c.bf16 %v2660, %v2659
    %v2686 = vpack.c.bf16 %v2662, %v2661
    %v2687 = vpack.c.bf16 %v2664, %v2663
    %v2688 = vpack.c.bf16 %v2666, %v2665
    %v2689 = vpack.c.bf16 %v2668, %v2667
    %v2690 = vpack.c.bf16 %v2670, %v2669
    %v2691 = vpack.c.bf16 %v2672, %v2671
    %v2692 = vpack.c.bf16 %v2674, %v2673
    %v2693 = vpack.c.bf16 %v2676, %v2675
    %v2694 = vpack.c.bf16 %v2678, %v2677
    %v2695 = vld [vmem:[%s15] sm:$0x1]
    %v2697 = vlaneseq
    %v2698 = vshrl.u32 %v2697, 7
    %v2699 = vsub.s32 0, %v2698
    %v2700 = vrot.slane %v2695, %v2699
    %2702 = vmatprep.subr.bf16.mxu0 0
    %2703 = vmatpush1.bf16.msra.mxu0 %v2679
    %2704 = vmatprep.subr.bf16.mxu0 0
    %2705 = vmatpush1.bf16.msra.mxu0 %v2680
    %2706 = vmatprep.subr.bf16.mxu0 0
    %2707 = vmatpush1.bf16.msra.mxu0 %v2681
    %2708 = vmatprep.subr.bf16.mxu0 0
    %2709 = vmatpush1.bf16.msra.mxu0 %v2682
    %2710 = vmatprep.subr.bf16.mxu0 0
    %2711 = vmatpush1.bf16.msra.mxu0 %v2683
    %2712 = vmatprep.subr.bf16.mxu0 0
    %2713 = vmatpush1.bf16.msra.mxu0 %v2684
    %2714 = vmatprep.subr.bf16.mxu0 0
    %2715 = vmatpush1.bf16.msra.mxu0 %v2685
    %2716 = vmatprep.subr.bf16.mxu0 0
    %2717 = vmatpush1.bf16.msra.mxu0 %v2686
    %2718 = vmatprep.subr.bf16.mxu0 0
    %2719 = vmatpush1.bf16.msra.mxu0 %v2687
    %2720 = vmatprep.subr.bf16.mxu0 0
    %2721 = vmatpush1.bf16.msra.mxu0 %v2688
    %2722 = vmatprep.subr.bf16.mxu0 0
    %2723 = vmatpush1.bf16.msra.mxu0 %v2689
    %2724 = vmatprep.subr.bf16.mxu0 0
    %2725 = vmatpush1.bf16.msra.mxu0 %v2690
    %2726 = vmatprep.subr.bf16.mxu0 0
    %2727 = vmatpush1.bf16.msra.mxu0 %v2691
    %2728 = vmatprep.subr.bf16.mxu0 0
    %2729 = vmatpush1.bf16.msra.mxu0 %v2692
    %2730 = vmatprep.subr.bf16.mxu0 0
    %2731 = vmatpush1.bf16.msra.mxu0 %v2693
    %2732 = vmatprep.subr.bf16.mxu0 0
    %2733 = vmatpush1.bf16.msra.mxu0 %v2694
    %2734 = vmatprep.mubr.bf16.mxu0 %v2646
    %2735 = vmatmul.mubr.bf16.gmra.mrb[0].mxu0 %v2645
    %v2736 = vpop.f32.mrb[0].mxu0
    %v2737 = vadd.f32 %v2700, %v2736
    %v2738 = vpop.f32.mrb[0].mxu0
    %v2739 = vpop.f32.mrb[0].mxu0
    %v2740 = vpop.f32.mrb[0].mxu0
    %2741 = vdwg.mxu0
    %v2742 = vmax.f32 %v2737, 0.0
    %v2743 = vpack.c.bf16 %v2742, %v2742
    %v2744 = vld [vmem:[%s16] sm:$0xff]
    %v2745 = vld [vmem:[%s16 + $0x8] sm:$0xff]
    %v2746 = vld [vmem:[%s16 + $0x10] sm:$0xff]
    %v2747 = vld [vmem:[%s16 + $0x18] sm:$0xff]
    %v2748 = vpack.c.bf16 %v2745, %v2744
    %v2749 = vpack.c.bf16 %v2747, %v2746
    %v2750 = vld [vmem:[%s17] sm:$0x1]
    %v2752 = vlaneseq
    %v2753 = vshrl.u32 %v2752, 7
    %v2754 = vsub.s32 0, %v2753
    %v2755 = vrot.slane %v2750, %v2754
    %v2758 = vsel %vm224, %v2743, 0
    %2760 = vmatprep.subr.bf16.mxu0 0
    %2761 = vmatpush1.bf16.msra.mxu0 %v2748
    %2762 = vmatprep.subr.bf16.mxu0 0
    %2763 = vmatpush1.bf16.msra.mxu0 %v2749
    %2764 = vmatprep.subr.bf16.mxu0 0
    %2765 = vmatpush1.bf16.msra.mxu0 0
    %2766 = vmatprep.subr.bf16.mxu0 0
    %2767 = vmatpush1.bf16.msra.mxu0 0
    %2768 = vmatprep.subr.bf16.mxu0 0
    %2769 = vmatpush1.bf16.msra.mxu0 0
    %2770 = vmatprep.subr.bf16.mxu0 0
    %2771 = vmatpush1.bf16.msra.mxu0 0
    %2772 = vmatprep.subr.bf16.mxu0 0
    %2773 = vmatpush1.bf16.msra.mxu0 0
    %2774 = vmatprep.subr.bf16.mxu0 0
    %2775 = vmatpush1.bf16.msra.mxu0 0
    %2776 = vmatprep.subr.bf16.mxu0 0
    %2777 = vmatpush1.bf16.msra.mxu0 0
    %2778 = vmatprep.subr.bf16.mxu0 0
    %2779 = vmatpush1.bf16.msra.mxu0 0
    %2780 = vmatprep.subr.bf16.mxu0 0
    %2781 = vmatpush1.bf16.msra.mxu0 0
    %2782 = vmatprep.subr.bf16.mxu0 0
    %2783 = vmatpush1.bf16.msra.mxu0 0
    %2784 = vmatprep.subr.bf16.mxu0 0
    %2785 = vmatpush1.bf16.msra.mxu0 0
    %2786 = vmatprep.subr.bf16.mxu0 0
    %2787 = vmatpush1.bf16.msra.mxu0 0
    %2788 = vmatprep.subr.bf16.mxu0 0
    %2789 = vmatpush1.bf16.msra.mxu0 0
    %2790 = vmatprep.subr.bf16.mxu0 0
    %2791 = vmatpush1.bf16.msra.mxu0 0
    %2792 = vmatprep.mubr.bf16.mxu0 0
    %2793 = vmatmul.mubr.bf16.gmra.mrb[0].mxu0 %v2758
    %v2794 = vpop.f32.mrb[0].mxu0
    %v2795 = vadd.f32 %v2755, %v2794
    %v2796 = vpop.f32.mrb[0].mxu0
    %v2797 = vpop.f32.mrb[0].mxu0
    %v2798 = vpop.f32.mrb[0].mxu0
    %2799 = vdwg.mxu0
    %vm2800 = vcmask 17408
    %2801 = vst.msk [vmem:[#allocation2] sm:$0x3] %vm2800, %v2795
    // Predicated region
    $region74: #{esim_forward.1} parent=1 // pred_check
      _
    $region75: #{esim_forward.1} parent=1 // pred_check_branch
      %2803 = sbr.rel (0) target = $region77
    $region76: #{esim_forward.1} parent=1 // pred_region
      %s2805 = ssub.s32 32, 32
      %2806 = vsyncadd [#allocation3], %s2805
      %s2808 = sshll.u32 [#allocation2], 4
      %s2809 = int_to_ptr.vmem [resolvable:$true] %s2808
      %2811 = dma.vmem_to_hbm [thread:$0]  %s2809, 32, %s18, [#allocation3]
    $region77: #{esim_forward.1} parent=1 // pred_fallthru
      _
    // Predicated region
    $region78: #{esim_forward.1} parent=1 // pred_check
      _
    $region79: #{esim_forward.1} parent=1 // pred_check_branch
      %2813 = sbr.rel (0) target = $region81
    $region80: #{esim_forward.1} parent=1 // pred_region
      %2814 = dma.done [#allocation3], 32
    $region81: #{esim_forward.1} parent=1 // pred_fallthru
      _
    %2815 = vsyncpa [#allocation3], 1

</llo_original>
